<compile_context>
chip_gen: v6e
topology: v6e:2x2x1
jax: 0.10.0
libtpu: 0.0.40
codegen_flags: <defaults>
</compile_context>

<pallas_src>
import functools
import math

import jax
import jax.numpy as jnp
from jax.experimental import pallas as pl
from jax.experimental.pallas import tpu as pltpu


# ----------------------------- fused Pallas kernel -----------------------------

def cldnn_g_kernel(
    patches_ref, attn_bias_ref, head_mask_ref,
    enc_w_ref, enc_b_ref,
    wq_ref, bq_ref, wk_ref, bk_ref, wv_ref, bv_ref, wo_ref, bo_ref,
    l0f_wih_ref, l0f_whh_ref, l0f_b_ref,
    l0b_wih_ref, l0b_whh_ref, l0b_b_ref,
    l1f_wih_ref, l1f_whh_ref, l1f_b_ref,
    l1b_wih_ref, l1b_whh_ref, l1b_b_ref,
    fc_w_ref, fc_b_ref,
    out_ref,
    *, batch, seq_len, num_heads, head_size):
    """Entire CLDNN_G('1d') forward for one (small) batch, everything in VMEM.

    All sequence tensors are kept flat & time-major: row index = t * B + b.
    """
    B, T = batch, seq_len
    f32 = jnp.float32

    # ---------------- encoder: im2col patches @ W + b, ReLU ----------------
    feat = jnp.dot(patches_ref[...], enc_w_ref[...],
                   preferred_element_type=f32) + enc_b_ref[...]
    feat = jnp.maximum(feat, 0.0)                          # (T*B, D)

    D = feat.shape[-1]

    # ---------------- multi-head self-attention + residual ----------------
    q = jnp.dot(feat, wq_ref[...], preferred_element_type=f32) + bq_ref[...]
    k = jnp.dot(feat, wk_ref[...], preferred_element_type=f32) + bk_ref[...]
    v = jnp.dot(feat, wv_ref[...], preferred_element_type=f32) + bv_ref[...]

    attn_bias = attn_bias_ref[...]                         # (T*B, T*B): 0 same-batch, -1e30 cross-batch
    scale = 1.0 / math.sqrt(head_size)

    ctx = jnp.zeros((T * B, D), f32)
    for h in range(num_heads):                             # static loop over 4 heads
        m = head_mask_ref[h:h + 1, :]                      # (1, D) one-hot lane mask of head h
        # full-width contraction; masked lanes contribute exact zeros
        s = jax.lax.dot_general(q, k * m, (((1,), (1,)), ((), ())),
                                preferred_element_type=f32) * scale + attn_bias
        s = s - jnp.max(s, axis=-1, keepdims=True)
        p = jnp.exp(s)
        p = p / jnp.sum(p, axis=-1, keepdims=True)         # softmax(dim=-1), per batch via bias
        ctx = ctx + jnp.dot(p, v, preferred_element_type=f32) * m

    attn = jnp.dot(ctx, wo_ref[...], preferred_element_type=f32) + bo_ref[...]
    hres = feat + attn                                     # residual: h + attn(h)   (T*B, D)

    # ---------------- bidirectional 2-layer LSTM (unrolled in-kernel) ----------------
    def lstm_direction(gx, whh, reverse):
        """gx: (T*B, 4H) precomputed x@Wih + b (time-major). Returns list of T (B, H)."""
        H = whh.shape[0]
        h = jnp.zeros((B, H), f32)
        c = jnp.zeros((B, H), f32)
        outs = [None] * T
        steps = range(T - 1, -1, -1) if reverse else range(T)
        for t in steps:                                    # fully unrolled (T static)
            g = gx[t * B:(t + 1) * B, :] + jnp.dot(h, whh, preferred_element_type=f32)
            i_g = jax.nn.sigmoid(g[:, 0:H])                # PyTorch gate order [i, f, g, o]
            f_g = jax.nn.sigmoid(g[:, H:2 * H])
            g_g = jnp.tanh(g[:, 2 * H:3 * H])
            o_g = jax.nn.sigmoid(g[:, 3 * H:4 * H])
            c = f_g * c + i_g * g_g
            h = o_g * jnp.tanh(c)
            outs[t] = h
        return outs

    def bilstm(x_flat, wih_f, whh_f, b_f, wih_b, whh_b, b_b):
        # hoisted input projections: one matmul per direction for all T steps
        gx_f = jnp.dot(x_flat, wih_f, preferred_element_type=f32) + b_f
        gx_b = jnp.dot(x_flat, wih_b, preferred_element_type=f32) + b_b
        out_f = lstm_direction(gx_f, whh_f, reverse=False)
        out_b = lstm_direction(gx_b, whh_b, reverse=True)
        # per-time-step (B, 2H) rows, lane-dense 2H
        return [jnp.concatenate([out_f[t], out_b[t]], axis=-1) for t in range(T)]

    rows1 = bilstm(hres,
                   l0f_wih_ref[...], l0f_whh_ref[...], l0f_b_ref[...],
                   l0b_wih_ref[...], l0b_whh_ref[...], l0b_b_ref[...])
    seq1 = jnp.concatenate(rows1, axis=0)                  # (T*B, 2H) time-major
    rows2 = bilstm(seq1,
                   l1f_wih_ref[...], l1f_whh_ref[...], l1f_b_ref[...],
                   l1b_wih_ref[...], l1b_whh_ref[...], l1b_b_ref[...])
    last = rows2[T - 1]                                    # output[-1]: (B, 2H)

    # ---------------- fc + sigmoid (folded in) ----------------
    logits = jnp.dot(last, fc_w_ref[...], preferred_element_type=f32) + fc_b_ref[...]
    out_ref[...] = jax.nn.sigmoid(logits)                  # (B, 1)


# ----------------------------- wrapper (glue) -----------------------------

def cldnn_g_forward(params, x):
    """CLDNN_G('1d') forward. x: (B, 1, F, T) NCHW float32 -> (B, 1)."""
    B, _, F, T = x.shape
    N = T * B

    # Synthetic encoder im2col (3 XLA ops, ~KB): time-major patches (T*B, 3F).
    xt = jnp.transpose(x[:, 0].astype(jnp.float32), (2, 0, 1))        # (T, B, F)
    zero = jnp.zeros((1, B, F), jnp.float32)
    x_prev = jnp.concatenate([zero, xt[:-1]], axis=0)
    x_next = jnp.concatenate([xt[1:], zero], axis=0)
    patches = jnp.concatenate([x_prev, xt, x_next], axis=-1).reshape(N, 3 * F)

    num_heads, D = 4, params["enc_w"].shape[1]
    head_size = D // num_heads

    # Constant masks (folded by XLA): cross-batch additive bias + per-head lane one-hot.
    row_b = jnp.arange(N, dtype=jnp.int32)[:, None] % B
    col_b = jnp.arange(N, dtype=jnp.int32)[None, :] % B
    attn_bias = jnp.where(row_b == col_b, 0.0, -1e30).astype(jnp.float32)    # (N, N)
    head_mask = (jnp.arange(D, dtype=jnp.int32)[None, :] // head_size ==
                 jnp.arange(num_heads, dtype=jnp.int32)[:, None]).astype(jnp.float32)  # (nH, D)

    a = params["attn"]
    l0, l1 = params["lstm"]
    args = (
        patches, attn_bias, head_mask,
        params["enc_w"], params["enc_b"],
        a["wq"], a["bq"], a["wk"], a["bk"], a["wv"], a["bv"], a["wo"], a["bo"],
        l0["fwd"]["wih"], l0["fwd"]["whh"], l0["fwd"]["b"],
        l0["bwd"]["wih"], l0["bwd"]["whh"], l0["bwd"]["b"],
        l1["fwd"]["wih"], l1["fwd"]["whh"], l1["fwd"]["b"],
        l1["bwd"]["wih"], l1["bwd"]["whh"], l1["bwd"]["b"],
        params["fc_w"], params["fc_b"],
    )

    kern = functools.partial(cldnn_g_kernel, batch=B, seq_len=T,
                             num_heads=num_heads, head_size=head_size)
    vmem_spec = pl.BlockSpec(memory_space=pltpu.MemorySpace.VMEM)
    return pl.pallas_call(
        kern,
        out_shape=jax.ShapeDtypeStruct((B, 1), jnp.float32),
        in_specs=[vmem_spec] * len(args),
        out_specs=vmem_spec,
    )(*args)


# ----------------------------- pure-JAX reference -----------------------------

def reference_forward(params, x):
    B, _, F, T = x.shape
    xt = jnp.transpose(x[:, 0].astype(jnp.float32), (2, 0, 1))        # (T, B, F)
    zero = jnp.zeros((1, B, F), jnp.float32)
    x_prev = jnp.concatenate([zero, xt[:-1]], axis=0)
    x_next = jnp.concatenate([xt[1:], zero], axis=0)
    patches = jnp.concatenate([x_prev, xt, x_next], axis=-1)           # (T, B, 3F)
    feat = jax.nn.relu(jnp.einsum("tbk,kc->tbc", patches, params["enc_w"]) + params["enc_b"])

    hbt = jnp.transpose(feat, (1, 0, 2))                               # (B, T, D)
    a = params["attn"]
    nh, D = 4, hbt.shape[-1]
    hd = D // nh
    q = hbt @ a["wq"] + a["bq"]
    k = hbt @ a["wk"] + a["bk"]
    v = hbt @ a["wv"] + a["bv"]
    split = lambda z: jnp.transpose(z.reshape(B, T, nh, hd), (0, 2, 1, 3))
    s = jnp.einsum("bhqd,bhkd->bhqk", split(q), split(k)) / math.sqrt(hd)
    p = jax.nn.softmax(s, axis=-1)
    ctx = jnp.einsum("bhqk,bhkd->bhqd", p, split(v))
    ctx = jnp.transpose(ctx, (0, 2, 1, 3)).reshape(B, T, D)
    out = hbt + (ctx @ a["wo"] + a["bo"])
    seq = jnp.transpose(out, (1, 0, 2))                                # (T, B, D)

    def lstm_dir(xs, wih, whh, b, reverse):
        H = whh.shape[0]
        def step(carry, x_t):
            h, c = carry
            g = x_t @ wih + h @ whh + b
            i = jax.nn.sigmoid(g[:, :H]); f = jax.nn.sigmoid(g[:, H:2 * H])
            gg = jnp.tanh(g[:, 2 * H:3 * H]); o = jax.nn.sigmoid(g[:, 3 * H:])
            c = f * c + i * gg
            h = o * jnp.tanh(c)
            return (h, c), h
        xs_ = jnp.flip(xs, 0) if reverse else xs
        _, ys = jax.lax.scan(step, (jnp.zeros((B, H)), jnp.zeros((B, H))), xs_)
        return jnp.flip(ys, 0) if reverse else ys

    def bilstm(xs, lp):
        yf = lstm_dir(xs, lp["fwd"]["wih"], lp["fwd"]["whh"], lp["fwd"]["b"], False)
        yb = lstm_dir(xs, lp["bwd"]["wih"], lp["bwd"]["whh"], lp["bwd"]["b"], True)
        return jnp.concatenate([yf, yb], axis=-1)

    s1 = bilstm(seq, params["lstm"][0])
    s2 = bilstm(s1, params["lstm"][1])
    return jax.nn.sigmoid(s2[-1] @ params["fc_w"] + params["fc_b"])


# ----------------------------- parameter init -----------------------------

def _uniform(key, shape, scale):
    return jax.random.uniform(key, shape, jnp.float32, -scale, scale)


def init_params(key, *, freq=16, enc_out=8, hidden=64, num_layers=2):
    keys = iter(jax.random.split(key, 64))
    params = {}
    K = 3 * freq                                   # synthetic conv: (K=3F, C)
    s = 1.0 / math.sqrt(K)
    params["enc_w"] = _uniform(next(keys), (K, enc_out), s)
    params["enc_b"] = _uniform(next(keys), (1, enc_out), s)
    D = enc_out
    s = 1.0 / math.sqrt(D)
    attn = {}
    for name in ("q", "k", "v", "o"):
        attn["w" + name] = _uniform(next(keys), (D, D), s)
        attn["b" + name] = _uniform(next(keys), (1, D), s)
    params["attn"] = attn
    lstm = []
    s = 1.0 / math.sqrt(hidden)
    for layer in range(num_layers):
        in_size = D if layer == 0 else 2 * hidden
        layer_p = {}
        for direction in ("fwd", "bwd"):
            layer_p[direction] = {
                "wih": _uniform(next(keys), (in_size, 4 * hidden), s),
                "whh": _uniform(next(keys), (hidden, 4 * hidden), s),
                "b": _uniform(next(keys), (1, 4 * hidden), s)      # b_ih + b_hh combined
                     + _uniform(next(keys), (1, 4 * hidden), s),
            }
        lstm.append(layer_p)
    params["lstm"] = lstm
    s = 1.0 / math.sqrt(2 * hidden)
    params["fc_w"] = _uniform(next(keys), (2 * hidden, 1), s)
    params["fc_b"] = _uniform(next(keys), (1, 1), s)
    return params


# ----------------------------- main -----------------------------

if __name__ == "__main__":
    B, C_IN, F, T = 2, 1, 16, 8
    key = jax.random.PRNGKey(0)
    k_x, k_p = jax.random.split(key)
    x = jax.random.normal(k_x, (B, C_IN, F, T), jnp.float32)
    params = init_params(k_p, freq=F, enc_out=8, hidden=64, num_layers=2)

    out = jax.jit(cldnn_g_forward)(params, x)
    out = jax.block_until_ready(out)
    assert out.shape == (B, 1), out.shape

    ref = reference_forward(params, x)
    err = float(jnp.max(jnp.abs(out - ref)))
    assert err < 1e-4, f"mismatch vs pure-JAX reference: {err}"
    print("KERNEL_OK")
</pallas_src>

<mosaic_0001>
module attributes {stable_mosaic.version = 11 : i64} {
  func.func @cldnn_g_kernel(%arg0: memref<16x48xf32, #tpu.memory_space<vmem>>, %arg1: memref<16x16xf32, #tpu.memory_space<vmem>>, %arg2: memref<4x8xf32, #tpu.memory_space<vmem>>, %arg3: memref<48x8xf32, #tpu.memory_space<vmem>>, %arg4: memref<1x8xf32, #tpu.memory_space<vmem>>, %arg5: memref<8x8xf32, #tpu.memory_space<vmem>>, %arg6: memref<1x8xf32, #tpu.memory_space<vmem>>, %arg7: memref<8x8xf32, #tpu.memory_space<vmem>>, %arg8: memref<1x8xf32, #tpu.memory_space<vmem>>, %arg9: memref<8x8xf32, #tpu.memory_space<vmem>>, %arg10: memref<1x8xf32, #tpu.memory_space<vmem>>, %arg11: memref<8x8xf32, #tpu.memory_space<vmem>>, %arg12: memref<1x8xf32, #tpu.memory_space<vmem>>, %arg13: memref<8x256xf32, #tpu.memory_space<vmem>>, %arg14: memref<64x256xf32, #tpu.memory_space<vmem>>, %arg15: memref<1x256xf32, #tpu.memory_space<vmem>>, %arg16: memref<8x256xf32, #tpu.memory_space<vmem>>, %arg17: memref<64x256xf32, #tpu.memory_space<vmem>>, %arg18: memref<1x256xf32, #tpu.memory_space<vmem>>, %arg19: memref<128x256xf32, #tpu.memory_space<vmem>>, %arg20: memref<64x256xf32, #tpu.memory_space<vmem>>, %arg21: memref<1x256xf32, #tpu.memory_space<vmem>>, %arg22: memref<128x256xf32, #tpu.memory_space<vmem>>, %arg23: memref<64x256xf32, #tpu.memory_space<vmem>>, %arg24: memref<1x256xf32, #tpu.memory_space<vmem>>, %arg25: memref<128x1xf32, #tpu.memory_space<vmem>>, %arg26: memref<1x1xf32, #tpu.memory_space<vmem>>, %arg27: memref<2x1xf32, #tpu.memory_space<vmem>>) attributes {dimension_semantics = [], scalar_prefetch = 0 : i64, scratch_operands = 0 : i64, tpu.core_type = #tpu.core_type<tc>} {
    %c0 = arith.constant 0 : index
    %c0_0 = arith.constant 0 : index
    %0 = vector.load %arg0[%c0, %c0_0] : memref<16x48xf32, #tpu.memory_space<vmem>>, vector<16x48xf32>
    %c0_1 = arith.constant 0 : index
    %c0_2 = arith.constant 0 : index
    %1 = vector.load %arg3[%c0_1, %c0_2] : memref<48x8xf32, #tpu.memory_space<vmem>>, vector<48x8xf32>
    %cst = arith.constant dense<0.000000e+00> : vector<16x8xf32>
    %2 = tpu.matmul %0, %1, %cst {dimension_numbers = #tpu.dot_dimension_numbers<[1], [0], [0], [1], [0, 0, 1, 1], [], []>} : vector<16x48xf32>, vector<48x8xf32>, vector<16x8xf32> -> vector<16x8xf32>
    %c0_3 = arith.constant 0 : index
    %c0_4 = arith.constant 0 : index
    %3 = vector.load %arg4[%c0_3, %c0_4] : memref<1x8xf32, #tpu.memory_space<vmem>>, vector<1x8xf32>
    %4 = vector.broadcast %3 : vector<1x8xf32> to vector<16x8xf32>
    %5 = arith.addf %2, %4 : vector<16x8xf32>
    %cst_5 = arith.constant 0.000000e+00 : f32
    %6 = vector.broadcast %cst_5 : f32 to vector<16x8xf32>
    %7 = arith.maximumf %5, %6 : vector<16x8xf32>
    %c0_6 = arith.constant 0 : index
    %c0_7 = arith.constant 0 : index
    %8 = vector.load %arg5[%c0_6, %c0_7] : memref<8x8xf32, #tpu.memory_space<vmem>>, vector<8x8xf32>
    %cst_8 = arith.constant dense<0.000000e+00> : vector<16x8xf32>
    %9 = tpu.matmul %7, %8, %cst_8 {dimension_numbers = #tpu.dot_dimension_numbers<[1], [0], [0], [1], [0, 0, 1, 1], [], []>} : vector<16x8xf32>, vector<8x8xf32>, vector<16x8xf32> -> vector<16x8xf32>
    %c0_9 = arith.constant 0 : index
    %c0_10 = arith.constant 0 : index
    %10 = vector.load %arg6[%c0_9, %c0_10] : memref<1x8xf32, #tpu.memory_space<vmem>>, vector<1x8xf32>
    %11 = vector.broadcast %10 : vector<1x8xf32> to vector<16x8xf32>
    %12 = arith.addf %9, %11 : vector<16x8xf32>
    %c0_11 = arith.constant 0 : index
    %c0_12 = arith.constant 0 : index
    %13 = vector.load %arg7[%c0_11, %c0_12] : memref<8x8xf32, #tpu.memory_space<vmem>>, vector<8x8xf32>
    %cst_13 = arith.constant dense<0.000000e+00> : vector<16x8xf32>
    %14 = tpu.matmul %7, %13, %cst_13 {dimension_numbers = #tpu.dot_dimension_numbers<[1], [0], [0], [1], [0, 0, 1, 1], [], []>} : vector<16x8xf32>, vector<8x8xf32>, vector<16x8xf32> -> vector<16x8xf32>
    %c0_14 = arith.constant 0 : index
    %c0_15 = arith.constant 0 : index
    %15 = vector.load %arg8[%c0_14, %c0_15] : memref<1x8xf32, #tpu.memory_space<vmem>>, vector<1x8xf32>
    %16 = vector.broadcast %15 : vector<1x8xf32> to vector<16x8xf32>
    %17 = arith.addf %14, %16 : vector<16x8xf32>
    %c0_16 = arith.constant 0 : index
    %c0_17 = arith.constant 0 : index
    %18 = vector.load %arg9[%c0_16, %c0_17] : memref<8x8xf32, #tpu.memory_space<vmem>>, vector<8x8xf32>
    %cst_18 = arith.constant dense<0.000000e+00> : vector<16x8xf32>
    %19 = tpu.matmul %7, %18, %cst_18 {dimension_numbers = #tpu.dot_dimension_numbers<[1], [0], [0], [1], [0, 0, 1, 1], [], []>} : vector<16x8xf32>, vector<8x8xf32>, vector<16x8xf32> -> vector<16x8xf32>
    %c0_19 = arith.constant 0 : index
    %c0_20 = arith.constant 0 : index
    %20 = vector.load %arg10[%c0_19, %c0_20] : memref<1x8xf32, #tpu.memory_space<vmem>>, vector<1x8xf32>
    %21 = vector.broadcast %20 : vector<1x8xf32> to vector<16x8xf32>
    %22 = arith.addf %19, %21 : vector<16x8xf32>
    %c0_21 = arith.constant 0 : index
    %c0_22 = arith.constant 0 : index
    %23 = vector.load %arg1[%c0_21, %c0_22] : memref<16x16xf32, #tpu.memory_space<vmem>>, vector<16x16xf32>
    %cst_23 = arith.constant 0.000000e+00 : f32
    %24 = vector.broadcast %cst_23 : f32 to vector<16x8xf32>
    %c0_24 = arith.constant 0 : index
    %c0_25 = arith.constant 0 : index
    %25 = vector.load %arg2[%c0_24, %c0_25] : memref<4x8xf32, #tpu.memory_space<vmem>>, vector<1x8xf32>
    %26 = vector.broadcast %25 : vector<1x8xf32> to vector<16x8xf32>
    %27 = arith.mulf %17, %26 : vector<16x8xf32>
    %cst_26 = arith.constant dense<0.000000e+00> : vector<16x16xf32>
    %28 = tpu.matmul %12, %27, %cst_26 {dimension_numbers = #tpu.dot_dimension_numbers<[1], [1], [0], [0], [0, 0, 1, 0], [], []>} : vector<16x8xf32>, vector<16x8xf32>, vector<16x16xf32> -> vector<16x16xf32>
    %cst_27 = arith.constant 0.707106769 : f32
    %29 = vector.broadcast %cst_27 : f32 to vector<16x16xf32>
    %30 = arith.mulf %28, %29 : vector<16x16xf32>
    %31 = arith.addf %30, %23 : vector<16x16xf32>
    %cst_28 = arith.constant dense<0xFF800000> : vector<16xf32>
    %32 = vector.multi_reduction <maximumf>, %31, %cst_28 [1] : vector<16x16xf32> to vector<16xf32>
    %33 = vector.shape_cast %32 : vector<16xf32> to vector<16x1xf32>
    %34 = vector.broadcast %33 : vector<16x1xf32> to vector<16x16xf32>
    %35 = arith.subf %31, %34 : vector<16x16xf32>
    %36 = math.exp %35 : vector<16x16xf32>
    %cst_29 = arith.constant dense<0.000000e+00> : vector<16xf32>
    %37 = vector.multi_reduction <add>, %36, %cst_29 [1] : vector<16x16xf32> to vector<16xf32>
    %38 = vector.shape_cast %37 : vector<16xf32> to vector<16x1xf32>
    %39 = vector.broadcast %38 : vector<16x1xf32> to vector<16x16xf32>
    %40 = arith.divf %36, %39 : vector<16x16xf32>
    %cst_30 = arith.constant dense<0.000000e+00> : vector<16x8xf32>
    %41 = tpu.matmul %40, %22, %cst_30 {dimension_numbers = #tpu.dot_dimension_numbers<[1], [0], [0], [1], [0, 0, 1, 1], [], []>} : vector<16x16xf32>, vector<16x8xf32>, vector<16x8xf32> -> vector<16x8xf32>
    %42 = vector.broadcast %25 : vector<1x8xf32> to vector<16x8xf32>
    %43 = arith.mulf %41, %42 : vector<16x8xf32>
    %44 = arith.addf %24, %43 : vector<16x8xf32>
    %c1 = arith.constant 1 : index
    %c0_31 = arith.constant 0 : index
    %45 = vector.load %arg2[%c1, %c0_31] : memref<4x8xf32, #tpu.memory_space<vmem>>, vector<1x8xf32>
    %46 = vector.broadcast %45 : vector<1x8xf32> to vector<16x8xf32>
    %47 = arith.mulf %17, %46 : vector<16x8xf32>
    %cst_32 = arith.constant dense<0.000000e+00> : vector<16x16xf32>
    %48 = tpu.matmul %12, %47, %cst_32 {dimension_numbers = #tpu.dot_dimension_numbers<[1], [1], [0], [0], [0, 0, 1, 0], [], []>} : vector<16x8xf32>, vector<16x8xf32>, vector<16x16xf32> -> vector<16x16xf32>
    %cst_33 = arith.constant 0.707106769 : f32
    %49 = vector.broadcast %cst_33 : f32 to vector<16x16xf32>
    %50 = arith.mulf %48, %49 : vector<16x16xf32>
    %51 = arith.addf %50, %23 : vector<16x16xf32>
    %cst_34 = arith.constant dense<0xFF800000> : vector<16xf32>
    %52 = vector.multi_reduction <maximumf>, %51, %cst_34 [1] : vector<16x16xf32> to vector<16xf32>
    %53 = vector.shape_cast %52 : vector<16xf32> to vector<16x1xf32>
    %54 = vector.broadcast %53 : vector<16x1xf32> to vector<16x16xf32>
    %55 = arith.subf %51, %54 : vector<16x16xf32>
    %56 = math.exp %55 : vector<16x16xf32>
    %cst_35 = arith.constant dense<0.000000e+00> : vector<16xf32>
    %57 = vector.multi_reduction <add>, %56, %cst_35 [1] : vector<16x16xf32> to vector<16xf32>
    %58 = vector.shape_cast %57 : vector<16xf32> to vector<16x1xf32>
    %59 = vector.broadcast %58 : vector<16x1xf32> to vector<16x16xf32>
    %60 = arith.divf %56, %59 : vector<16x16xf32>
    %cst_36 = arith.constant dense<0.000000e+00> : vector<16x8xf32>
    %61 = tpu.matmul %60, %22, %cst_36 {dimension_numbers = #tpu.dot_dimension_numbers<[1], [0], [0], [1], [0, 0, 1, 1], [], []>} : vector<16x16xf32>, vector<16x8xf32>, vector<16x8xf32> -> vector<16x8xf32>
    %62 = vector.broadcast %45 : vector<1x8xf32> to vector<16x8xf32>
    %63 = arith.mulf %61, %62 : vector<16x8xf32>
    %64 = arith.addf %44, %63 : vector<16x8xf32>
    %c2 = arith.constant 2 : index
    %c0_37 = arith.constant 0 : index
    %65 = vector.load %arg2[%c2, %c0_37] : memref<4x8xf32, #tpu.memory_space<vmem>>, vector<1x8xf32>
    %66 = vector.broadcast %65 : vector<1x8xf32> to vector<16x8xf32>
    %67 = arith.mulf %17, %66 : vector<16x8xf32>
    %cst_38 = arith.constant dense<0.000000e+00> : vector<16x16xf32>
    %68 = tpu.matmul %12, %67, %cst_38 {dimension_numbers = #tpu.dot_dimension_numbers<[1], [1], [0], [0], [0, 0, 1, 0], [], []>} : vector<16x8xf32>, vector<16x8xf32>, vector<16x16xf32> -> vector<16x16xf32>
    %cst_39 = arith.constant 0.707106769 : f32
    %69 = vector.broadcast %cst_39 : f32 to vector<16x16xf32>
    %70 = arith.mulf %68, %69 : vector<16x16xf32>
    %71 = arith.addf %70, %23 : vector<16x16xf32>
    %cst_40 = arith.constant dense<0xFF800000> : vector<16xf32>
    %72 = vector.multi_reduction <maximumf>, %71, %cst_40 [1] : vector<16x16xf32> to vector<16xf32>
    %73 = vector.shape_cast %72 : vector<16xf32> to vector<16x1xf32>
    %74 = vector.broadcast %73 : vector<16x1xf32> to vector<16x16xf32>
    %75 = arith.subf %71, %74 : vector<16x16xf32>
    %76 = math.exp %75 : vector<16x16xf32>
    %cst_41 = arith.constant dense<0.000000e+00> : vector<16xf32>
    %77 = vector.multi_reduction <add>, %76, %cst_41 [1] : vector<16x16xf32> to vector<16xf32>
    %78 = vector.shape_cast %77 : vector<16xf32> to vector<16x1xf32>
    %79 = vector.broadcast %78 : vector<16x1xf32> to vector<16x16xf32>
    %80 = arith.divf %76, %79 : vector<16x16xf32>
    %cst_42 = arith.constant dense<0.000000e+00> : vector<16x8xf32>
    %81 = tpu.matmul %80, %22, %cst_42 {dimension_numbers = #tpu.dot_dimension_numbers<[1], [0], [0], [1], [0, 0, 1, 1], [], []>} : vector<16x16xf32>, vector<16x8xf32>, vector<16x8xf32> -> vector<16x8xf32>
    %82 = vector.broadcast %65 : vector<1x8xf32> to vector<16x8xf32>
    %83 = arith.mulf %81, %82 : vector<16x8xf32>
    %84 = arith.addf %64, %83 : vector<16x8xf32>
    %c3 = arith.constant 3 : index
    %c0_43 = arith.constant 0 : index
    %85 = vector.load %arg2[%c3, %c0_43] : memref<4x8xf32, #tpu.memory_space<vmem>>, vector<1x8xf32>
    %86 = vector.broadcast %85 : vector<1x8xf32> to vector<16x8xf32>
    %87 = arith.mulf %17, %86 : vector<16x8xf32>
    %cst_44 = arith.constant dense<0.000000e+00> : vector<16x16xf32>
    %88 = tpu.matmul %12, %87, %cst_44 {dimension_numbers = #tpu.dot_dimension_numbers<[1], [1], [0], [0], [0, 0, 1, 0], [], []>} : vector<16x8xf32>, vector<16x8xf32>, vector<16x16xf32> -> vector<16x16xf32>
    %cst_45 = arith.constant 0.707106769 : f32
    %89 = vector.broadcast %cst_45 : f32 to vector<16x16xf32>
    %90 = arith.mulf %88, %89 : vector<16x16xf32>
    %91 = arith.addf %90, %23 : vector<16x16xf32>
    %cst_46 = arith.constant dense<0xFF800000> : vector<16xf32>
    %92 = vector.multi_reduction <maximumf>, %91, %cst_46 [1] : vector<16x16xf32> to vector<16xf32>
    %93 = vector.shape_cast %92 : vector<16xf32> to vector<16x1xf32>
    %94 = vector.broadcast %93 : vector<16x1xf32> to vector<16x16xf32>
    %95 = arith.subf %91, %94 : vector<16x16xf32>
    %96 = math.exp %95 : vector<16x16xf32>
    %cst_47 = arith.constant dense<0.000000e+00> : vector<16xf32>
    %97 = vector.multi_reduction <add>, %96, %cst_47 [1] : vector<16x16xf32> to vector<16xf32>
    %98 = vector.shape_cast %97 : vector<16xf32> to vector<16x1xf32>
    %99 = vector.broadcast %98 : vector<16x1xf32> to vector<16x16xf32>
    %100 = arith.divf %96, %99 : vector<16x16xf32>
    %cst_48 = arith.constant dense<0.000000e+00> : vector<16x8xf32>
    %101 = tpu.matmul %100, %22, %cst_48 {dimension_numbers = #tpu.dot_dimension_numbers<[1], [0], [0], [1], [0, 0, 1, 1], [], []>} : vector<16x16xf32>, vector<16x8xf32>, vector<16x8xf32> -> vector<16x8xf32>
    %102 = vector.broadcast %85 : vector<1x8xf32> to vector<16x8xf32>
    %103 = arith.mulf %101, %102 : vector<16x8xf32>
    %104 = arith.addf %84, %103 : vector<16x8xf32>
    %c0_49 = arith.constant 0 : index
    %c0_50 = arith.constant 0 : index
    %105 = vector.load %arg11[%c0_49, %c0_50] : memref<8x8xf32, #tpu.memory_space<vmem>>, vector<8x8xf32>
    %cst_51 = arith.constant dense<0.000000e+00> : vector<16x8xf32>
    %106 = tpu.matmul %104, %105, %cst_51 {dimension_numbers = #tpu.dot_dimension_numbers<[1], [0], [0], [1], [0, 0, 1, 1], [], []>} : vector<16x8xf32>, vector<8x8xf32>, vector<16x8xf32> -> vector<16x8xf32>
    %c0_52 = arith.constant 0 : index
    %c0_53 = arith.constant 0 : index
    %107 = vector.load %arg12[%c0_52, %c0_53] : memref<1x8xf32, #tpu.memory_space<vmem>>, vector<1x8xf32>
    %108 = vector.broadcast %107 : vector<1x8xf32> to vector<16x8xf32>
    %109 = arith.addf %106, %108 : vector<16x8xf32>
    %110 = arith.addf %7, %109 : vector<16x8xf32>
    %c0_54 = arith.constant 0 : index
    %c0_55 = arith.constant 0 : index
    %111 = vector.load %arg13[%c0_54, %c0_55] : memref<8x256xf32, #tpu.memory_space<vmem>>, vector<8x256xf32>
    %c0_56 = arith.constant 0 : index
    %c0_57 = arith.constant 0 : index
    %112 = vector.load %arg14[%c0_56, %c0_57] : memref<64x256xf32, #tpu.memory_space<vmem>>, vector<64x256xf32>
    %c0_58 = arith.constant 0 : index
    %c0_59 = arith.constant 0 : index
    %113 = vector.load %arg15[%c0_58, %c0_59] : memref<1x256xf32, #tpu.memory_space<vmem>>, vector<1x256xf32>
    %c0_60 = arith.constant 0 : index
    %c0_61 = arith.constant 0 : index
    %114 = vector.load %arg16[%c0_60, %c0_61] : memref<8x256xf32, #tpu.memory_space<vmem>>, vector<8x256xf32>
    %c0_62 = arith.constant 0 : index
    %c0_63 = arith.constant 0 : index
    %115 = vector.load %arg17[%c0_62, %c0_63] : memref<64x256xf32, #tpu.memory_space<vmem>>, vector<64x256xf32>
    %c0_64 = arith.constant 0 : index
    %c0_65 = arith.constant 0 : index
    %116 = vector.load %arg18[%c0_64, %c0_65] : memref<1x256xf32, #tpu.memory_space<vmem>>, vector<1x256xf32>
    %cst_66 = arith.constant dense<0.000000e+00> : vector<16x256xf32>
    %117 = tpu.matmul %110, %111, %cst_66 {dimension_numbers = #tpu.dot_dimension_numbers<[1], [0], [0], [1], [0, 0, 1, 1], [], []>} : vector<16x8xf32>, vector<8x256xf32>, vector<16x256xf32> -> vector<16x256xf32>
    %118 = vector.broadcast %113 : vector<1x256xf32> to vector<16x256xf32>
    %119 = arith.addf %117, %118 : vector<16x256xf32>
    %cst_67 = arith.constant dense<0.000000e+00> : vector<16x256xf32>
    %120 = tpu.matmul %110, %114, %cst_67 {dimension_numbers = #tpu.dot_dimension_numbers<[1], [0], [0], [1], [0, 0, 1, 1], [], []>} : vector<16x8xf32>, vector<8x256xf32>, vector<16x256xf32> -> vector<16x256xf32>
    %121 = vector.broadcast %116 : vector<1x256xf32> to vector<16x256xf32>
    %122 = arith.addf %120, %121 : vector<16x256xf32>
    %cst_68 = arith.constant 0.000000e+00 : f32
    %123 = vector.broadcast %cst_68 : f32 to vector<2x64xf32>
    %cst_69 = arith.constant 0.000000e+00 : f32
    %124 = vector.broadcast %cst_69 : f32 to vector<2x64xf32>
    %125 = vector.extract_strided_slice %119 {offsets = [0, 0], sizes = [2, 256], strides = [1, 1]} : vector<16x256xf32> to vector<2x256xf32>
    %cst_70 = arith.constant dense<0.000000e+00> : vector<2x256xf32>
    %126 = tpu.matmul %123, %112, %cst_70 {dimension_numbers = #tpu.dot_dimension_numbers<[1], [0], [0], [1], [0, 0, 1, 1], [], []>} : vector<2x64xf32>, vector<64x256xf32>, vector<2x256xf32> -> vector<2x256xf32>
    %127 = arith.addf %125, %126 : vector<2x256xf32>
    %128 = vector.extract_strided_slice %127 {offsets = [0, 0], sizes = [2, 64], strides = [1, 1]} : vector<2x256xf32> to vector<2x64xf32>
    %129 = arith.negf %128 : vector<2x64xf32>
    %130 = math.exp %129 : vector<2x64xf32>
    %cst_71 = arith.constant 1.000000e+00 : f32
    %131 = vector.broadcast %cst_71 : f32 to vector<2x64xf32>
    %132 = arith.addf %131, %130 : vector<2x64xf32>
    %133 = arith.divf %131, %132 : vector<2x64xf32>
    %134 = vector.extract_strided_slice %127 {offsets = [0, 64], sizes = [2, 64], strides = [1, 1]} : vector<2x256xf32> to vector<2x64xf32>
    %135 = arith.negf %134 : vector<2x64xf32>
    %136 = math.exp %135 : vector<2x64xf32>
    %cst_72 = arith.constant 1.000000e+00 : f32
    %137 = vector.broadcast %cst_72 : f32 to vector<2x64xf32>
    %138 = arith.addf %137, %136 : vector<2x64xf32>
    %139 = arith.divf %137, %138 : vector<2x64xf32>
    %140 = vector.extract_strided_slice %127 {offsets = [0, 128], sizes = [2, 64], strides = [1, 1]} : vector<2x256xf32> to vector<2x64xf32>
    %141 = math.tanh %140 : vector<2x64xf32>
    %142 = vector.extract_strided_slice %127 {offsets = [0, 192], sizes = [2, 64], strides = [1, 1]} : vector<2x256xf32> to vector<2x64xf32>
    %143 = arith.negf %142 : vector<2x64xf32>
    %144 = math.exp %143 : vector<2x64xf32>
    %cst_73 = arith.constant 1.000000e+00 : f32
    %145 = vector.broadcast %cst_73 : f32 to vector<2x64xf32>
    %146 = arith.addf %145, %144 : vector<2x64xf32>
    %147 = arith.divf %145, %146 : vector<2x64xf32>
    %148 = arith.mulf %139, %124 : vector<2x64xf32>
    %149 = arith.mulf %133, %141 : vector<2x64xf32>
    %150 = arith.addf %148, %149 : vector<2x64xf32>
    %151 = math.tanh %150 : vector<2x64xf32>
    %152 = arith.mulf %147, %151 : vector<2x64xf32>
    %153 = vector.extract_strided_slice %119 {offsets = [2, 0], sizes = [2, 256], strides = [1, 1]} : vector<16x256xf32> to vector<2x256xf32>
    %cst_74 = arith.constant dense<0.000000e+00> : vector<2x256xf32>
    %154 = tpu.matmul %152, %112, %cst_74 {dimension_numbers = #tpu.dot_dimension_numbers<[1], [0], [0], [1], [0, 0, 1, 1], [], []>} : vector<2x64xf32>, vector<64x256xf32>, vector<2x256xf32> -> vector<2x256xf32>
    %155 = arith.addf %153, %154 : vector<2x256xf32>
    %156 = vector.extract_strided_slice %155 {offsets = [0, 0], sizes = [2, 64], strides = [1, 1]} : vector<2x256xf32> to vector<2x64xf32>
    %157 = arith.negf %156 : vector<2x64xf32>
    %158 = math.exp %157 : vector<2x64xf32>
    %cst_75 = arith.constant 1.000000e+00 : f32
    %159 = vector.broadcast %cst_75 : f32 to vector<2x64xf32>
    %160 = arith.addf %159, %158 : vector<2x64xf32>
    %161 = arith.divf %159, %160 : vector<2x64xf32>
    %162 = vector.extract_strided_slice %155 {offsets = [0, 64], sizes = [2, 64], strides = [1, 1]} : vector<2x256xf32> to vector<2x64xf32>
    %163 = arith.negf %162 : vector<2x64xf32>
    %164 = math.exp %163 : vector<2x64xf32>
    %cst_76 = arith.constant 1.000000e+00 : f32
    %165 = vector.broadcast %cst_76 : f32 to vector<2x64xf32>
    %166 = arith.addf %165, %164 : vector<2x64xf32>
    %167 = arith.divf %165, %166 : vector<2x64xf32>
    %168 = vector.extract_strided_slice %155 {offsets = [0, 128], sizes = [2, 64], strides = [1, 1]} : vector<2x256xf32> to vector<2x64xf32>
    %169 = math.tanh %168 : vector<2x64xf32>
    %170 = vector.extract_strided_slice %155 {offsets = [0, 192], sizes = [2, 64], strides = [1, 1]} : vector<2x256xf32> to vector<2x64xf32>
    %171 = arith.negf %170 : vector<2x64xf32>
    %172 = math.exp %171 : vector<2x64xf32>
    %cst_77 = arith.constant 1.000000e+00 : f32
    %173 = vector.broadcast %cst_77 : f32 to vector<2x64xf32>
    %174 = arith.addf %173, %172 : vector<2x64xf32>
    %175 = arith.divf %173, %174 : vector<2x64xf32>
    %176 = arith.mulf %167, %150 : vector<2x64xf32>
    %177 = arith.mulf %161, %169 : vector<2x64xf32>
    %178 = arith.addf %176, %177 : vector<2x64xf32>
    %179 = math.tanh %178 : vector<2x64xf32>
    %180 = arith.mulf %175, %179 : vector<2x64xf32>
    %181 = vector.extract_strided_slice %119 {offsets = [4, 0], sizes = [2, 256], strides = [1, 1]} : vector<16x256xf32> to vector<2x256xf32>
    %cst_78 = arith.constant dense<0.000000e+00> : vector<2x256xf32>
    %182 = tpu.matmul %180, %112, %cst_78 {dimension_numbers = #tpu.dot_dimension_numbers<[1], [0], [0], [1], [0, 0, 1, 1], [], []>} : vector<2x64xf32>, vector<64x256xf32>, vector<2x256xf32> -> vector<2x256xf32>
    %183 = arith.addf %181, %182 : vector<2x256xf32>
    %184 = vector.extract_strided_slice %183 {offsets = [0, 0], sizes = [2, 64], strides = [1, 1]} : vector<2x256xf32> to vector<2x64xf32>
    %185 = arith.negf %184 : vector<2x64xf32>
    %186 = math.exp %185 : vector<2x64xf32>
    %cst_79 = arith.constant 1.000000e+00 : f32
    %187 = vector.broadcast %cst_79 : f32 to vector<2x64xf32>
    %188 = arith.addf %187, %186 : vector<2x64xf32>
    %189 = arith.divf %187, %188 : vector<2x64xf32>
    %190 = vector.extract_strided_slice %183 {offsets = [0, 64], sizes = [2, 64], strides = [1, 1]} : vector<2x256xf32> to vector<2x64xf32>
    %191 = arith.negf %190 : vector<2x64xf32>
    %192 = math.exp %191 : vector<2x64xf32>
    %cst_80 = arith.constant 1.000000e+00 : f32
    %193 = vector.broadcast %cst_80 : f32 to vector<2x64xf32>
    %194 = arith.addf %193, %192 : vector<2x64xf32>
    %195 = arith.divf %193, %194 : vector<2x64xf32>
    %196 = vector.extract_strided_slice %183 {offsets = [0, 128], sizes = [2, 64], strides = [1, 1]} : vector<2x256xf32> to vector<2x64xf32>
    %197 = math.tanh %196 : vector<2x64xf32>
    %198 = vector.extract_strided_slice %183 {offsets = [0, 192], sizes = [2, 64], strides = [1, 1]} : vector<2x256xf32> to vector<2x64xf32>
    %199 = arith.negf %198 : vector<2x64xf32>
    %200 = math.exp %199 : vector<2x64xf32>
    %cst_81 = arith.constant 1.000000e+00 : f32
    %201 = vector.broadcast %cst_81 : f32 to vector<2x64xf32>
    %202 = arith.addf %201, %200 : vector<2x64xf32>
    %203 = arith.divf %201, %202 : vector<2x64xf32>
    %204 = arith.mulf %195, %178 : vector<2x64xf32>
    %205 = arith.mulf %189, %197 : vector<2x64xf32>
    %206 = arith.addf %204, %205 : vector<2x64xf32>
    %207 = math.tanh %206 : vector<2x64xf32>
    %208 = arith.mulf %203, %207 : vector<2x64xf32>
    %209 = vector.extract_strided_slice %119 {offsets = [6, 0], sizes = [2, 256], strides = [1, 1]} : vector<16x256xf32> to vector<2x256xf32>
    %cst_82 = arith.constant dense<0.000000e+00> : vector<2x256xf32>
    %210 = tpu.matmul %208, %112, %cst_82 {dimension_numbers = #tpu.dot_dimension_numbers<[1], [0], [0], [1], [0, 0, 1, 1], [], []>} : vector<2x64xf32>, vector<64x256xf32>, vector<2x256xf32> -> vector<2x256xf32>
    %211 = arith.addf %209, %210 : vector<2x256xf32>
    %212 = vector.extract_strided_slice %211 {offsets = [0, 0], sizes = [2, 64], strides = [1, 1]} : vector<2x256xf32> to vector<2x64xf32>
    %213 = arith.negf %212 : vector<2x64xf32>
    %214 = math.exp %213 : vector<2x64xf32>
    %cst_83 = arith.constant 1.000000e+00 : f32
    %215 = vector.broadcast %cst_83 : f32 to vector<2x64xf32>
    %216 = arith.addf %215, %214 : vector<2x64xf32>
    %217 = arith.divf %215, %216 : vector<2x64xf32>
    %218 = vector.extract_strided_slice %211 {offsets = [0, 64], sizes = [2, 64], strides = [1, 1]} : vector<2x256xf32> to vector<2x64xf32>
    %219 = arith.negf %218 : vector<2x64xf32>
    %220 = math.exp %219 : vector<2x64xf32>
    %cst_84 = arith.constant 1.000000e+00 : f32
    %221 = vector.broadcast %cst_84 : f32 to vector<2x64xf32>
    %222 = arith.addf %221, %220 : vector<2x64xf32>
    %223 = arith.divf %221, %222 : vector<2x64xf32>
    %224 = vector.extract_strided_slice %211 {offsets = [0, 128], sizes = [2, 64], strides = [1, 1]} : vector<2x256xf32> to vector<2x64xf32>
    %225 = math.tanh %224 : vector<2x64xf32>
    %226 = vector.extract_strided_slice %211 {offsets = [0, 192], sizes = [2, 64], strides = [1, 1]} : vector<2x256xf32> to vector<2x64xf32>
    %227 = arith.negf %226 : vector<2x64xf32>
    %228 = math.exp %227 : vector<2x64xf32>
    %cst_85 = arith.constant 1.000000e+00 : f32
    %229 = vector.broadcast %cst_85 : f32 to vector<2x64xf32>
    %230 = arith.addf %229, %228 : vector<2x64xf32>
    %231 = arith.divf %229, %230 : vector<2x64xf32>
    %232 = arith.mulf %223, %206 : vector<2x64xf32>
    %233 = arith.mulf %217, %225 : vector<2x64xf32>
    %234 = arith.addf %232, %233 : vector<2x64xf32>
    %235 = math.tanh %234 : vector<2x64xf32>
    %236 = arith.mulf %231, %235 : vector<2x64xf32>
    %237 = vector.extract_strided_slice %119 {offsets = [8, 0], sizes = [2, 256], strides = [1, 1]} : vector<16x256xf32> to vector<2x256xf32>
    %cst_86 = arith.constant dense<0.000000e+00> : vector<2x256xf32>
    %238 = tpu.matmul %236, %112, %cst_86 {dimension_numbers = #tpu.dot_dimension_numbers<[1], [0], [0], [1], [0, 0, 1, 1], [], []>} : vector<2x64xf32>, vector<64x256xf32>, vector<2x256xf32> -> vector<2x256xf32>
    %239 = arith.addf %237, %238 : vector<2x256xf32>
    %240 = vector.extract_strided_slice %239 {offsets = [0, 0], sizes = [2, 64], strides = [1, 1]} : vector<2x256xf32> to vector<2x64xf32>
    %241 = arith.negf %240 : vector<2x64xf32>
    %242 = math.exp %241 : vector<2x64xf32>
    %cst_87 = arith.constant 1.000000e+00 : f32
    %243 = vector.broadcast %cst_87 : f32 to vector<2x64xf32>
    %244 = arith.addf %243, %242 : vector<2x64xf32>
    %245 = arith.divf %243, %244 : vector<2x64xf32>
    %246 = vector.extract_strided_slice %239 {offsets = [0, 64], sizes = [2, 64], strides = [1, 1]} : vector<2x256xf32> to vector<2x64xf32>
    %247 = arith.negf %246 : vector<2x64xf32>
    %248 = math.exp %247 : vector<2x64xf32>
    %cst_88 = arith.constant 1.000000e+00 : f32
    %249 = vector.broadcast %cst_88 : f32 to vector<2x64xf32>
    %250 = arith.addf %249, %248 : vector<2x64xf32>
    %251 = arith.divf %249, %250 : vector<2x64xf32>
    %252 = vector.extract_strided_slice %239 {offsets = [0, 128], sizes = [2, 64], strides = [1, 1]} : vector<2x256xf32> to vector<2x64xf32>
    %253 = math.tanh %252 : vector<2x64xf32>
    %254 = vector.extract_strided_slice %239 {offsets = [0, 192], sizes = [2, 64], strides = [1, 1]} : vector<2x256xf32> to vector<2x64xf32>
    %255 = arith.negf %254 : vector<2x64xf32>
    %256 = math.exp %255 : vector<2x64xf32>
    %cst_89 = arith.constant 1.000000e+00 : f32
    %257 = vector.broadcast %cst_89 : f32 to vector<2x64xf32>
    %258 = arith.addf %257, %256 : vector<2x64xf32>
    %259 = arith.divf %257, %258 : vector<2x64xf32>
    %260 = arith.mulf %251, %234 : vector<2x64xf32>
    %261 = arith.mulf %245, %253 : vector<2x64xf32>
    %262 = arith.addf %260, %261 : vector<2x64xf32>
    %263 = math.tanh %262 : vector<2x64xf32>
    %264 = arith.mulf %259, %263 : vector<2x64xf32>
    %265 = vector.extract_strided_slice %119 {offsets = [10, 0], sizes = [2, 256], strides = [1, 1]} : vector<16x256xf32> to vector<2x256xf32>
    %cst_90 = arith.constant dense<0.000000e+00> : vector<2x256xf32>
    %266 = tpu.matmul %264, %112, %cst_90 {dimension_numbers = #tpu.dot_dimension_numbers<[1], [0], [0], [1], [0, 0, 1, 1], [], []>} : vector<2x64xf32>, vector<64x256xf32>, vector<2x256xf32> -> vector<2x256xf32>
    %267 = arith.addf %265, %266 : vector<2x256xf32>
    %268 = vector.extract_strided_slice %267 {offsets = [0, 0], sizes = [2, 64], strides = [1, 1]} : vector<2x256xf32> to vector<2x64xf32>
    %269 = arith.negf %268 : vector<2x64xf32>
    %270 = math.exp %269 : vector<2x64xf32>
    %cst_91 = arith.constant 1.000000e+00 : f32
    %271 = vector.broadcast %cst_91 : f32 to vector<2x64xf32>
    %272 = arith.addf %271, %270 : vector<2x64xf32>
    %273 = arith.divf %271, %272 : vector<2x64xf32>
    %274 = vector.extract_strided_slice %267 {offsets = [0, 64], sizes = [2, 64], strides = [1, 1]} : vector<2x256xf32> to vector<2x64xf32>
    %275 = arith.negf %274 : vector<2x64xf32>
    %276 = math.exp %275 : vector<2x64xf32>
    %cst_92 = arith.constant 1.000000e+00 : f32
    %277 = vector.broadcast %cst_92 : f32 to vector<2x64xf32>
    %278 = arith.addf %277, %276 : vector<2x64xf32>
    %279 = arith.divf %277, %278 : vector<2x64xf32>
    %280 = vector.extract_strided_slice %267 {offsets = [0, 128], sizes = [2, 64], strides = [1, 1]} : vector<2x256xf32> to vector<2x64xf32>
    %281 = math.tanh %280 : vector<2x64xf32>
    %282 = vector.extract_strided_slice %267 {offsets = [0, 192], sizes = [2, 64], strides = [1, 1]} : vector<2x256xf32> to vector<2x64xf32>
    %283 = arith.negf %282 : vector<2x64xf32>
    %284 = math.exp %283 : vector<2x64xf32>
    %cst_93 = arith.constant 1.000000e+00 : f32
    %285 = vector.broadcast %cst_93 : f32 to vector<2x64xf32>
    %286 = arith.addf %285, %284 : vector<2x64xf32>
    %287 = arith.divf %285, %286 : vector<2x64xf32>
    %288 = arith.mulf %279, %262 : vector<2x64xf32>
    %289 = arith.mulf %273, %281 : vector<2x64xf32>
    %290 = arith.addf %288, %289 : vector<2x64xf32>
    %291 = math.tanh %290 : vector<2x64xf32>
    %292 = arith.mulf %287, %291 : vector<2x64xf32>
    %293 = vector.extract_strided_slice %119 {offsets = [12, 0], sizes = [2, 256], strides = [1, 1]} : vector<16x256xf32> to vector<2x256xf32>
    %cst_94 = arith.constant dense<0.000000e+00> : vector<2x256xf32>
    %294 = tpu.matmul %292, %112, %cst_94 {dimension_numbers = #tpu.dot_dimension_numbers<[1], [0], [0], [1], [0, 0, 1, 1], [], []>} : vector<2x64xf32>, vector<64x256xf32>, vector<2x256xf32> -> vector<2x256xf32>
    %295 = arith.addf %293, %294 : vector<2x256xf32>
    %296 = vector.extract_strided_slice %295 {offsets = [0, 0], sizes = [2, 64], strides = [1, 1]} : vector<2x256xf32> to vector<2x64xf32>
    %297 = arith.negf %296 : vector<2x64xf32>
    %298 = math.exp %297 : vector<2x64xf32>
    %cst_95 = arith.constant 1.000000e+00 : f32
    %299 = vector.broadcast %cst_95 : f32 to vector<2x64xf32>
    %300 = arith.addf %299, %298 : vector<2x64xf32>
    %301 = arith.divf %299, %300 : vector<2x64xf32>
    %302 = vector.extract_strided_slice %295 {offsets = [0, 64], sizes = [2, 64], strides = [1, 1]} : vector<2x256xf32> to vector<2x64xf32>
    %303 = arith.negf %302 : vector<2x64xf32>
    %304 = math.exp %303 : vector<2x64xf32>
    %cst_96 = arith.constant 1.000000e+00 : f32
    %305 = vector.broadcast %cst_96 : f32 to vector<2x64xf32>
    %306 = arith.addf %305, %304 : vector<2x64xf32>
    %307 = arith.divf %305, %306 : vector<2x64xf32>
    %308 = vector.extract_strided_slice %295 {offsets = [0, 128], sizes = [2, 64], strides = [1, 1]} : vector<2x256xf32> to vector<2x64xf32>
    %309 = math.tanh %308 : vector<2x64xf32>
    %310 = vector.extract_strided_slice %295 {offsets = [0, 192], sizes = [2, 64], strides = [1, 1]} : vector<2x256xf32> to vector<2x64xf32>
    %311 = arith.negf %310 : vector<2x64xf32>
    %312 = math.exp %311 : vector<2x64xf32>
    %cst_97 = arith.constant 1.000000e+00 : f32
    %313 = vector.broadcast %cst_97 : f32 to vector<2x64xf32>
    %314 = arith.addf %313, %312 : vector<2x64xf32>
    %315 = arith.divf %313, %314 : vector<2x64xf32>
    %316 = arith.mulf %307, %290 : vector<2x64xf32>
    %317 = arith.mulf %301, %309 : vector<2x64xf32>
    %318 = arith.addf %316, %317 : vector<2x64xf32>
    %319 = math.tanh %318 : vector<2x64xf32>
    %320 = arith.mulf %315, %319 : vector<2x64xf32>
    %321 = vector.extract_strided_slice %119 {offsets = [14, 0], sizes = [2, 256], strides = [1, 1]} : vector<16x256xf32> to vector<2x256xf32>
    %cst_98 = arith.constant dense<0.000000e+00> : vector<2x256xf32>
    %322 = tpu.matmul %320, %112, %cst_98 {dimension_numbers = #tpu.dot_dimension_numbers<[1], [0], [0], [1], [0, 0, 1, 1], [], []>} : vector<2x64xf32>, vector<64x256xf32>, vector<2x256xf32> -> vector<2x256xf32>
    %323 = arith.addf %321, %322 : vector<2x256xf32>
    %324 = vector.extract_strided_slice %323 {offsets = [0, 0], sizes = [2, 64], strides = [1, 1]} : vector<2x256xf32> to vector<2x64xf32>
    %325 = arith.negf %324 : vector<2x64xf32>
    %326 = math.exp %325 : vector<2x64xf32>
    %cst_99 = arith.constant 1.000000e+00 : f32
    %327 = vector.broadcast %cst_99 : f32 to vector<2x64xf32>
    %328 = arith.addf %327, %326 : vector<2x64xf32>
    %329 = arith.divf %327, %328 : vector<2x64xf32>
    %330 = vector.extract_strided_slice %323 {offsets = [0, 64], sizes = [2, 64], strides = [1, 1]} : vector<2x256xf32> to vector<2x64xf32>
    %331 = arith.negf %330 : vector<2x64xf32>
    %332 = math.exp %331 : vector<2x64xf32>
    %cst_100 = arith.constant 1.000000e+00 : f32
    %333 = vector.broadcast %cst_100 : f32 to vector<2x64xf32>
    %334 = arith.addf %333, %332 : vector<2x64xf32>
    %335 = arith.divf %333, %334 : vector<2x64xf32>
    %336 = vector.extract_strided_slice %323 {offsets = [0, 128], sizes = [2, 64], strides = [1, 1]} : vector<2x256xf32> to vector<2x64xf32>
    %337 = math.tanh %336 : vector<2x64xf32>
    %338 = vector.extract_strided_slice %323 {offsets = [0, 192], sizes = [2, 64], strides = [1, 1]} : vector<2x256xf32> to vector<2x64xf32>
    %339 = arith.negf %338 : vector<2x64xf32>
    %340 = math.exp %339 : vector<2x64xf32>
    %cst_101 = arith.constant 1.000000e+00 : f32
    %341 = vector.broadcast %cst_101 : f32 to vector<2x64xf32>
    %342 = arith.addf %341, %340 : vector<2x64xf32>
    %343 = arith.divf %341, %342 : vector<2x64xf32>
    %344 = arith.mulf %335, %318 : vector<2x64xf32>
    %345 = arith.mulf %329, %337 : vector<2x64xf32>
    %346 = arith.addf %344, %345 : vector<2x64xf32>
    %347 = math.tanh %346 : vector<2x64xf32>
    %348 = arith.mulf %343, %347 : vector<2x64xf32>
    %cst_102 = arith.constant 0.000000e+00 : f32
    %349 = vector.broadcast %cst_102 : f32 to vector<2x64xf32>
    %cst_103 = arith.constant 0.000000e+00 : f32
    %350 = vector.broadcast %cst_103 : f32 to vector<2x64xf32>
    %351 = vector.extract_strided_slice %122 {offsets = [14, 0], sizes = [2, 256], strides = [1, 1]} : vector<16x256xf32> to vector<2x256xf32>
    %cst_104 = arith.constant dense<0.000000e+00> : vector<2x256xf32>
    %352 = tpu.matmul %349, %115, %cst_104 {dimension_numbers = #tpu.dot_dimension_numbers<[1], [0], [0], [1], [0, 0, 1, 1], [], []>} : vector<2x64xf32>, vector<64x256xf32>, vector<2x256xf32> -> vector<2x256xf32>
    %353 = arith.addf %351, %352 : vector<2x256xf32>
    %354 = vector.extract_strided_slice %353 {offsets = [0, 0], sizes = [2, 64], strides = [1, 1]} : vector<2x256xf32> to vector<2x64xf32>
    %355 = arith.negf %354 : vector<2x64xf32>
    %356 = math.exp %355 : vector<2x64xf32>
    %cst_105 = arith.constant 1.000000e+00 : f32
    %357 = vector.broadcast %cst_105 : f32 to vector<2x64xf32>
    %358 = arith.addf %357, %356 : vector<2x64xf32>
    %359 = arith.divf %357, %358 : vector<2x64xf32>
    %360 = vector.extract_strided_slice %353 {offsets = [0, 64], sizes = [2, 64], strides = [1, 1]} : vector<2x256xf32> to vector<2x64xf32>
    %361 = arith.negf %360 : vector<2x64xf32>
    %362 = math.exp %361 : vector<2x64xf32>
    %cst_106 = arith.constant 1.000000e+00 : f32
    %363 = vector.broadcast %cst_106 : f32 to vector<2x64xf32>
    %364 = arith.addf %363, %362 : vector<2x64xf32>
    %365 = arith.divf %363, %364 : vector<2x64xf32>
    %366 = vector.extract_strided_slice %353 {offsets = [0, 128], sizes = [2, 64], strides = [1, 1]} : vector<2x256xf32> to vector<2x64xf32>
    %367 = math.tanh %366 : vector<2x64xf32>
    %368 = vector.extract_strided_slice %353 {offsets = [0, 192], sizes = [2, 64], strides = [1, 1]} : vector<2x256xf32> to vector<2x64xf32>
    %369 = arith.negf %368 : vector<2x64xf32>
    %370 = math.exp %369 : vector<2x64xf32>
    %cst_107 = arith.constant 1.000000e+00 : f32
    %371 = vector.broadcast %cst_107 : f32 to vector<2x64xf32>
    %372 = arith.addf %371, %370 : vector<2x64xf32>
    %373 = arith.divf %371, %372 : vector<2x64xf32>
    %374 = arith.mulf %365, %350 : vector<2x64xf32>
    %375 = arith.mulf %359, %367 : vector<2x64xf32>
    %376 = arith.addf %374, %375 : vector<2x64xf32>
    %377 = math.tanh %376 : vector<2x64xf32>
    %378 = arith.mulf %373, %377 : vector<2x64xf32>
    %379 = vector.extract_strided_slice %122 {offsets = [12, 0], sizes = [2, 256], strides = [1, 1]} : vector<16x256xf32> to vector<2x256xf32>
    %cst_108 = arith.constant dense<0.000000e+00> : vector<2x256xf32>
    %380 = tpu.matmul %378, %115, %cst_108 {dimension_numbers = #tpu.dot_dimension_numbers<[1], [0], [0], [1], [0, 0, 1, 1], [], []>} : vector<2x64xf32>, vector<64x256xf32>, vector<2x256xf32> -> vector<2x256xf32>
    %381 = arith.addf %379, %380 : vector<2x256xf32>
    %382 = vector.extract_strided_slice %381 {offsets = [0, 0], sizes = [2, 64], strides = [1, 1]} : vector<2x256xf32> to vector<2x64xf32>
    %383 = arith.negf %382 : vector<2x64xf32>
    %384 = math.exp %383 : vector<2x64xf32>
    %cst_109 = arith.constant 1.000000e+00 : f32
    %385 = vector.broadcast %cst_109 : f32 to vector<2x64xf32>
    %386 = arith.addf %385, %384 : vector<2x64xf32>
    %387 = arith.divf %385, %386 : vector<2x64xf32>
    %388 = vector.extract_strided_slice %381 {offsets = [0, 64], sizes = [2, 64], strides = [1, 1]} : vector<2x256xf32> to vector<2x64xf32>
    %389 = arith.negf %388 : vector<2x64xf32>
    %390 = math.exp %389 : vector<2x64xf32>
    %cst_110 = arith.constant 1.000000e+00 : f32
    %391 = vector.broadcast %cst_110 : f32 to vector<2x64xf32>
    %392 = arith.addf %391, %390 : vector<2x64xf32>
    %393 = arith.divf %391, %392 : vector<2x64xf32>
    %394 = vector.extract_strided_slice %381 {offsets = [0, 128], sizes = [2, 64], strides = [1, 1]} : vector<2x256xf32> to vector<2x64xf32>
    %395 = math.tanh %394 : vector<2x64xf32>
    %396 = vector.extract_strided_slice %381 {offsets = [0, 192], sizes = [2, 64], strides = [1, 1]} : vector<2x256xf32> to vector<2x64xf32>
    %397 = arith.negf %396 : vector<2x64xf32>
    %398 = math.exp %397 : vector<2x64xf32>
    %cst_111 = arith.constant 1.000000e+00 : f32
    %399 = vector.broadcast %cst_111 : f32 to vector<2x64xf32>
    %400 = arith.addf %399, %398 : vector<2x64xf32>
    %401 = arith.divf %399, %400 : vector<2x64xf32>
    %402 = arith.mulf %393, %376 : vector<2x64xf32>
    %403 = arith.mulf %387, %395 : vector<2x64xf32>
    %404 = arith.addf %402, %403 : vector<2x64xf32>
    %405 = math.tanh %404 : vector<2x64xf32>
    %406 = arith.mulf %401, %405 : vector<2x64xf32>
    %407 = vector.extract_strided_slice %122 {offsets = [10, 0], sizes = [2, 256], strides = [1, 1]} : vector<16x256xf32> to vector<2x256xf32>
    %cst_112 = arith.constant dense<0.000000e+00> : vector<2x256xf32>
    %408 = tpu.matmul %406, %115, %cst_112 {dimension_numbers = #tpu.dot_dimension_numbers<[1], [0], [0], [1], [0, 0, 1, 1], [], []>} : vector<2x64xf32>, vector<64x256xf32>, vector<2x256xf32> -> vector<2x256xf32>
    %409 = arith.addf %407, %408 : vector<2x256xf32>
    %410 = vector.extract_strided_slice %409 {offsets = [0, 0], sizes = [2, 64], strides = [1, 1]} : vector<2x256xf32> to vector<2x64xf32>
    %411 = arith.negf %410 : vector<2x64xf32>
    %412 = math.exp %411 : vector<2x64xf32>
    %cst_113 = arith.constant 1.000000e+00 : f32
    %413 = vector.broadcast %cst_113 : f32 to vector<2x64xf32>
    %414 = arith.addf %413, %412 : vector<2x64xf32>
    %415 = arith.divf %413, %414 : vector<2x64xf32>
    %416 = vector.extract_strided_slice %409 {offsets = [0, 64], sizes = [2, 64], strides = [1, 1]} : vector<2x256xf32> to vector<2x64xf32>
    %417 = arith.negf %416 : vector<2x64xf32>
    %418 = math.exp %417 : vector<2x64xf32>
    %cst_114 = arith.constant 1.000000e+00 : f32
    %419 = vector.broadcast %cst_114 : f32 to vector<2x64xf32>
    %420 = arith.addf %419, %418 : vector<2x64xf32>
    %421 = arith.divf %419, %420 : vector<2x64xf32>
    %422 = vector.extract_strided_slice %409 {offsets = [0, 128], sizes = [2, 64], strides = [1, 1]} : vector<2x256xf32> to vector<2x64xf32>
    %423 = math.tanh %422 : vector<2x64xf32>
    %424 = vector.extract_strided_slice %409 {offsets = [0, 192], sizes = [2, 64], strides = [1, 1]} : vector<2x256xf32> to vector<2x64xf32>
    %425 = arith.negf %424 : vector<2x64xf32>
    %426 = math.exp %425 : vector<2x64xf32>
    %cst_115 = arith.constant 1.000000e+00 : f32
    %427 = vector.broadcast %cst_115 : f32 to vector<2x64xf32>
    %428 = arith.addf %427, %426 : vector<2x64xf32>
    %429 = arith.divf %427, %428 : vector<2x64xf32>
    %430 = arith.mulf %421, %404 : vector<2x64xf32>
    %431 = arith.mulf %415, %423 : vector<2x64xf32>
    %432 = arith.addf %430, %431 : vector<2x64xf32>
    %433 = math.tanh %432 : vector<2x64xf32>
    %434 = arith.mulf %429, %433 : vector<2x64xf32>
    %435 = vector.extract_strided_slice %122 {offsets = [8, 0], sizes = [2, 256], strides = [1, 1]} : vector<16x256xf32> to vector<2x256xf32>
    %cst_116 = arith.constant dense<0.000000e+00> : vector<2x256xf32>
    %436 = tpu.matmul %434, %115, %cst_116 {dimension_numbers = #tpu.dot_dimension_numbers<[1], [0], [0], [1], [0, 0, 1, 1], [], []>} : vector<2x64xf32>, vector<64x256xf32>, vector<2x256xf32> -> vector<2x256xf32>
    %437 = arith.addf %435, %436 : vector<2x256xf32>
    %438 = vector.extract_strided_slice %437 {offsets = [0, 0], sizes = [2, 64], strides = [1, 1]} : vector<2x256xf32> to vector<2x64xf32>
    %439 = arith.negf %438 : vector<2x64xf32>
    %440 = math.exp %439 : vector<2x64xf32>
    %cst_117 = arith.constant 1.000000e+00 : f32
    %441 = vector.broadcast %cst_117 : f32 to vector<2x64xf32>
    %442 = arith.addf %441, %440 : vector<2x64xf32>
    %443 = arith.divf %441, %442 : vector<2x64xf32>
    %444 = vector.extract_strided_slice %437 {offsets = [0, 64], sizes = [2, 64], strides = [1, 1]} : vector<2x256xf32> to vector<2x64xf32>
    %445 = arith.negf %444 : vector<2x64xf32>
    %446 = math.exp %445 : vector<2x64xf32>
    %cst_118 = arith.constant 1.000000e+00 : f32
    %447 = vector.broadcast %cst_118 : f32 to vector<2x64xf32>
    %448 = arith.addf %447, %446 : vector<2x64xf32>
    %449 = arith.divf %447, %448 : vector<2x64xf32>
    %450 = vector.extract_strided_slice %437 {offsets = [0, 128], sizes = [2, 64], strides = [1, 1]} : vector<2x256xf32> to vector<2x64xf32>
    %451 = math.tanh %450 : vector<2x64xf32>
    %452 = vector.extract_strided_slice %437 {offsets = [0, 192], sizes = [2, 64], strides = [1, 1]} : vector<2x256xf32> to vector<2x64xf32>
    %453 = arith.negf %452 : vector<2x64xf32>
    %454 = math.exp %453 : vector<2x64xf32>
    %cst_119 = arith.constant 1.000000e+00 : f32
    %455 = vector.broadcast %cst_119 : f32 to vector<2x64xf32>
    %456 = arith.addf %455, %454 : vector<2x64xf32>
    %457 = arith.divf %455, %456 : vector<2x64xf32>
    %458 = arith.mulf %449, %432 : vector<2x64xf32>
    %459 = arith.mulf %443, %451 : vector<2x64xf32>
    %460 = arith.addf %458, %459 : vector<2x64xf32>
    %461 = math.tanh %460 : vector<2x64xf32>
    %462 = arith.mulf %457, %461 : vector<2x64xf32>
    %463 = vector.extract_strided_slice %122 {offsets = [6, 0], sizes = [2, 256], strides = [1, 1]} : vector<16x256xf32> to vector<2x256xf32>
    %cst_120 = arith.constant dense<0.000000e+00> : vector<2x256xf32>
    %464 = tpu.matmul %462, %115, %cst_120 {dimension_numbers = #tpu.dot_dimension_numbers<[1], [0], [0], [1], [0, 0, 1, 1], [], []>} : vector<2x64xf32>, vector<64x256xf32>, vector<2x256xf32> -> vector<2x256xf32>
    %465 = arith.addf %463, %464 : vector<2x256xf32>
    %466 = vector.extract_strided_slice %465 {offsets = [0, 0], sizes = [2, 64], strides = [1, 1]} : vector<2x256xf32> to vector<2x64xf32>
    %467 = arith.negf %466 : vector<2x64xf32>
    %468 = math.exp %467 : vector<2x64xf32>
    %cst_121 = arith.constant 1.000000e+00 : f32
    %469 = vector.broadcast %cst_121 : f32 to vector<2x64xf32>
    %470 = arith.addf %469, %468 : vector<2x64xf32>
    %471 = arith.divf %469, %470 : vector<2x64xf32>
    %472 = vector.extract_strided_slice %465 {offsets = [0, 64], sizes = [2, 64], strides = [1, 1]} : vector<2x256xf32> to vector<2x64xf32>
    %473 = arith.negf %472 : vector<2x64xf32>
    %474 = math.exp %473 : vector<2x64xf32>
    %cst_122 = arith.constant 1.000000e+00 : f32
    %475 = vector.broadcast %cst_122 : f32 to vector<2x64xf32>
    %476 = arith.addf %475, %474 : vector<2x64xf32>
    %477 = arith.divf %475, %476 : vector<2x64xf32>
    %478 = vector.extract_strided_slice %465 {offsets = [0, 128], sizes = [2, 64], strides = [1, 1]} : vector<2x256xf32> to vector<2x64xf32>
    %479 = math.tanh %478 : vector<2x64xf32>
    %480 = vector.extract_strided_slice %465 {offsets = [0, 192], sizes = [2, 64], strides = [1, 1]} : vector<2x256xf32> to vector<2x64xf32>
    %481 = arith.negf %480 : vector<2x64xf32>
    %482 = math.exp %481 : vector<2x64xf32>
    %cst_123 = arith.constant 1.000000e+00 : f32
    %483 = vector.broadcast %cst_123 : f32 to vector<2x64xf32>
    %484 = arith.addf %483, %482 : vector<2x64xf32>
    %485 = arith.divf %483, %484 : vector<2x64xf32>
    %486 = arith.mulf %477, %460 : vector<2x64xf32>
    %487 = arith.mulf %471, %479 : vector<2x64xf32>
    %488 = arith.addf %486, %487 : vector<2x64xf32>
    %489 = math.tanh %488 : vector<2x64xf32>
    %490 = arith.mulf %485, %489 : vector<2x64xf32>
    %491 = vector.extract_strided_slice %122 {offsets = [4, 0], sizes = [2, 256], strides = [1, 1]} : vector<16x256xf32> to vector<2x256xf32>
    %cst_124 = arith.constant dense<0.000000e+00> : vector<2x256xf32>
    %492 = tpu.matmul %490, %115, %cst_124 {dimension_numbers = #tpu.dot_dimension_numbers<[1], [0], [0], [1], [0, 0, 1, 1], [], []>} : vector<2x64xf32>, vector<64x256xf32>, vector<2x256xf32> -> vector<2x256xf32>
    %493 = arith.addf %491, %492 : vector<2x256xf32>
    %494 = vector.extract_strided_slice %493 {offsets = [0, 0], sizes = [2, 64], strides = [1, 1]} : vector<2x256xf32> to vector<2x64xf32>
    %495 = arith.negf %494 : vector<2x64xf32>
    %496 = math.exp %495 : vector<2x64xf32>
    %cst_125 = arith.constant 1.000000e+00 : f32
    %497 = vector.broadcast %cst_125 : f32 to vector<2x64xf32>
    %498 = arith.addf %497, %496 : vector<2x64xf32>
    %499 = arith.divf %497, %498 : vector<2x64xf32>
    %500 = vector.extract_strided_slice %493 {offsets = [0, 64], sizes = [2, 64], strides = [1, 1]} : vector<2x256xf32> to vector<2x64xf32>
    %501 = arith.negf %500 : vector<2x64xf32>
    %502 = math.exp %501 : vector<2x64xf32>
    %cst_126 = arith.constant 1.000000e+00 : f32
    %503 = vector.broadcast %cst_126 : f32 to vector<2x64xf32>
    %504 = arith.addf %503, %502 : vector<2x64xf32>
    %505 = arith.divf %503, %504 : vector<2x64xf32>
    %506 = vector.extract_strided_slice %493 {offsets = [0, 128], sizes = [2, 64], strides = [1, 1]} : vector<2x256xf32> to vector<2x64xf32>
    %507 = math.tanh %506 : vector<2x64xf32>
    %508 = vector.extract_strided_slice %493 {offsets = [0, 192], sizes = [2, 64], strides = [1, 1]} : vector<2x256xf32> to vector<2x64xf32>
    %509 = arith.negf %508 : vector<2x64xf32>
    %510 = math.exp %509 : vector<2x64xf32>
    %cst_127 = arith.constant 1.000000e+00 : f32
    %511 = vector.broadcast %cst_127 : f32 to vector<2x64xf32>
    %512 = arith.addf %511, %510 : vector<2x64xf32>
    %513 = arith.divf %511, %512 : vector<2x64xf32>
    %514 = arith.mulf %505, %488 : vector<2x64xf32>
    %515 = arith.mulf %499, %507 : vector<2x64xf32>
    %516 = arith.addf %514, %515 : vector<2x64xf32>
    %517 = math.tanh %516 : vector<2x64xf32>
    %518 = arith.mulf %513, %517 : vector<2x64xf32>
    %519 = vector.extract_strided_slice %122 {offsets = [2, 0], sizes = [2, 256], strides = [1, 1]} : vector<16x256xf32> to vector<2x256xf32>
    %cst_128 = arith.constant dense<0.000000e+00> : vector<2x256xf32>
    %520 = tpu.matmul %518, %115, %cst_128 {dimension_numbers = #tpu.dot_dimension_numbers<[1], [0], [0], [1], [0, 0, 1, 1], [], []>} : vector<2x64xf32>, vector<64x256xf32>, vector<2x256xf32> -> vector<2x256xf32>
    %521 = arith.addf %519, %520 : vector<2x256xf32>
    %522 = vector.extract_strided_slice %521 {offsets = [0, 0], sizes = [2, 64], strides = [1, 1]} : vector<2x256xf32> to vector<2x64xf32>
    %523 = arith.negf %522 : vector<2x64xf32>
    %524 = math.exp %523 : vector<2x64xf32>
    %cst_129 = arith.constant 1.000000e+00 : f32
    %525 = vector.broadcast %cst_129 : f32 to vector<2x64xf32>
    %526 = arith.addf %525, %524 : vector<2x64xf32>
    %527 = arith.divf %525, %526 : vector<2x64xf32>
    %528 = vector.extract_strided_slice %521 {offsets = [0, 64], sizes = [2, 64], strides = [1, 1]} : vector<2x256xf32> to vector<2x64xf32>
    %529 = arith.negf %528 : vector<2x64xf32>
    %530 = math.exp %529 : vector<2x64xf32>
    %cst_130 = arith.constant 1.000000e+00 : f32
    %531 = vector.broadcast %cst_130 : f32 to vector<2x64xf32>
    %532 = arith.addf %531, %530 : vector<2x64xf32>
    %533 = arith.divf %531, %532 : vector<2x64xf32>
    %534 = vector.extract_strided_slice %521 {offsets = [0, 128], sizes = [2, 64], strides = [1, 1]} : vector<2x256xf32> to vector<2x64xf32>
    %535 = math.tanh %534 : vector<2x64xf32>
    %536 = vector.extract_strided_slice %521 {offsets = [0, 192], sizes = [2, 64], strides = [1, 1]} : vector<2x256xf32> to vector<2x64xf32>
    %537 = arith.negf %536 : vector<2x64xf32>
    %538 = math.exp %537 : vector<2x64xf32>
    %cst_131 = arith.constant 1.000000e+00 : f32
    %539 = vector.broadcast %cst_131 : f32 to vector<2x64xf32>
    %540 = arith.addf %539, %538 : vector<2x64xf32>
    %541 = arith.divf %539, %540 : vector<2x64xf32>
    %542 = arith.mulf %533, %516 : vector<2x64xf32>
    %543 = arith.mulf %527, %535 : vector<2x64xf32>
    %544 = arith.addf %542, %543 : vector<2x64xf32>
    %545 = math.tanh %544 : vector<2x64xf32>
    %546 = arith.mulf %541, %545 : vector<2x64xf32>
    %547 = vector.extract_strided_slice %122 {offsets = [0, 0], sizes = [2, 256], strides = [1, 1]} : vector<16x256xf32> to vector<2x256xf32>
    %cst_132 = arith.constant dense<0.000000e+00> : vector<2x256xf32>
    %548 = tpu.matmul %546, %115, %cst_132 {dimension_numbers = #tpu.dot_dimension_numbers<[1], [0], [0], [1], [0, 0, 1, 1], [], []>} : vector<2x64xf32>, vector<64x256xf32>, vector<2x256xf32> -> vector<2x256xf32>
    %549 = arith.addf %547, %548 : vector<2x256xf32>
    %550 = vector.extract_strided_slice %549 {offsets = [0, 0], sizes = [2, 64], strides = [1, 1]} : vector<2x256xf32> to vector<2x64xf32>
    %551 = arith.negf %550 : vector<2x64xf32>
    %552 = math.exp %551 : vector<2x64xf32>
    %cst_133 = arith.constant 1.000000e+00 : f32
    %553 = vector.broadcast %cst_133 : f32 to vector<2x64xf32>
    %554 = arith.addf %553, %552 : vector<2x64xf32>
    %555 = arith.divf %553, %554 : vector<2x64xf32>
    %556 = vector.extract_strided_slice %549 {offsets = [0, 64], sizes = [2, 64], strides = [1, 1]} : vector<2x256xf32> to vector<2x64xf32>
    %557 = arith.negf %556 : vector<2x64xf32>
    %558 = math.exp %557 : vector<2x64xf32>
    %cst_134 = arith.constant 1.000000e+00 : f32
    %559 = vector.broadcast %cst_134 : f32 to vector<2x64xf32>
    %560 = arith.addf %559, %558 : vector<2x64xf32>
    %561 = arith.divf %559, %560 : vector<2x64xf32>
    %562 = vector.extract_strided_slice %549 {offsets = [0, 128], sizes = [2, 64], strides = [1, 1]} : vector<2x256xf32> to vector<2x64xf32>
    %563 = math.tanh %562 : vector<2x64xf32>
    %564 = vector.extract_strided_slice %549 {offsets = [0, 192], sizes = [2, 64], strides = [1, 1]} : vector<2x256xf32> to vector<2x64xf32>
    %565 = arith.negf %564 : vector<2x64xf32>
    %566 = math.exp %565 : vector<2x64xf32>
    %cst_135 = arith.constant 1.000000e+00 : f32
    %567 = vector.broadcast %cst_135 : f32 to vector<2x64xf32>
    %568 = arith.addf %567, %566 : vector<2x64xf32>
    %569 = arith.divf %567, %568 : vector<2x64xf32>
    %570 = arith.mulf %561, %544 : vector<2x64xf32>
    %571 = arith.mulf %555, %563 : vector<2x64xf32>
    %572 = arith.addf %570, %571 : vector<2x64xf32>
    %573 = math.tanh %572 : vector<2x64xf32>
    %574 = arith.mulf %569, %573 : vector<2x64xf32>
    %575 = tpu.concatenate %152, %574 in 1 : vector<2x64xf32>, vector<2x64xf32> -> vector<2x128xf32>
    %576 = tpu.concatenate %180, %546 in 1 : vector<2x64xf32>, vector<2x64xf32> -> vector<2x128xf32>
    %577 = tpu.concatenate %208, %518 in 1 : vector<2x64xf32>, vector<2x64xf32> -> vector<2x128xf32>
    %578 = tpu.concatenate %236, %490 in 1 : vector<2x64xf32>, vector<2x64xf32> -> vector<2x128xf32>
    %579 = tpu.concatenate %264, %462 in 1 : vector<2x64xf32>, vector<2x64xf32> -> vector<2x128xf32>
    %580 = tpu.concatenate %292, %434 in 1 : vector<2x64xf32>, vector<2x64xf32> -> vector<2x128xf32>
    %581 = tpu.concatenate %320, %406 in 1 : vector<2x64xf32>, vector<2x64xf32> -> vector<2x128xf32>
    %582 = tpu.concatenate %348, %378 in 1 : vector<2x64xf32>, vector<2x64xf32> -> vector<2x128xf32>
    %583 = tpu.concatenate %575, %576, %577, %578, %579, %580, %581, %582 in 0 : vector<2x128xf32>, vector<2x128xf32>, vector<2x128xf32>, vector<2x128xf32>, vector<2x128xf32>, vector<2x128xf32>, vector<2x128xf32>, vector<2x128xf32> -> vector<16x128xf32>
    %c0_136 = arith.constant 0 : index
    %c0_137 = arith.constant 0 : index
    %584 = vector.load %arg19[%c0_136, %c0_137] : memref<128x256xf32, #tpu.memory_space<vmem>>, vector<128x256xf32>
    %c0_138 = arith.constant 0 : index
    %c0_139 = arith.constant 0 : index
    %585 = vector.load %arg20[%c0_138, %c0_139] : memref<64x256xf32, #tpu.memory_space<vmem>>, vector<64x256xf32>
    %c0_140 = arith.constant 0 : index
    %c0_141 = arith.constant 0 : index
    %586 = vector.load %arg21[%c0_140, %c0_141] : memref<1x256xf32, #tpu.memory_space<vmem>>, vector<1x256xf32>
    %c0_142 = arith.constant 0 : index
    %c0_143 = arith.constant 0 : index
    %587 = vector.load %arg22[%c0_142, %c0_143] : memref<128x256xf32, #tpu.memory_space<vmem>>, vector<128x256xf32>
    %c0_144 = arith.constant 0 : index
    %c0_145 = arith.constant 0 : index
    %588 = vector.load %arg23[%c0_144, %c0_145] : memref<64x256xf32, #tpu.memory_space<vmem>>, vector<64x256xf32>
    %c0_146 = arith.constant 0 : index
    %c0_147 = arith.constant 0 : index
    %589 = vector.load %arg24[%c0_146, %c0_147] : memref<1x256xf32, #tpu.memory_space<vmem>>, vector<1x256xf32>
    %cst_148 = arith.constant dense<0.000000e+00> : vector<16x256xf32>
    %590 = tpu.matmul %583, %584, %cst_148 {dimension_numbers = #tpu.dot_dimension_numbers<[1], [0], [0], [1], [0, 0, 1, 1], [], []>} : vector<16x128xf32>, vector<128x256xf32>, vector<16x256xf32> -> vector<16x256xf32>
    %591 = vector.broadcast %586 : vector<1x256xf32> to vector<16x256xf32>
    %592 = arith.addf %590, %591 : vector<16x256xf32>
    %cst_149 = arith.constant dense<0.000000e+00> : vector<16x256xf32>
    %593 = tpu.matmul %583, %587, %cst_149 {dimension_numbers = #tpu.dot_dimension_numbers<[1], [0], [0], [1], [0, 0, 1, 1], [], []>} : vector<16x128xf32>, vector<128x256xf32>, vector<16x256xf32> -> vector<16x256xf32>
    %594 = vector.broadcast %589 : vector<1x256xf32> to vector<16x256xf32>
    %595 = arith.addf %593, %594 : vector<16x256xf32>
    %cst_150 = arith.constant 0.000000e+00 : f32
    %596 = vector.broadcast %cst_150 : f32 to vector<2x64xf32>
    %cst_151 = arith.constant 0.000000e+00 : f32
    %597 = vector.broadcast %cst_151 : f32 to vector<2x64xf32>
    %598 = vector.extract_strided_slice %592 {offsets = [0, 0], sizes = [2, 256], strides = [1, 1]} : vector<16x256xf32> to vector<2x256xf32>
    %cst_152 = arith.constant dense<0.000000e+00> : vector<2x256xf32>
    %599 = tpu.matmul %596, %585, %cst_152 {dimension_numbers = #tpu.dot_dimension_numbers<[1], [0], [0], [1], [0, 0, 1, 1], [], []>} : vector<2x64xf32>, vector<64x256xf32>, vector<2x256xf32> -> vector<2x256xf32>
    %600 = arith.addf %598, %599 : vector<2x256xf32>
    %601 = vector.extract_strided_slice %600 {offsets = [0, 0], sizes = [2, 64], strides = [1, 1]} : vector<2x256xf32> to vector<2x64xf32>
    %602 = arith.negf %601 : vector<2x64xf32>
    %603 = math.exp %602 : vector<2x64xf32>
    %cst_153 = arith.constant 1.000000e+00 : f32
    %604 = vector.broadcast %cst_153 : f32 to vector<2x64xf32>
    %605 = arith.addf %604, %603 : vector<2x64xf32>
    %606 = arith.divf %604, %605 : vector<2x64xf32>
    %607 = vector.extract_strided_slice %600 {offsets = [0, 64], sizes = [2, 64], strides = [1, 1]} : vector<2x256xf32> to vector<2x64xf32>
    %608 = arith.negf %607 : vector<2x64xf32>
    %609 = math.exp %608 : vector<2x64xf32>
    %cst_154 = arith.constant 1.000000e+00 : f32
    %610 = vector.broadcast %cst_154 : f32 to vector<2x64xf32>
    %611 = arith.addf %610, %609 : vector<2x64xf32>
    %612 = arith.divf %610, %611 : vector<2x64xf32>
    %613 = vector.extract_strided_slice %600 {offsets = [0, 128], sizes = [2, 64], strides = [1, 1]} : vector<2x256xf32> to vector<2x64xf32>
    %614 = math.tanh %613 : vector<2x64xf32>
    %615 = vector.extract_strided_slice %600 {offsets = [0, 192], sizes = [2, 64], strides = [1, 1]} : vector<2x256xf32> to vector<2x64xf32>
    %616 = arith.negf %615 : vector<2x64xf32>
    %617 = math.exp %616 : vector<2x64xf32>
    %cst_155 = arith.constant 1.000000e+00 : f32
    %618 = vector.broadcast %cst_155 : f32 to vector<2x64xf32>
    %619 = arith.addf %618, %617 : vector<2x64xf32>
    %620 = arith.divf %618, %619 : vector<2x64xf32>
    %621 = arith.mulf %612, %597 : vector<2x64xf32>
    %622 = arith.mulf %606, %614 : vector<2x64xf32>
    %623 = arith.addf %621, %622 : vector<2x64xf32>
    %624 = math.tanh %623 : vector<2x64xf32>
    %625 = arith.mulf %620, %624 : vector<2x64xf32>
    %626 = vector.extract_strided_slice %592 {offsets = [2, 0], sizes = [2, 256], strides = [1, 1]} : vector<16x256xf32> to vector<2x256xf32>
    %cst_156 = arith.constant dense<0.000000e+00> : vector<2x256xf32>
    %627 = tpu.matmul %625, %585, %cst_156 {dimension_numbers = #tpu.dot_dimension_numbers<[1], [0], [0], [1], [0, 0, 1, 1], [], []>} : vector<2x64xf32>, vector<64x256xf32>, vector<2x256xf32> -> vector<2x256xf32>
    %628 = arith.addf %626, %627 : vector<2x256xf32>
    %629 = vector.extract_strided_slice %628 {offsets = [0, 0], sizes = [2, 64], strides = [1, 1]} : vector<2x256xf32> to vector<2x64xf32>
    %630 = arith.negf %629 : vector<2x64xf32>
    %631 = math.exp %630 : vector<2x64xf32>
    %cst_157 = arith.constant 1.000000e+00 : f32
    %632 = vector.broadcast %cst_157 : f32 to vector<2x64xf32>
    %633 = arith.addf %632, %631 : vector<2x64xf32>
    %634 = arith.divf %632, %633 : vector<2x64xf32>
    %635 = vector.extract_strided_slice %628 {offsets = [0, 64], sizes = [2, 64], strides = [1, 1]} : vector<2x256xf32> to vector<2x64xf32>
    %636 = arith.negf %635 : vector<2x64xf32>
    %637 = math.exp %636 : vector<2x64xf32>
    %cst_158 = arith.constant 1.000000e+00 : f32
    %638 = vector.broadcast %cst_158 : f32 to vector<2x64xf32>
    %639 = arith.addf %638, %637 : vector<2x64xf32>
    %640 = arith.divf %638, %639 : vector<2x64xf32>
    %641 = vector.extract_strided_slice %628 {offsets = [0, 128], sizes = [2, 64], strides = [1, 1]} : vector<2x256xf32> to vector<2x64xf32>
    %642 = math.tanh %641 : vector<2x64xf32>
    %643 = vector.extract_strided_slice %628 {offsets = [0, 192], sizes = [2, 64], strides = [1, 1]} : vector<2x256xf32> to vector<2x64xf32>
    %644 = arith.negf %643 : vector<2x64xf32>
    %645 = math.exp %644 : vector<2x64xf32>
    %cst_159 = arith.constant 1.000000e+00 : f32
    %646 = vector.broadcast %cst_159 : f32 to vector<2x64xf32>
    %647 = arith.addf %646, %645 : vector<2x64xf32>
    %648 = arith.divf %646, %647 : vector<2x64xf32>
    %649 = arith.mulf %640, %623 : vector<2x64xf32>
    %650 = arith.mulf %634, %642 : vector<2x64xf32>
    %651 = arith.addf %649, %650 : vector<2x64xf32>
    %652 = math.tanh %651 : vector<2x64xf32>
    %653 = arith.mulf %648, %652 : vector<2x64xf32>
    %654 = vector.extract_strided_slice %592 {offsets = [4, 0], sizes = [2, 256], strides = [1, 1]} : vector<16x256xf32> to vector<2x256xf32>
    %cst_160 = arith.constant dense<0.000000e+00> : vector<2x256xf32>
    %655 = tpu.matmul %653, %585, %cst_160 {dimension_numbers = #tpu.dot_dimension_numbers<[1], [0], [0], [1], [0, 0, 1, 1], [], []>} : vector<2x64xf32>, vector<64x256xf32>, vector<2x256xf32> -> vector<2x256xf32>
    %656 = arith.addf %654, %655 : vector<2x256xf32>
    %657 = vector.extract_strided_slice %656 {offsets = [0, 0], sizes = [2, 64], strides = [1, 1]} : vector<2x256xf32> to vector<2x64xf32>
    %658 = arith.negf %657 : vector<2x64xf32>
    %659 = math.exp %658 : vector<2x64xf32>
    %cst_161 = arith.constant 1.000000e+00 : f32
    %660 = vector.broadcast %cst_161 : f32 to vector<2x64xf32>
    %661 = arith.addf %660, %659 : vector<2x64xf32>
    %662 = arith.divf %660, %661 : vector<2x64xf32>
    %663 = vector.extract_strided_slice %656 {offsets = [0, 64], sizes = [2, 64], strides = [1, 1]} : vector<2x256xf32> to vector<2x64xf32>
    %664 = arith.negf %663 : vector<2x64xf32>
    %665 = math.exp %664 : vector<2x64xf32>
    %cst_162 = arith.constant 1.000000e+00 : f32
    %666 = vector.broadcast %cst_162 : f32 to vector<2x64xf32>
    %667 = arith.addf %666, %665 : vector<2x64xf32>
    %668 = arith.divf %666, %667 : vector<2x64xf32>
    %669 = vector.extract_strided_slice %656 {offsets = [0, 128], sizes = [2, 64], strides = [1, 1]} : vector<2x256xf32> to vector<2x64xf32>
    %670 = math.tanh %669 : vector<2x64xf32>
    %671 = vector.extract_strided_slice %656 {offsets = [0, 192], sizes = [2, 64], strides = [1, 1]} : vector<2x256xf32> to vector<2x64xf32>
    %672 = arith.negf %671 : vector<2x64xf32>
    %673 = math.exp %672 : vector<2x64xf32>
    %cst_163 = arith.constant 1.000000e+00 : f32
    %674 = vector.broadcast %cst_163 : f32 to vector<2x64xf32>
    %675 = arith.addf %674, %673 : vector<2x64xf32>
    %676 = arith.divf %674, %675 : vector<2x64xf32>
    %677 = arith.mulf %668, %651 : vector<2x64xf32>
    %678 = arith.mulf %662, %670 : vector<2x64xf32>
    %679 = arith.addf %677, %678 : vector<2x64xf32>
    %680 = math.tanh %679 : vector<2x64xf32>
    %681 = arith.mulf %676, %680 : vector<2x64xf32>
    %682 = vector.extract_strided_slice %592 {offsets = [6, 0], sizes = [2, 256], strides = [1, 1]} : vector<16x256xf32> to vector<2x256xf32>
    %cst_164 = arith.constant dense<0.000000e+00> : vector<2x256xf32>
    %683 = tpu.matmul %681, %585, %cst_164 {dimension_numbers = #tpu.dot_dimension_numbers<[1], [0], [0], [1], [0, 0, 1, 1], [], []>} : vector<2x64xf32>, vector<64x256xf32>, vector<2x256xf32> -> vector<2x256xf32>
    %684 = arith.addf %682, %683 : vector<2x256xf32>
    %685 = vector.extract_strided_slice %684 {offsets = [0, 0], sizes = [2, 64], strides = [1, 1]} : vector<2x256xf32> to vector<2x64xf32>
    %686 = arith.negf %685 : vector<2x64xf32>
    %687 = math.exp %686 : vector<2x64xf32>
    %cst_165 = arith.constant 1.000000e+00 : f32
    %688 = vector.broadcast %cst_165 : f32 to vector<2x64xf32>
    %689 = arith.addf %688, %687 : vector<2x64xf32>
    %690 = arith.divf %688, %689 : vector<2x64xf32>
    %691 = vector.extract_strided_slice %684 {offsets = [0, 64], sizes = [2, 64], strides = [1, 1]} : vector<2x256xf32> to vector<2x64xf32>
    %692 = arith.negf %691 : vector<2x64xf32>
    %693 = math.exp %692 : vector<2x64xf32>
    %cst_166 = arith.constant 1.000000e+00 : f32
    %694 = vector.broadcast %cst_166 : f32 to vector<2x64xf32>
    %695 = arith.addf %694, %693 : vector<2x64xf32>
    %696 = arith.divf %694, %695 : vector<2x64xf32>
    %697 = vector.extract_strided_slice %684 {offsets = [0, 128], sizes = [2, 64], strides = [1, 1]} : vector<2x256xf32> to vector<2x64xf32>
    %698 = math.tanh %697 : vector<2x64xf32>
    %699 = vector.extract_strided_slice %684 {offsets = [0, 192], sizes = [2, 64], strides = [1, 1]} : vector<2x256xf32> to vector<2x64xf32>
    %700 = arith.negf %699 : vector<2x64xf32>
    %701 = math.exp %700 : vector<2x64xf32>
    %cst_167 = arith.constant 1.000000e+00 : f32
    %702 = vector.broadcast %cst_167 : f32 to vector<2x64xf32>
    %703 = arith.addf %702, %701 : vector<2x64xf32>
    %704 = arith.divf %702, %703 : vector<2x64xf32>
    %705 = arith.mulf %696, %679 : vector<2x64xf32>
    %706 = arith.mulf %690, %698 : vector<2x64xf32>
    %707 = arith.addf %705, %706 : vector<2x64xf32>
    %708 = math.tanh %707 : vector<2x64xf32>
    %709 = arith.mulf %704, %708 : vector<2x64xf32>
    %710 = vector.extract_strided_slice %592 {offsets = [8, 0], sizes = [2, 256], strides = [1, 1]} : vector<16x256xf32> to vector<2x256xf32>
    %cst_168 = arith.constant dense<0.000000e+00> : vector<2x256xf32>
    %711 = tpu.matmul %709, %585, %cst_168 {dimension_numbers = #tpu.dot_dimension_numbers<[1], [0], [0], [1], [0, 0, 1, 1], [], []>} : vector<2x64xf32>, vector<64x256xf32>, vector<2x256xf32> -> vector<2x256xf32>
    %712 = arith.addf %710, %711 : vector<2x256xf32>
    %713 = vector.extract_strided_slice %712 {offsets = [0, 0], sizes = [2, 64], strides = [1, 1]} : vector<2x256xf32> to vector<2x64xf32>
    %714 = arith.negf %713 : vector<2x64xf32>
    %715 = math.exp %714 : vector<2x64xf32>
    %cst_169 = arith.constant 1.000000e+00 : f32
    %716 = vector.broadcast %cst_169 : f32 to vector<2x64xf32>
    %717 = arith.addf %716, %715 : vector<2x64xf32>
    %718 = arith.divf %716, %717 : vector<2x64xf32>
    %719 = vector.extract_strided_slice %712 {offsets = [0, 64], sizes = [2, 64], strides = [1, 1]} : vector<2x256xf32> to vector<2x64xf32>
    %720 = arith.negf %719 : vector<2x64xf32>
    %721 = math.exp %720 : vector<2x64xf32>
    %cst_170 = arith.constant 1.000000e+00 : f32
    %722 = vector.broadcast %cst_170 : f32 to vector<2x64xf32>
    %723 = arith.addf %722, %721 : vector<2x64xf32>
    %724 = arith.divf %722, %723 : vector<2x64xf32>
    %725 = vector.extract_strided_slice %712 {offsets = [0, 128], sizes = [2, 64], strides = [1, 1]} : vector<2x256xf32> to vector<2x64xf32>
    %726 = math.tanh %725 : vector<2x64xf32>
    %727 = vector.extract_strided_slice %712 {offsets = [0, 192], sizes = [2, 64], strides = [1, 1]} : vector<2x256xf32> to vector<2x64xf32>
    %728 = arith.negf %727 : vector<2x64xf32>
    %729 = math.exp %728 : vector<2x64xf32>
    %cst_171 = arith.constant 1.000000e+00 : f32
    %730 = vector.broadcast %cst_171 : f32 to vector<2x64xf32>
    %731 = arith.addf %730, %729 : vector<2x64xf32>
    %732 = arith.divf %730, %731 : vector<2x64xf32>
    %733 = arith.mulf %724, %707 : vector<2x64xf32>
    %734 = arith.mulf %718, %726 : vector<2x64xf32>
    %735 = arith.addf %733, %734 : vector<2x64xf32>
    %736 = math.tanh %735 : vector<2x64xf32>
    %737 = arith.mulf %732, %736 : vector<2x64xf32>
    %738 = vector.extract_strided_slice %592 {offsets = [10, 0], sizes = [2, 256], strides = [1, 1]} : vector<16x256xf32> to vector<2x256xf32>
    %cst_172 = arith.constant dense<0.000000e+00> : vector<2x256xf32>
    %739 = tpu.matmul %737, %585, %cst_172 {dimension_numbers = #tpu.dot_dimension_numbers<[1], [0], [0], [1], [0, 0, 1, 1], [], []>} : vector<2x64xf32>, vector<64x256xf32>, vector<2x256xf32> -> vector<2x256xf32>
    %740 = arith.addf %738, %739 : vector<2x256xf32>
    %741 = vector.extract_strided_slice %740 {offsets = [0, 0], sizes = [2, 64], strides = [1, 1]} : vector<2x256xf32> to vector<2x64xf32>
    %742 = arith.negf %741 : vector<2x64xf32>
    %743 = math.exp %742 : vector<2x64xf32>
    %cst_173 = arith.constant 1.000000e+00 : f32
    %744 = vector.broadcast %cst_173 : f32 to vector<2x64xf32>
    %745 = arith.addf %744, %743 : vector<2x64xf32>
    %746 = arith.divf %744, %745 : vector<2x64xf32>
    %747 = vector.extract_strided_slice %740 {offsets = [0, 64], sizes = [2, 64], strides = [1, 1]} : vector<2x256xf32> to vector<2x64xf32>
    %748 = arith.negf %747 : vector<2x64xf32>
    %749 = math.exp %748 : vector<2x64xf32>
    %cst_174 = arith.constant 1.000000e+00 : f32
    %750 = vector.broadcast %cst_174 : f32 to vector<2x64xf32>
    %751 = arith.addf %750, %749 : vector<2x64xf32>
    %752 = arith.divf %750, %751 : vector<2x64xf32>
    %753 = vector.extract_strided_slice %740 {offsets = [0, 128], sizes = [2, 64], strides = [1, 1]} : vector<2x256xf32> to vector<2x64xf32>
    %754 = math.tanh %753 : vector<2x64xf32>
    %755 = vector.extract_strided_slice %740 {offsets = [0, 192], sizes = [2, 64], strides = [1, 1]} : vector<2x256xf32> to vector<2x64xf32>
    %756 = arith.negf %755 : vector<2x64xf32>
    %757 = math.exp %756 : vector<2x64xf32>
    %cst_175 = arith.constant 1.000000e+00 : f32
    %758 = vector.broadcast %cst_175 : f32 to vector<2x64xf32>
    %759 = arith.addf %758, %757 : vector<2x64xf32>
    %760 = arith.divf %758, %759 : vector<2x64xf32>
    %761 = arith.mulf %752, %735 : vector<2x64xf32>
    %762 = arith.mulf %746, %754 : vector<2x64xf32>
    %763 = arith.addf %761, %762 : vector<2x64xf32>
    %764 = math.tanh %763 : vector<2x64xf32>
    %765 = arith.mulf %760, %764 : vector<2x64xf32>
    %766 = vector.extract_strided_slice %592 {offsets = [12, 0], sizes = [2, 256], strides = [1, 1]} : vector<16x256xf32> to vector<2x256xf32>
    %cst_176 = arith.constant dense<0.000000e+00> : vector<2x256xf32>
    %767 = tpu.matmul %765, %585, %cst_176 {dimension_numbers = #tpu.dot_dimension_numbers<[1], [0], [0], [1], [0, 0, 1, 1], [], []>} : vector<2x64xf32>, vector<64x256xf32>, vector<2x256xf32> -> vector<2x256xf32>
    %768 = arith.addf %766, %767 : vector<2x256xf32>
    %769 = vector.extract_strided_slice %768 {offsets = [0, 0], sizes = [2, 64], strides = [1, 1]} : vector<2x256xf32> to vector<2x64xf32>
    %770 = arith.negf %769 : vector<2x64xf32>
    %771 = math.exp %770 : vector<2x64xf32>
    %cst_177 = arith.constant 1.000000e+00 : f32
    %772 = vector.broadcast %cst_177 : f32 to vector<2x64xf32>
    %773 = arith.addf %772, %771 : vector<2x64xf32>
    %774 = arith.divf %772, %773 : vector<2x64xf32>
    %775 = vector.extract_strided_slice %768 {offsets = [0, 64], sizes = [2, 64], strides = [1, 1]} : vector<2x256xf32> to vector<2x64xf32>
    %776 = arith.negf %775 : vector<2x64xf32>
    %777 = math.exp %776 : vector<2x64xf32>
    %cst_178 = arith.constant 1.000000e+00 : f32
    %778 = vector.broadcast %cst_178 : f32 to vector<2x64xf32>
    %779 = arith.addf %778, %777 : vector<2x64xf32>
    %780 = arith.divf %778, %779 : vector<2x64xf32>
    %781 = vector.extract_strided_slice %768 {offsets = [0, 128], sizes = [2, 64], strides = [1, 1]} : vector<2x256xf32> to vector<2x64xf32>
    %782 = math.tanh %781 : vector<2x64xf32>
    %783 = vector.extract_strided_slice %768 {offsets = [0, 192], sizes = [2, 64], strides = [1, 1]} : vector<2x256xf32> to vector<2x64xf32>
    %784 = arith.negf %783 : vector<2x64xf32>
    %785 = math.exp %784 : vector<2x64xf32>
    %cst_179 = arith.constant 1.000000e+00 : f32
    %786 = vector.broadcast %cst_179 : f32 to vector<2x64xf32>
    %787 = arith.addf %786, %785 : vector<2x64xf32>
    %788 = arith.divf %786, %787 : vector<2x64xf32>
    %789 = arith.mulf %780, %763 : vector<2x64xf32>
    %790 = arith.mulf %774, %782 : vector<2x64xf32>
    %791 = arith.addf %789, %790 : vector<2x64xf32>
    %792 = math.tanh %791 : vector<2x64xf32>
    %793 = arith.mulf %788, %792 : vector<2x64xf32>
    %794 = vector.extract_strided_slice %592 {offsets = [14, 0], sizes = [2, 256], strides = [1, 1]} : vector<16x256xf32> to vector<2x256xf32>
    %cst_180 = arith.constant dense<0.000000e+00> : vector<2x256xf32>
    %795 = tpu.matmul %793, %585, %cst_180 {dimension_numbers = #tpu.dot_dimension_numbers<[1], [0], [0], [1], [0, 0, 1, 1], [], []>} : vector<2x64xf32>, vector<64x256xf32>, vector<2x256xf32> -> vector<2x256xf32>
    %796 = arith.addf %794, %795 : vector<2x256xf32>
    %797 = vector.extract_strided_slice %796 {offsets = [0, 0], sizes = [2, 64], strides = [1, 1]} : vector<2x256xf32> to vector<2x64xf32>
    %798 = arith.negf %797 : vector<2x64xf32>
    %799 = math.exp %798 : vector<2x64xf32>
    %cst_181 = arith.constant 1.000000e+00 : f32
    %800 = vector.broadcast %cst_181 : f32 to vector<2x64xf32>
    %801 = arith.addf %800, %799 : vector<2x64xf32>
    %802 = arith.divf %800, %801 : vector<2x64xf32>
    %803 = vector.extract_strided_slice %796 {offsets = [0, 64], sizes = [2, 64], strides = [1, 1]} : vector<2x256xf32> to vector<2x64xf32>
    %804 = arith.negf %803 : vector<2x64xf32>
    %805 = math.exp %804 : vector<2x64xf32>
    %cst_182 = arith.constant 1.000000e+00 : f32
    %806 = vector.broadcast %cst_182 : f32 to vector<2x64xf32>
    %807 = arith.addf %806, %805 : vector<2x64xf32>
    %808 = arith.divf %806, %807 : vector<2x64xf32>
    %809 = vector.extract_strided_slice %796 {offsets = [0, 128], sizes = [2, 64], strides = [1, 1]} : vector<2x256xf32> to vector<2x64xf32>
    %810 = math.tanh %809 : vector<2x64xf32>
    %811 = vector.extract_strided_slice %796 {offsets = [0, 192], sizes = [2, 64], strides = [1, 1]} : vector<2x256xf32> to vector<2x64xf32>
    %812 = arith.negf %811 : vector<2x64xf32>
    %813 = math.exp %812 : vector<2x64xf32>
    %cst_183 = arith.constant 1.000000e+00 : f32
    %814 = vector.broadcast %cst_183 : f32 to vector<2x64xf32>
    %815 = arith.addf %814, %813 : vector<2x64xf32>
    %816 = arith.divf %814, %815 : vector<2x64xf32>
    %817 = arith.mulf %808, %791 : vector<2x64xf32>
    %818 = arith.mulf %802, %810 : vector<2x64xf32>
    %819 = arith.addf %817, %818 : vector<2x64xf32>
    %820 = math.tanh %819 : vector<2x64xf32>
    %821 = arith.mulf %816, %820 : vector<2x64xf32>
    %cst_184 = arith.constant 0.000000e+00 : f32
    %822 = vector.broadcast %cst_184 : f32 to vector<2x64xf32>
    %cst_185 = arith.constant 0.000000e+00 : f32
    %823 = vector.broadcast %cst_185 : f32 to vector<2x64xf32>
    %824 = vector.extract_strided_slice %595 {offsets = [14, 0], sizes = [2, 256], strides = [1, 1]} : vector<16x256xf32> to vector<2x256xf32>
    %cst_186 = arith.constant dense<0.000000e+00> : vector<2x256xf32>
    %825 = tpu.matmul %822, %588, %cst_186 {dimension_numbers = #tpu.dot_dimension_numbers<[1], [0], [0], [1], [0, 0, 1, 1], [], []>} : vector<2x64xf32>, vector<64x256xf32>, vector<2x256xf32> -> vector<2x256xf32>
    %826 = arith.addf %824, %825 : vector<2x256xf32>
    %827 = vector.extract_strided_slice %826 {offsets = [0, 0], sizes = [2, 64], strides = [1, 1]} : vector<2x256xf32> to vector<2x64xf32>
    %828 = arith.negf %827 : vector<2x64xf32>
    %829 = math.exp %828 : vector<2x64xf32>
    %cst_187 = arith.constant 1.000000e+00 : f32
    %830 = vector.broadcast %cst_187 : f32 to vector<2x64xf32>
    %831 = arith.addf %830, %829 : vector<2x64xf32>
    %832 = arith.divf %830, %831 : vector<2x64xf32>
    %833 = vector.extract_strided_slice %826 {offsets = [0, 64], sizes = [2, 64], strides = [1, 1]} : vector<2x256xf32> to vector<2x64xf32>
    %834 = arith.negf %833 : vector<2x64xf32>
    %835 = math.exp %834 : vector<2x64xf32>
    %cst_188 = arith.constant 1.000000e+00 : f32
    %836 = vector.broadcast %cst_188 : f32 to vector<2x64xf32>
    %837 = arith.addf %836, %835 : vector<2x64xf32>
    %838 = arith.divf %836, %837 : vector<2x64xf32>
    %839 = vector.extract_strided_slice %826 {offsets = [0, 128], sizes = [2, 64], strides = [1, 1]} : vector<2x256xf32> to vector<2x64xf32>
    %840 = math.tanh %839 : vector<2x64xf32>
    %841 = vector.extract_strided_slice %826 {offsets = [0, 192], sizes = [2, 64], strides = [1, 1]} : vector<2x256xf32> to vector<2x64xf32>
    %842 = arith.negf %841 : vector<2x64xf32>
    %843 = math.exp %842 : vector<2x64xf32>
    %cst_189 = arith.constant 1.000000e+00 : f32
    %844 = vector.broadcast %cst_189 : f32 to vector<2x64xf32>
    %845 = arith.addf %844, %843 : vector<2x64xf32>
    %846 = arith.divf %844, %845 : vector<2x64xf32>
    %847 = arith.mulf %838, %823 : vector<2x64xf32>
    %848 = arith.mulf %832, %840 : vector<2x64xf32>
    %849 = arith.addf %847, %848 : vector<2x64xf32>
    %850 = math.tanh %849 : vector<2x64xf32>
    %851 = arith.mulf %846, %850 : vector<2x64xf32>
    %852 = tpu.concatenate %821, %851 in 1 : vector<2x64xf32>, vector<2x64xf32> -> vector<2x128xf32>
    %c0_190 = arith.constant 0 : index
    %c0_191 = arith.constant 0 : index
    %853 = vector.load %arg25[%c0_190, %c0_191] : memref<128x1xf32, #tpu.memory_space<vmem>>, vector<128x1xf32>
    %cst_192 = arith.constant dense<0.000000e+00> : vector<2x1xf32>
    %854 = tpu.matmul %852, %853, %cst_192 {dimension_numbers = #tpu.dot_dimension_numbers<[1], [0], [0], [1], [0, 0, 1, 1], [], []>} : vector<2x128xf32>, vector<128x1xf32>, vector<2x1xf32> -> vector<2x1xf32>
    %c0_193 = arith.constant 0 : index
    %c0_194 = arith.constant 0 : index
    %855 = vector.load %arg26[%c0_193, %c0_194] : memref<1x1xf32, #tpu.memory_space<vmem>>, vector<1x1xf32>
    %856 = vector.broadcast %855 : vector<1x1xf32> to vector<2x1xf32>
    %857 = arith.addf %854, %856 : vector<2x1xf32>
    %858 = arith.negf %857 : vector<2x1xf32>
    %859 = math.exp %858 : vector<2x1xf32>
    %cst_195 = arith.constant 1.000000e+00 : f32
    %860 = vector.broadcast %cst_195 : f32 to vector<2x1xf32>
    %861 = arith.addf %860, %859 : vector<2x1xf32>
    %862 = arith.divf %860, %861 : vector<2x1xf32>
    %c0_196 = arith.constant 0 : index
    %c0_197 = arith.constant 0 : index
    %863 = vector.load %arg27[%c0_196, %c0_197] : memref<2x1xf32, #tpu.memory_space<vmem>>, vector<2x1xf32>
    tpu.vector_store %arg27[%c0_196, %c0_197], %862 {strides = array<i32>} : memref<2x1xf32, #tpu.memory_space<vmem>>, vector<2x1xf32>,
    return
  }
}

</mosaic_0001>

<llo_original>
// kernel: cldnn_g_forward.1
$region0: #{cldnn_g_forward.1}
  #allocation0 [shape = 'u32[]', space=smem, size = 0x4, offset = 0x4, fixed_abs, tag = 'smem constant byte address 0x4 - core index']
  #allocation1 [shape = 'u32[144,128]{1,0:T(1,128)}', space=vmem, size = 0x12000, scoped, tag = 'internal scratch']
  #allocation2 [shape = 'f32[1,1]{1,0:T(1,128)S(1)}', space=vmem, size = 0x200, scoped, tag = 'scoped memory for cldnn_g_forward.1']
  %s0 = inlined_call_operand.vmem [shape: f32[16,48], index: 0, kind: input, shape index: {}]
  %s1 = inlined_call_operand.vmem [shape: f32[16,16], index: 1, kind: input, shape index: {}]
  %s2 = inlined_call_operand.vmem [shape: f32[4,8], index: 2, kind: input, shape index: {}]
  %s3 = inlined_call_operand.vmem [shape: f32[48,8], index: 3, kind: input, shape index: {}]
  %s4 = inlined_call_operand.hbm [shape: f32[1,8], index: 4, kind: input, shape index: {}]
  %s5 = inlined_call_operand.hbm [shape: f32[8,8], index: 5, kind: input, shape index: {}]
  %s6 = inlined_call_operand.hbm [shape: f32[1,8], index: 6, kind: input, shape index: {}]
  %s7 = inlined_call_operand.hbm [shape: f32[8,8], index: 7, kind: input, shape index: {}]
  %s8 = inlined_call_operand.hbm [shape: f32[1,8], index: 8, kind: input, shape index: {}]
  %s9 = inlined_call_operand.hbm [shape: f32[8,8], index: 9, kind: input, shape index: {}]
  %s10 = inlined_call_operand.hbm [shape: f32[1,8], index: 10, kind: input, shape index: {}]
  %s11 = inlined_call_operand.hbm [shape: f32[8,8], index: 11, kind: input, shape index: {}]
  %s12 = inlined_call_operand.hbm [shape: f32[1,8], index: 12, kind: input, shape index: {}]
  %s13 = inlined_call_operand.vmem [shape: f32[8,256], index: 13, kind: input, shape index: {}]
  %s14 = inlined_call_operand.vmem [shape: f32[64,256], index: 14, kind: input, shape index: {}]
  %s15 = inlined_call_operand.vmem [shape: f32[1,256], index: 15, kind: input, shape index: {}]
  %s16 = inlined_call_operand.hbm [shape: f32[8,256], index: 16, kind: input, shape index: {}]
  %s17 = inlined_call_operand.hbm [shape: f32[64,256], index: 17, kind: input, shape index: {}]
  %s18 = inlined_call_operand.vmem [shape: f32[1,256], index: 18, kind: input, shape index: {}]
  %s19 = inlined_call_operand.vmem [shape: f32[128,256], index: 19, kind: input, shape index: {}]
  %s20 = inlined_call_operand.hbm [shape: f32[64,256], index: 20, kind: input, shape index: {}]
  %s21 = inlined_call_operand.vmem [shape: f32[1,256], index: 21, kind: input, shape index: {}]
  %s22 = inlined_call_operand.hbm [shape: f32[128,256], index: 22, kind: input, shape index: {}]
  %s23 = inlined_call_operand.hbm [shape: f32[64,256], index: 23, kind: input, shape index: {}]
  %s24 = inlined_call_operand.hbm [shape: f32[1,256], index: 24, kind: input, shape index: {}]
  %s25 = inlined_call_operand.vmem [shape: f32[128,1], index: 25, kind: input, shape index: {}]
  %s26 = inlined_call_operand.<no memory space> [shape: f32[1,1], index: 26, kind: input, shape index: {}]
  %s27 = inlined_call_operand.vmem [shape: f32[2,1], index: 27, kind: output, shape index: {}]
  %s28 = sld [smem:[#allocation0]]
  $region178: #{cldnn_g_forward.1} parent=0
    _
  %s30 = ssub.s32 1, %s28
  %s31 = scalar_select 0, %s30, %s28
  %v32 = vstv %s26
  %33 = vst [vmem:[#allocation2] sm:$0x1] %v32
  $region1: #{cldnn_g_forward.1} parent=0
    #allocation3 [shape = 'u8[512]{0}', space=vmem, size = 0x400, scoped, tag = 'input window, operand 4, single buffered']
    #allocation4 [shape = 's32[1]{0}', space=sflag, size = 0x4, scoped, tag = 'scoped memory for cldnn_g_forward.1']
    #allocation5 [shape = 'u8[4096]{0}', space=vmem, size = 0x1000, scoped, tag = 'input window, operand 5, single buffered']
    #allocation6 [shape = 's32[1]{0}', space=sflag, size = 0x4, scoped, tag = 'scoped memory for cldnn_g_forward.1']
    #allocation7 [shape = 'u8[512]{0}', space=vmem, size = 0x400, scoped, tag = 'input window, operand 6, single buffered']
    #allocation8 [shape = 'u8[4096]{0}', space=vmem, size = 0x1000, scoped, tag = 'input window, operand 7, single buffered']
    #allocation9 [shape = 's32[1]{0}', space=sflag, size = 0x4, scoped, tag = 'scoped memory for cldnn_g_forward.1']
    #allocation10 [shape = 'u8[512]{0}', space=vmem, size = 0x400, scoped, tag = 'input window, operand 8, single buffered']
    #allocation11 [shape = 'u8[4096]{0}', space=vmem, size = 0x1000, scoped, tag = 'input window, operand 9, single buffered']
    #allocation12 [shape = 's32[1]{0}', space=sflag, size = 0x4, scoped, tag = 'scoped memory for cldnn_g_forward.1']
    #allocation13 [shape = 'u8[512]{0}', space=vmem, size = 0x400, scoped, tag = 'input window, operand 10, single buffered']
    #allocation14 [shape = 'u8[4096]{0}', space=vmem, size = 0x1000, scoped, tag = 'input window, operand 11, single buffered']
    #allocation15 [shape = 's32[1]{0}', space=sflag, size = 0x4, scoped, tag = 'scoped memory for cldnn_g_forward.1']
    #allocation16 [shape = 'u8[512]{0}', space=vmem, size = 0x400, scoped, tag = 'input window, operand 12, single buffered']
    #allocation17 [shape = 'u8[8192]{0}', space=vmem, size = 0x2000, scoped, tag = 'input window, operand 16, single buffered']
    #allocation18 [shape = 's32[1]{0}', space=sflag, size = 0x4, scoped, tag = 'scoped memory for cldnn_g_forward.1']
    #allocation19 [shape = 'u8[65536]{0}', space=vmem, size = 0x10000, scoped, tag = 'input window, operand 17, single buffered']
    #allocation20 [shape = 'u8[65536]{0}', space=vmem, size = 0x10000, scoped, tag = 'input window, operand 20, single buffered']
    #allocation21 [shape = 's32[1]{0}', space=sflag, size = 0x4, scoped, tag = 'scoped memory for cldnn_g_forward.1']
    #allocation22 [shape = 'u8[131072]{0}', space=vmem, size = 0x20000, scoped, tag = 'input window, operand 22, single buffered']
    #allocation23 [shape = 'u8[65536]{0}', space=vmem, size = 0x10000, scoped, tag = 'input window, operand 23, single buffered']
    #allocation24 [shape = 's32[1]{0}', space=sflag, size = 0x4, scoped, tag = 'scoped memory for cldnn_g_forward.1']
    #allocation25 [shape = 'u8[1024]{0}', space=vmem, size = 0x400, scoped, tag = 'input window, operand 24, single buffered']
    %34 = vsyncpa [#allocation4], 0
    %35 = vsyncpa [#allocation6], 0
    %36 = vsyncpa [#allocation9], 0
    %37 = vsyncpa [#allocation12], 0
    %38 = vsyncpa [#allocation15], 0
    %39 = vsyncpa [#allocation18], 0
    %40 = vsyncpa [#allocation21], 0
    %41 = vsyncpa [#allocation24], 0
    // Predicated region
    $region2: #{cldnn_g_forward.1} parent=1 // pred_check
      _
    $region3: #{cldnn_g_forward.1} parent=1 // pred_check_branch
      %43 = sbr.rel (0) target = $region5
    $region4: #{cldnn_g_forward.1} parent=1 // pred_region
      _
    $region5: #{cldnn_g_forward.1} parent=1 // pred_fallthru
      _
    // Predicated region
    $region6: #{cldnn_g_forward.1} parent=1 // pred_check
      _
    $region7: #{cldnn_g_forward.1} parent=1 // pred_check_branch
      %45 = sbr.rel (0) target = $region9
    $region8: #{cldnn_g_forward.1} parent=1 // pred_region
      _
    $region9: #{cldnn_g_forward.1} parent=1 // pred_fallthru
      _
    // Predicated region
    $region10: #{cldnn_g_forward.1} parent=1 // pred_check
      _
    $region11: #{cldnn_g_forward.1} parent=1 // pred_check_branch
      %47 = sbr.rel (0) target = $region13
    $region12: #{cldnn_g_forward.1} parent=1 // pred_region
      _
    $region13: #{cldnn_g_forward.1} parent=1 // pred_fallthru
      _
    // Predicated region
    $region14: #{cldnn_g_forward.1} parent=1 // pred_check
      _
    $region15: #{cldnn_g_forward.1} parent=1 // pred_check_branch
      %49 = sbr.rel (0) target = $region17
    $region16: #{cldnn_g_forward.1} parent=1 // pred_region
      _
    $region17: #{cldnn_g_forward.1} parent=1 // pred_fallthru
      _
    // Predicated region
    $region18: #{cldnn_g_forward.1} parent=1 // pred_check
      _
    $region19: #{cldnn_g_forward.1} parent=1 // pred_check_branch
      %51 = sbr.rel (0) target = $region21
    $region20: #{cldnn_g_forward.1} parent=1 // pred_region
      %s53 = ssub.s32 16, 16
      %54 = vsyncadd [#allocation4], %s53
      %s56 = sshll.u32 [#allocation3], 4
      %s57 = int_to_ptr.vmem [resolvable:$true] %s56
      %59 = dma.hbm_to_vmem [thread:$0]  %s4, 16, %s57, [#allocation4]
    $region21: #{cldnn_g_forward.1} parent=1 // pred_fallthru
      _
    // Predicated region
    $region22: #{cldnn_g_forward.1} parent=1 // pred_check
      _
    $region23: #{cldnn_g_forward.1} parent=1 // pred_check_branch
      %61 = sbr.rel (0) target = $region25
    $region24: #{cldnn_g_forward.1} parent=1 // pred_region
      %s63 = ssub.s32 128, 128
      %64 = vsyncadd [#allocation6], %s63
      %s66 = sshll.u32 [#allocation5], 4
      %s67 = int_to_ptr.vmem [resolvable:$true] %s66
      %69 = dma.hbm_to_vmem [thread:$0]  %s5, 128, %s67, [#allocation6]
    $region25: #{cldnn_g_forward.1} parent=1 // pred_fallthru
      _
    // Predicated region
    $region26: #{cldnn_g_forward.1} parent=1 // pred_check
      _
    $region27: #{cldnn_g_forward.1} parent=1 // pred_check_branch
      %71 = sbr.rel (0) target = $region29
    $region28: #{cldnn_g_forward.1} parent=1 // pred_region
      %s73 = ssub.s32 16, 16
      %74 = vsyncadd [#allocation6], %s73
      %s76 = sshll.u32 [#allocation7], 4
      %s77 = int_to_ptr.vmem [resolvable:$true] %s76
      %79 = dma.hbm_to_vmem [thread:$0]  %s6, 16, %s77, [#allocation6]
    $region29: #{cldnn_g_forward.1} parent=1 // pred_fallthru
      _
    // Predicated region
    $region30: #{cldnn_g_forward.1} parent=1 // pred_check
      _
    $region31: #{cldnn_g_forward.1} parent=1 // pred_check_branch
      %81 = sbr.rel (0) target = $region33
    $region32: #{cldnn_g_forward.1} parent=1 // pred_region
      %s83 = ssub.s32 128, 128
      %84 = vsyncadd [#allocation9], %s83
      %s86 = sshll.u32 [#allocation8], 4
      %s87 = int_to_ptr.vmem [resolvable:$true] %s86
      %89 = dma.hbm_to_vmem [thread:$0]  %s7, 128, %s87, [#allocation9]
    $region33: #{cldnn_g_forward.1} parent=1 // pred_fallthru
      _
    // Predicated region
    $region34: #{cldnn_g_forward.1} parent=1 // pred_check
      _
    $region35: #{cldnn_g_forward.1} parent=1 // pred_check_branch
      %91 = sbr.rel (0) target = $region37
    $region36: #{cldnn_g_forward.1} parent=1 // pred_region
      %s93 = ssub.s32 16, 16
      %94 = vsyncadd [#allocation9], %s93
      %s96 = sshll.u32 [#allocation10], 4
      %s97 = int_to_ptr.vmem [resolvable:$true] %s96
      %99 = dma.hbm_to_vmem [thread:$0]  %s8, 16, %s97, [#allocation9]
    $region37: #{cldnn_g_forward.1} parent=1 // pred_fallthru
      _
    // Predicated region
    $region38: #{cldnn_g_forward.1} parent=1 // pred_check
      _
    $region39: #{cldnn_g_forward.1} parent=1 // pred_check_branch
      %101 = sbr.rel (0) target = $region41
    $region40: #{cldnn_g_forward.1} parent=1 // pred_region
      %s103 = ssub.s32 128, 128
      %104 = vsyncadd [#allocation12], %s103
      %s106 = sshll.u32 [#allocation11], 4
      %s107 = int_to_ptr.vmem [resolvable:$true] %s106
      %109 = dma.hbm_to_vmem [thread:$0]  %s9, 128, %s107, [#allocation12]
    $region41: #{cldnn_g_forward.1} parent=1 // pred_fallthru
      _
    // Predicated region
    $region42: #{cldnn_g_forward.1} parent=1 // pred_check
      _
    $region43: #{cldnn_g_forward.1} parent=1 // pred_check_branch
      %111 = sbr.rel (0) target = $region45
    $region44: #{cldnn_g_forward.1} parent=1 // pred_region
      %s113 = ssub.s32 16, 16
      %114 = vsyncadd [#allocation12], %s113
      %s116 = sshll.u32 [#allocation13], 4
      %s117 = int_to_ptr.vmem [resolvable:$true] %s116
      %119 = dma.hbm_to_vmem [thread:$0]  %s10, 16, %s117, [#allocation12]
    $region45: #{cldnn_g_forward.1} parent=1 // pred_fallthru
      _
    // Predicated region
    $region46: #{cldnn_g_forward.1} parent=1 // pred_check
      _
    $region47: #{cldnn_g_forward.1} parent=1 // pred_check_branch
      %121 = sbr.rel (0) target = $region49
    $region48: #{cldnn_g_forward.1} parent=1 // pred_region
      %s123 = ssub.s32 128, 128
      %124 = vsyncadd [#allocation15], %s123
      %s126 = sshll.u32 [#allocation14], 4
      %s127 = int_to_ptr.vmem [resolvable:$true] %s126
      %129 = dma.hbm_to_vmem [thread:$0]  %s11, 128, %s127, [#allocation15]
    $region49: #{cldnn_g_forward.1} parent=1 // pred_fallthru
      _
    // Predicated region
    $region50: #{cldnn_g_forward.1} parent=1 // pred_check
      _
    $region51: #{cldnn_g_forward.1} parent=1 // pred_check_branch
      %131 = sbr.rel (0) target = $region53
    $region52: #{cldnn_g_forward.1} parent=1 // pred_region
      %s133 = ssub.s32 16, 16
      %134 = vsyncadd [#allocation15], %s133
      %s136 = sshll.u32 [#allocation16], 4
      %s137 = int_to_ptr.vmem [resolvable:$true] %s136
      %139 = dma.hbm_to_vmem [thread:$0]  %s12, 16, %s137, [#allocation15]
    $region53: #{cldnn_g_forward.1} parent=1 // pred_fallthru
      _
    // Predicated region
    $region54: #{cldnn_g_forward.1} parent=1 // pred_check
      _
    $region55: #{cldnn_g_forward.1} parent=1 // pred_check_branch
      %141 = sbr.rel (0) target = $region57
    $region56: #{cldnn_g_forward.1} parent=1 // pred_region
      _
    $region57: #{cldnn_g_forward.1} parent=1 // pred_fallthru
      _
    // Predicated region
    $region58: #{cldnn_g_forward.1} parent=1 // pred_check
      _
    $region59: #{cldnn_g_forward.1} parent=1 // pred_check_branch
      %143 = sbr.rel (0) target = $region61
    $region60: #{cldnn_g_forward.1} parent=1 // pred_region
      _
    $region61: #{cldnn_g_forward.1} parent=1 // pred_fallthru
      _
    // Predicated region
    $region62: #{cldnn_g_forward.1} parent=1 // pred_check
      _
    $region63: #{cldnn_g_forward.1} parent=1 // pred_check_branch
      %145 = sbr.rel (0) target = $region65
    $region64: #{cldnn_g_forward.1} parent=1 // pred_region
      _
    $region65: #{cldnn_g_forward.1} parent=1 // pred_fallthru
      _
    // Predicated region
    $region66: #{cldnn_g_forward.1} parent=1 // pred_check
      _
    $region67: #{cldnn_g_forward.1} parent=1 // pred_check_branch
      %147 = sbr.rel (0) target = $region69
    $region68: #{cldnn_g_forward.1} parent=1 // pred_region
      %s149 = ssub.s32 256, 256
      %150 = vsyncadd [#allocation18], %s149
      %s152 = sshll.u32 [#allocation17], 4
      %s153 = int_to_ptr.vmem [resolvable:$true] %s152
      %155 = dma.hbm_to_vmem [thread:$0]  %s16, 256, %s153, [#allocation18]
    $region69: #{cldnn_g_forward.1} parent=1 // pred_fallthru
      _
    // Predicated region
    $region70: #{cldnn_g_forward.1} parent=1 // pred_check
      _
    $region71: #{cldnn_g_forward.1} parent=1 // pred_check_branch
      %157 = sbr.rel (0) target = $region73
    $region72: #{cldnn_g_forward.1} parent=1 // pred_region
      %s159 = ssub.s32 2048, 2048
      %160 = vsyncadd [#allocation18], %s159
      %s161 = sshll.u32 [#allocation19], 4
      %s162 = int_to_ptr.vmem [resolvable:$true] %s161
      %167 = dma.hbm_to_vmem [thread:$0]  %s17, 2048, %s162, [#allocation18], 256, 256, 16
    $region73: #{cldnn_g_forward.1} parent=1 // pred_fallthru
      _
    // Predicated region
    $region74: #{cldnn_g_forward.1} parent=1 // pred_check
      _
    $region75: #{cldnn_g_forward.1} parent=1 // pred_check_branch
      %169 = sbr.rel (0) target = $region77
    $region76: #{cldnn_g_forward.1} parent=1 // pred_region
      _
    $region77: #{cldnn_g_forward.1} parent=1 // pred_fallthru
      _
    // Predicated region
    $region78: #{cldnn_g_forward.1} parent=1 // pred_check
      _
    $region79: #{cldnn_g_forward.1} parent=1 // pred_check_branch
      %171 = sbr.rel (0) target = $region81
    $region80: #{cldnn_g_forward.1} parent=1 // pred_region
      _
    $region81: #{cldnn_g_forward.1} parent=1 // pred_fallthru
      _
    // Predicated region
    $region82: #{cldnn_g_forward.1} parent=1 // pred_check
      _
    $region83: #{cldnn_g_forward.1} parent=1 // pred_check_branch
      %173 = sbr.rel (0) target = $region85
    $region84: #{cldnn_g_forward.1} parent=1 // pred_region
      %s175 = ssub.s32 2048, 2048
      %176 = vsyncadd [#allocation21], %s175
      %s177 = sshll.u32 [#allocation20], 4
      %s178 = int_to_ptr.vmem [resolvable:$true] %s177
      %183 = dma.hbm_to_vmem [thread:$0]  %s20, 2048, %s178, [#allocation21], 256, 256, 16
    $region85: #{cldnn_g_forward.1} parent=1 // pred_fallthru
      _
    // Predicated region
    $region86: #{cldnn_g_forward.1} parent=1 // pred_check
      _
    $region87: #{cldnn_g_forward.1} parent=1 // pred_check_branch
      %185 = sbr.rel (0) target = $region89
    $region88: #{cldnn_g_forward.1} parent=1 // pred_region
      _
    $region89: #{cldnn_g_forward.1} parent=1 // pred_fallthru
      _
    // Predicated region
    $region90: #{cldnn_g_forward.1} parent=1 // pred_check
      _
    $region91: #{cldnn_g_forward.1} parent=1 // pred_check_branch
      %187 = sbr.rel (0) target = $region93
    $region92: #{cldnn_g_forward.1} parent=1 // pred_region
      %s189 = ssub.s32 4096, 4096
      %190 = vsyncadd [#allocation21], %s189
      %s191 = sshll.u32 [#allocation22], 4
      %s192 = int_to_ptr.vmem [resolvable:$true] %s191
      %197 = dma.hbm_to_vmem [thread:$0]  %s22, 4096, %s192, [#allocation21], 256, 256, 16
    $region93: #{cldnn_g_forward.1} parent=1 // pred_fallthru
      _
    // Predicated region
    $region94: #{cldnn_g_forward.1} parent=1 // pred_check
      _
    $region95: #{cldnn_g_forward.1} parent=1 // pred_check_branch
      %199 = sbr.rel (0) target = $region97
    $region96: #{cldnn_g_forward.1} parent=1 // pred_region
      %s201 = ssub.s32 2048, 2048
      %202 = vsyncadd [#allocation24], %s201
      %s203 = sshll.u32 [#allocation23], 4
      %s204 = int_to_ptr.vmem [resolvable:$true] %s203
      %209 = dma.hbm_to_vmem [thread:$0]  %s23, 2048, %s204, [#allocation24], 256, 256, 16
    $region97: #{cldnn_g_forward.1} parent=1 // pred_fallthru
      _
    // Predicated region
    $region98: #{cldnn_g_forward.1} parent=1 // pred_check
      _
    $region99: #{cldnn_g_forward.1} parent=1 // pred_check_branch
      %211 = sbr.rel (0) target = $region101
    $region100: #{cldnn_g_forward.1} parent=1 // pred_region
      %s213 = ssub.s32 32, 32
      %214 = vsyncadd [#allocation24], %s213
      %s216 = sshll.u32 [#allocation25], 4
      %s217 = int_to_ptr.vmem [resolvable:$true] %s216
      %219 = dma.hbm_to_vmem [thread:$0]  %s24, 32, %s217, [#allocation24]
    $region101: #{cldnn_g_forward.1} parent=1 // pred_fallthru
      _
    // Predicated region
    $region102: #{cldnn_g_forward.1} parent=1 // pred_check
      _
    $region103: #{cldnn_g_forward.1} parent=1 // pred_check_branch
      %221 = sbr.rel (0) target = $region105
    $region104: #{cldnn_g_forward.1} parent=1 // pred_region
      _
    $region105: #{cldnn_g_forward.1} parent=1 // pred_fallthru
      _
    // Predicated region
    $region106: #{cldnn_g_forward.1} parent=1 // pred_check
      _
    $region107: #{cldnn_g_forward.1} parent=1 // pred_check_branch
      %223 = sbr.rel (0) target = $region109
    $region108: #{cldnn_g_forward.1} parent=1 // pred_region
      _
    $region109: #{cldnn_g_forward.1} parent=1 // pred_fallthru
      _
    // Predicated region
    $region110: #{cldnn_g_forward.1} parent=1 // pred_check
      _
    $region111: #{cldnn_g_forward.1} parent=1 // pred_check_branch
      %225 = sbr.rel (0) target = $region113
    $region112: #{cldnn_g_forward.1} parent=1 // pred_region
      %226 = dma.done [#allocation4], 16
    $region113: #{cldnn_g_forward.1} parent=1 // pred_fallthru
      _
    // Predicated region
    $region114: #{cldnn_g_forward.1} parent=1 // pred_check
      _
    $region115: #{cldnn_g_forward.1} parent=1 // pred_check_branch
      %228 = sbr.rel (0) target = $region117
    $region116: #{cldnn_g_forward.1} parent=1 // pred_region
      %229 = dma.done [#allocation6], 128
    $region117: #{cldnn_g_forward.1} parent=1 // pred_fallthru
      _
    // Predicated region
    $region118: #{cldnn_g_forward.1} parent=1 // pred_check
      _
    $region119: #{cldnn_g_forward.1} parent=1 // pred_check_branch
      %231 = sbr.rel (0) target = $region121
    $region120: #{cldnn_g_forward.1} parent=1 // pred_region
      %232 = dma.done [#allocation6], 16
    $region121: #{cldnn_g_forward.1} parent=1 // pred_fallthru
      _
    // Predicated region
    $region122: #{cldnn_g_forward.1} parent=1 // pred_check
      _
    $region123: #{cldnn_g_forward.1} parent=1 // pred_check_branch
      %234 = sbr.rel (0) target = $region125
    $region124: #{cldnn_g_forward.1} parent=1 // pred_region
      %235 = dma.done [#allocation9], 128
    $region125: #{cldnn_g_forward.1} parent=1 // pred_fallthru
      _
    // Predicated region
    $region126: #{cldnn_g_forward.1} parent=1 // pred_check
      _
    $region127: #{cldnn_g_forward.1} parent=1 // pred_check_branch
      %237 = sbr.rel (0) target = $region129
    $region128: #{cldnn_g_forward.1} parent=1 // pred_region
      %238 = dma.done [#allocation9], 16
    $region129: #{cldnn_g_forward.1} parent=1 // pred_fallthru
      _
    // Predicated region
    $region130: #{cldnn_g_forward.1} parent=1 // pred_check
      _
    $region131: #{cldnn_g_forward.1} parent=1 // pred_check_branch
      %240 = sbr.rel (0) target = $region133
    $region132: #{cldnn_g_forward.1} parent=1 // pred_region
      %241 = dma.done [#allocation12], 128
    $region133: #{cldnn_g_forward.1} parent=1 // pred_fallthru
      _
    // Predicated region
    $region134: #{cldnn_g_forward.1} parent=1 // pred_check
      _
    $region135: #{cldnn_g_forward.1} parent=1 // pred_check_branch
      %243 = sbr.rel (0) target = $region137
    $region136: #{cldnn_g_forward.1} parent=1 // pred_region
      %244 = dma.done [#allocation12], 16
    $region137: #{cldnn_g_forward.1} parent=1 // pred_fallthru
      _
    // Predicated region
    $region138: #{cldnn_g_forward.1} parent=1 // pred_check
      _
    $region139: #{cldnn_g_forward.1} parent=1 // pred_check_branch
      %246 = sbr.rel (0) target = $region141
    $region140: #{cldnn_g_forward.1} parent=1 // pred_region
      %247 = dma.done [#allocation15], 128
    $region141: #{cldnn_g_forward.1} parent=1 // pred_fallthru
      _
    // Predicated region
    $region142: #{cldnn_g_forward.1} parent=1 // pred_check
      _
    $region143: #{cldnn_g_forward.1} parent=1 // pred_check_branch
      %249 = sbr.rel (0) target = $region145
    $region144: #{cldnn_g_forward.1} parent=1 // pred_region
      %250 = dma.done [#allocation15], 16
    $region145: #{cldnn_g_forward.1} parent=1 // pred_fallthru
      _
    // Predicated region
    $region146: #{cldnn_g_forward.1} parent=1 // pred_check
      _
    $region147: #{cldnn_g_forward.1} parent=1 // pred_check_branch
      %252 = sbr.rel (0) target = $region149
    $region148: #{cldnn_g_forward.1} parent=1 // pred_region
      %253 = dma.done [#allocation18], 256
    $region149: #{cldnn_g_forward.1} parent=1 // pred_fallthru
      _
    // Predicated region
    $region150: #{cldnn_g_forward.1} parent=1 // pred_check
      _
    $region151: #{cldnn_g_forward.1} parent=1 // pred_check_branch
      %255 = sbr.rel (0) target = $region153
    $region152: #{cldnn_g_forward.1} parent=1 // pred_region
      %256 = dma.done [#allocation18], 2048
    $region153: #{cldnn_g_forward.1} parent=1 // pred_fallthru
      _
    // Predicated region
    $region154: #{cldnn_g_forward.1} parent=1 // pred_check
      _
    $region155: #{cldnn_g_forward.1} parent=1 // pred_check_branch
      %258 = sbr.rel (0) target = $region157
    $region156: #{cldnn_g_forward.1} parent=1 // pred_region
      %259 = dma.done [#allocation21], 2048
    $region157: #{cldnn_g_forward.1} parent=1 // pred_fallthru
      _
    // Predicated region
    $region158: #{cldnn_g_forward.1} parent=1 // pred_check
      _
    $region159: #{cldnn_g_forward.1} parent=1 // pred_check_branch
      %261 = sbr.rel (0) target = $region161
    $region160: #{cldnn_g_forward.1} parent=1 // pred_region
      %262 = dma.done [#allocation21], 4096
    $region161: #{cldnn_g_forward.1} parent=1 // pred_fallthru
      _
    // Predicated region
    $region162: #{cldnn_g_forward.1} parent=1 // pred_check
      _
    $region163: #{cldnn_g_forward.1} parent=1 // pred_check_branch
      %264 = sbr.rel (0) target = $region165
    $region164: #{cldnn_g_forward.1} parent=1 // pred_region
      %265 = dma.done [#allocation24], 2048
    $region165: #{cldnn_g_forward.1} parent=1 // pred_fallthru
      _
    // Predicated region
    $region166: #{cldnn_g_forward.1} parent=1 // pred_check
      _
    $region167: #{cldnn_g_forward.1} parent=1 // pred_check_branch
      %267 = sbr.rel (0) target = $region169
    $region168: #{cldnn_g_forward.1} parent=1 // pred_region
      %268 = dma.done [#allocation24], 32
    $region169: #{cldnn_g_forward.1} parent=1 // pred_fallthru
      _
    %v269 = vld [vmem:[%s0] sm:$0xff]
    %v270 = vld [vmem:[%s0 + $0x8] sm:$0xff]
    %v271 = vld [vmem:[%s3] sm:$0xff]
    %v272 = vld [vmem:[%s3 + $0x8] sm:$0xff]
    %v273 = vld [vmem:[%s3 + $0x10] sm:$0xff]
    %v274 = vld [vmem:[%s3 + $0x18] sm:$0xff]
    %v275 = vld [vmem:[%s3 + $0x20] sm:$0xff]
    %v276 = vld [vmem:[%s3 + $0x28] sm:$0xff]
    %v277 = vld [vmem:[#allocation3] sm:$0x1]
    %v279 = vlaneseq
    %v280 = vshrl.u32 %v279, 7
    %v281 = vsub.s32 0, %v280
    %v282 = vrot.slane %v277, %v281
    %vm284 = vcmask 392192
    %v286 = vsel %vm284, %v269, 0
    %v289 = vsel %vm284, %v270, 0
    %291 = vmatprep.subr.mxu0 0.0
    %292 = vmatpush1.msra.mxu0 0.0
    %293 = vmatprep.subr.mxu0 0.0
    %294 = vmatpush1.msra.mxu0 0.0
    %295 = vmatprep.subr.mxu0 0.0
    %296 = vmatpush1.msra.mxu0 0.0
    %297 = vmatprep.subr.mxu0 0.0
    %298 = vmatpush1.msra.mxu0 0.0
    %299 = vmatprep.subr.mxu0 0.0
    %300 = vmatpush1.msra.mxu0 0.0
    %301 = vmatprep.subr.mxu0 0.0
    %302 = vmatpush1.msra.mxu0 0.0
    %303 = vmatprep.subr.mxu0 0.0
    %304 = vmatpush1.msra.mxu0 0.0
    %305 = vmatprep.subr.mxu0 0.0
    %306 = vmatpush1.msra.mxu0 0.0
    %307 = vmatprep.subr.mxu0 0.0
    %308 = vmatpush1.msra.mxu0 0.0
    %309 = vmatprep.subr.mxu0 0.0
    %310 = vmatpush1.msra.mxu0 0.0
    %311 = vmatprep.subr.mxu0 0.0
    %312 = vmatpush1.msra.mxu0 %v276
    %313 = vmatprep.subr.mxu0 0.0
    %314 = vmatpush1.msra.mxu0 %v275
    %315 = vmatprep.subr.mxu0 0.0
    %316 = vmatpush1.msra.mxu0 %v274
    %317 = vmatprep.subr.mxu0 0.0
    %318 = vmatpush1.msra.mxu0 %v273
    %319 = vmatprep.subr.mxu0 0.0
    %320 = vmatpush1.msra.mxu0 %v272
    %321 = vmatprep.subr.mxu0 0.0
    %322 = vmatpush1.msra.mxu0 %v271
    %323 = vmatprep.subr.mxu0 0.0
    %324 = vmatpush2.msra.mxu0 0.0
    %325 = vmatprep.subr.mxu0 0.0
    %326 = vmatpush2.msra.mxu0 0.0
    %327 = vmatprep.subr.mxu0 0.0
    %328 = vmatpush2.msra.mxu0 0.0
    %329 = vmatprep.subr.mxu0 0.0
    %330 = vmatpush2.msra.mxu0 0.0
    %331 = vmatprep.subr.mxu0 0.0
    %332 = vmatpush2.msra.mxu0 0.0
    %333 = vmatprep.subr.mxu0 0.0
    %334 = vmatpush2.msra.mxu0 0.0
    %335 = vmatprep.subr.mxu0 0.0
    %336 = vmatpush2.msra.mxu0 0.0
    %337 = vmatprep.subr.mxu0 0.0
    %338 = vmatpush2.msra.mxu0 0.0
    %339 = vmatprep.subr.mxu0 0.0
    %340 = vmatpush2.msra.mxu0 0.0
    %341 = vmatprep.subr.mxu0 0.0
    %342 = vmatpush2.msra.mxu0 0.0
    %343 = vmatprep.subr.mxu0 0.0
    %344 = vmatpush2.msra.mxu0 0.0
    %345 = vmatprep.subr.mxu0 0.0
    %346 = vmatpush2.msra.mxu0 0.0
    %347 = vmatprep.subr.mxu0 0.0
    %348 = vmatpush2.msra.mxu0 0.0
    %349 = vmatprep.subr.mxu0 0.0
    %350 = vmatpush2.msra.mxu0 0.0
    %351 = vmatprep.subr.mxu0 0.0
    %352 = vmatpush2.msra.mxu0 0.0
    %353 = vmatprep.subr.mxu0 0.0
    %354 = vmatpush2.msra.mxu0 0.0
    %355 = vmatprep.mubr.f32.mxu0 0.0
    %356 = vmatmul.mubr.f32.gmra.mxu0 %v286
    %v357 = vpop.f32.mrf.mxu0
    %v358 = vadd.f32 %v282, %v357
    %v359 = vpop.f32.mrf.mxu0
    %360 = vmatprep.mubr.f32.mxu0 0.0
    %361 = vmatmul.mubr.f32.gmra.mxu0 %v289
    %v362 = vpop.f32.mrf.mxu0
    %v363 = vadd.f32 %v282, %v362
    %v364 = vpop.f32.mrf.mxu0
    %365 = vdwg.mxu0
    %v366 = vmax.f32 %v358, 0.0
    %v367 = vmax.f32 %v363, 0.0
    %v368 = vld [vmem:[#allocation5] sm:$0xff]
    %v369 = vld [vmem:[#allocation7] sm:$0x1]
    %v371 = vlaneseq
    %v372 = vshrl.u32 %v371, 7
    %v373 = vsub.s32 0, %v372
    %v374 = vrot.slane %v369, %v373
    %vm376 = vcmask 64512
    %v378 = vsel %vm376, %v366, 0
    %v381 = vsel %vm376, %v367, 0
    %383 = vmatprep.subr.mxu0 0.0
    %384 = vmatpush1.msra.mxu0 0.0
    %385 = vmatprep.subr.mxu0 0.0
    %386 = vmatpush1.msra.mxu0 0.0
    %387 = vmatprep.subr.mxu0 0.0
    %388 = vmatpush1.msra.mxu0 0.0
    %389 = vmatprep.subr.mxu0 0.0
    %390 = vmatpush1.msra.mxu0 0.0
    %391 = vmatprep.subr.mxu0 0.0
    %392 = vmatpush1.msra.mxu0 0.0
    %393 = vmatprep.subr.mxu0 0.0
    %394 = vmatpush1.msra.mxu0 0.0
    %395 = vmatprep.subr.mxu0 0.0
    %396 = vmatpush1.msra.mxu0 0.0
    %397 = vmatprep.subr.mxu0 0.0
    %398 = vmatpush1.msra.mxu0 0.0
    %399 = vmatprep.subr.mxu0 0.0
    %400 = vmatpush1.msra.mxu0 0.0
    %401 = vmatprep.subr.mxu0 0.0
    %402 = vmatpush1.msra.mxu0 0.0
    %403 = vmatprep.subr.mxu0 0.0
    %404 = vmatpush1.msra.mxu0 0.0
    %405 = vmatprep.subr.mxu0 0.0
    %406 = vmatpush1.msra.mxu0 0.0
    %407 = vmatprep.subr.mxu0 0.0
    %408 = vmatpush1.msra.mxu0 0.0
    %409 = vmatprep.subr.mxu0 0.0
    %410 = vmatpush1.msra.mxu0 0.0
    %411 = vmatprep.subr.mxu0 0.0
    %412 = vmatpush1.msra.mxu0 0.0
    %413 = vmatprep.subr.mxu0 0.0
    %414 = vmatpush1.msra.mxu0 %v368
    %415 = vmatprep.subr.mxu0 0.0
    %416 = vmatpush2.msra.mxu0 0.0
    %417 = vmatprep.subr.mxu0 0.0
    %418 = vmatpush2.msra.mxu0 0.0
    %419 = vmatprep.subr.mxu0 0.0
    %420 = vmatpush2.msra.mxu0 0.0
    %421 = vmatprep.subr.mxu0 0.0
    %422 = vmatpush2.msra.mxu0 0.0
    %423 = vmatprep.subr.mxu0 0.0
    %424 = vmatpush2.msra.mxu0 0.0
    %425 = vmatprep.subr.mxu0 0.0
    %426 = vmatpush2.msra.mxu0 0.0
    %427 = vmatprep.subr.mxu0 0.0
    %428 = vmatpush2.msra.mxu0 0.0
    %429 = vmatprep.subr.mxu0 0.0
    %430 = vmatpush2.msra.mxu0 0.0
    %431 = vmatprep.subr.mxu0 0.0
    %432 = vmatpush2.msra.mxu0 0.0
    %433 = vmatprep.subr.mxu0 0.0
    %434 = vmatpush2.msra.mxu0 0.0
    %435 = vmatprep.subr.mxu0 0.0
    %436 = vmatpush2.msra.mxu0 0.0
    %437 = vmatprep.subr.mxu0 0.0
    %438 = vmatpush2.msra.mxu0 0.0
    %439 = vmatprep.subr.mxu0 0.0
    %440 = vmatpush2.msra.mxu0 0.0
    %441 = vmatprep.subr.mxu0 0.0
    %442 = vmatpush2.msra.mxu0 0.0
    %443 = vmatprep.subr.mxu0 0.0
    %444 = vmatpush2.msra.mxu0 0.0
    %445 = vmatprep.subr.mxu0 0.0
    %446 = vmatpush2.msra.mxu0 0.0
    %447 = vmatprep.mubr.f32.mxu0 0.0
    %448 = vmatmul.mubr.f32.gmra.mxu0 %v378
    %v449 = vpop.f32.mrf.mxu0
    %v450 = vadd.f32 %v374, %v449
    %v451 = vpop.f32.mrf.mxu0
    %452 = vmatprep.mubr.f32.mxu0 0.0
    %453 = vmatmul.mubr.f32.gmra.mxu0 %v381
    %v454 = vpop.f32.mrf.mxu0
    %v455 = vadd.f32 %v374, %v454
    %v456 = vpop.f32.mrf.mxu0
    %457 = vdwg.mxu0
    %v458 = vld [vmem:[#allocation8] sm:$0xff]
    %v459 = vld [vmem:[#allocation10] sm:$0x1]
    %v461 = vlaneseq
    %v462 = vshrl.u32 %v461, 7
    %v463 = vsub.s32 0, %v462
    %v464 = vrot.slane %v459, %v463
    %466 = vmatprep.subr.mxu0 0.0
    %467 = vmatpush1.msra.mxu0 0.0
    %468 = vmatprep.subr.mxu0 0.0
    %469 = vmatpush1.msra.mxu0 0.0
    %470 = vmatprep.subr.mxu0 0.0
    %471 = vmatpush1.msra.mxu0 0.0
    %472 = vmatprep.subr.mxu0 0.0
    %473 = vmatpush1.msra.mxu0 0.0
    %474 = vmatprep.subr.mxu0 0.0
    %475 = vmatpush1.msra.mxu0 0.0
    %476 = vmatprep.subr.mxu0 0.0
    %477 = vmatpush1.msra.mxu0 0.0
    %478 = vmatprep.subr.mxu0 0.0
    %479 = vmatpush1.msra.mxu0 0.0
    %480 = vmatprep.subr.mxu0 0.0
    %481 = vmatpush1.msra.mxu0 0.0
    %482 = vmatprep.subr.mxu0 0.0
    %483 = vmatpush1.msra.mxu0 0.0
    %484 = vmatprep.subr.mxu0 0.0
    %485 = vmatpush1.msra.mxu0 0.0
    %486 = vmatprep.subr.mxu0 0.0
    %487 = vmatpush1.msra.mxu0 0.0
    %488 = vmatprep.subr.mxu0 0.0
    %489 = vmatpush1.msra.mxu0 0.0
    %490 = vmatprep.subr.mxu0 0.0
    %491 = vmatpush1.msra.mxu0 0.0
    %492 = vmatprep.subr.mxu0 0.0
    %493 = vmatpush1.msra.mxu0 0.0
    %494 = vmatprep.subr.mxu0 0.0
    %495 = vmatpush1.msra.mxu0 0.0
    %496 = vmatprep.subr.mxu0 0.0
    %497 = vmatpush1.msra.mxu0 %v458
    %498 = vmatprep.subr.mxu0 0.0
    %499 = vmatpush2.msra.mxu0 0.0
    %500 = vmatprep.subr.mxu0 0.0
    %501 = vmatpush2.msra.mxu0 0.0
    %502 = vmatprep.subr.mxu0 0.0
    %503 = vmatpush2.msra.mxu0 0.0
    %504 = vmatprep.subr.mxu0 0.0
    %505 = vmatpush2.msra.mxu0 0.0
    %506 = vmatprep.subr.mxu0 0.0
    %507 = vmatpush2.msra.mxu0 0.0
    %508 = vmatprep.subr.mxu0 0.0
    %509 = vmatpush2.msra.mxu0 0.0
    %510 = vmatprep.subr.mxu0 0.0
    %511 = vmatpush2.msra.mxu0 0.0
    %512 = vmatprep.subr.mxu0 0.0
    %513 = vmatpush2.msra.mxu0 0.0
    %514 = vmatprep.subr.mxu0 0.0
    %515 = vmatpush2.msra.mxu0 0.0
    %516 = vmatprep.subr.mxu0 0.0
    %517 = vmatpush2.msra.mxu0 0.0
    %518 = vmatprep.subr.mxu0 0.0
    %519 = vmatpush2.msra.mxu0 0.0
    %520 = vmatprep.subr.mxu0 0.0
    %521 = vmatpush2.msra.mxu0 0.0
    %522 = vmatprep.subr.mxu0 0.0
    %523 = vmatpush2.msra.mxu0 0.0
    %524 = vmatprep.subr.mxu0 0.0
    %525 = vmatpush2.msra.mxu0 0.0
    %526 = vmatprep.subr.mxu0 0.0
    %527 = vmatpush2.msra.mxu0 0.0
    %528 = vmatprep.subr.mxu0 0.0
    %529 = vmatpush2.msra.mxu0 0.0
    %530 = vmatprep.mubr.f32.mxu0 0.0
    %531 = vmatmul.mubr.f32.gmra.mxu0 %v378
    %v532 = vpop.f32.mrf.mxu0
    %v533 = vadd.f32 %v464, %v532
    %v534 = vpop.f32.mrf.mxu0
    %535 = vmatprep.mubr.f32.mxu0 0.0
    %536 = vmatmul.mubr.f32.gmra.mxu0 %v381
    %v537 = vpop.f32.mrf.mxu0
    %v538 = vadd.f32 %v464, %v537
    %v539 = vpop.f32.mrf.mxu0
    %540 = vdwg.mxu0
    %v541 = vld [vmem:[#allocation11] sm:$0xff]
    %v542 = vld [vmem:[#allocation13] sm:$0x1]
    %v544 = vlaneseq
    %v545 = vshrl.u32 %v544, 7
    %v546 = vsub.s32 0, %v545
    %v547 = vrot.slane %v542, %v546
    %549 = vmatprep.subr.mxu0 0.0
    %550 = vmatpush1.msra.mxu0 0.0
    %551 = vmatprep.subr.mxu0 0.0
    %552 = vmatpush1.msra.mxu0 0.0
    %553 = vmatprep.subr.mxu0 0.0
    %554 = vmatpush1.msra.mxu0 0.0
    %555 = vmatprep.subr.mxu0 0.0
    %556 = vmatpush1.msra.mxu0 0.0
    %557 = vmatprep.subr.mxu0 0.0
    %558 = vmatpush1.msra.mxu0 0.0
    %559 = vmatprep.subr.mxu0 0.0
    %560 = vmatpush1.msra.mxu0 0.0
    %561 = vmatprep.subr.mxu0 0.0
    %562 = vmatpush1.msra.mxu0 0.0
    %563 = vmatprep.subr.mxu0 0.0
    %564 = vmatpush1.msra.mxu0 0.0
    %565 = vmatprep.subr.mxu0 0.0
    %566 = vmatpush1.msra.mxu0 0.0
    %567 = vmatprep.subr.mxu0 0.0
    %568 = vmatpush1.msra.mxu0 0.0
    %569 = vmatprep.subr.mxu0 0.0
    %570 = vmatpush1.msra.mxu0 0.0
    %571 = vmatprep.subr.mxu0 0.0
    %572 = vmatpush1.msra.mxu0 0.0
    %573 = vmatprep.subr.mxu0 0.0
    %574 = vmatpush1.msra.mxu0 0.0
    %575 = vmatprep.subr.mxu0 0.0
    %576 = vmatpush1.msra.mxu0 0.0
    %577 = vmatprep.subr.mxu0 0.0
    %578 = vmatpush1.msra.mxu0 0.0
    %579 = vmatprep.subr.mxu0 0.0
    %580 = vmatpush1.msra.mxu0 %v541
    %581 = vmatprep.subr.mxu0 0.0
    %582 = vmatpush2.msra.mxu0 0.0
    %583 = vmatprep.subr.mxu0 0.0
    %584 = vmatpush2.msra.mxu0 0.0
    %585 = vmatprep.subr.mxu0 0.0
    %586 = vmatpush2.msra.mxu0 0.0
    %587 = vmatprep.subr.mxu0 0.0
    %588 = vmatpush2.msra.mxu0 0.0
    %589 = vmatprep.subr.mxu0 0.0
    %590 = vmatpush2.msra.mxu0 0.0
    %591 = vmatprep.subr.mxu0 0.0
    %592 = vmatpush2.msra.mxu0 0.0
    %593 = vmatprep.subr.mxu0 0.0
    %594 = vmatpush2.msra.mxu0 0.0
    %595 = vmatprep.subr.mxu0 0.0
    %596 = vmatpush2.msra.mxu0 0.0
    %597 = vmatprep.subr.mxu0 0.0
    %598 = vmatpush2.msra.mxu0 0.0
    %599 = vmatprep.subr.mxu0 0.0
    %600 = vmatpush2.msra.mxu0 0.0
    %601 = vmatprep.subr.mxu0 0.0
    %602 = vmatpush2.msra.mxu0 0.0
    %603 = vmatprep.subr.mxu0 0.0
    %604 = vmatpush2.msra.mxu0 0.0
    %605 = vmatprep.subr.mxu0 0.0
    %606 = vmatpush2.msra.mxu0 0.0
    %607 = vmatprep.subr.mxu0 0.0
    %608 = vmatpush2.msra.mxu0 0.0
    %609 = vmatprep.subr.mxu0 0.0
    %610 = vmatpush2.msra.mxu0 0.0
    %611 = vmatprep.subr.mxu0 0.0
    %612 = vmatpush2.msra.mxu0 0.0
    %613 = vmatprep.mubr.f32.mxu0 0.0
    %614 = vmatmul.mubr.f32.gmra.mxu0 %v378
    %v615 = vpop.f32.mrf.mxu0
    %v616 = vadd.f32 %v547, %v615
    %v617 = vpop.f32.mrf.mxu0
    %618 = vmatprep.mubr.f32.mxu0 0.0
    %619 = vmatmul.mubr.f32.gmra.mxu0 %v381
    %v620 = vpop.f32.mrf.mxu0
    %v621 = vadd.f32 %v547, %v620
    %v622 = vpop.f32.mrf.mxu0
    %623 = vdwg.mxu0
    %v624 = vld [vmem:[%s1] sm:$0xff]
    %v625 = vld [vmem:[%s1 + $0x8] sm:$0xff]
    %v626 = vld [vmem:[%s2] sm:$0x1]
    %v627 = vlaneseq
    %v628 = vshrl.u32 %v627, 7
    %v629 = vsub.s32 0, %v628
    %v630 = vrot.slane %v626, %v629
    %v631 = vmul.f32 %v533, %v630
    %v632 = vmul.f32 %v538, %v630
    %v634 = vsel %vm376, %v450, 0
    %v637 = vsel %vm376, %v455, 0
    %v640 = vsel %vm376, %v631, 0
    %v643 = vsel %vm376, %v632, 0
    %645 = vmatprep.subr.mxu0 0.0
    %646 = vmatpush1.xpose.msra.mxu0 0.0
    %647 = vmatprep.subr.mxu0 0.0
    %648 = vmatpush1.xpose.msra.mxu0 0.0
    %649 = vmatprep.subr.mxu0 0.0
    %650 = vmatpush1.xpose.msra.mxu0 0.0
    %651 = vmatprep.subr.mxu0 0.0
    %652 = vmatpush1.xpose.msra.mxu0 0.0
    %653 = vmatprep.subr.mxu0 0.0
    %654 = vmatpush1.xpose.msra.mxu0 0.0
    %655 = vmatprep.subr.mxu0 0.0
    %656 = vmatpush1.xpose.msra.mxu0 0.0
    %657 = vmatprep.subr.mxu0 0.0
    %658 = vmatpush1.xpose.msra.mxu0 0.0
    %659 = vmatprep.subr.mxu0 0.0
    %660 = vmatpush1.xpose.msra.mxu0 0.0
    %661 = vmatprep.subr.mxu0 0.0
    %662 = vmatpush1.xpose.msra.mxu0 0.0
    %663 = vmatprep.subr.mxu0 0.0
    %664 = vmatpush1.xpose.msra.mxu0 0.0
    %665 = vmatprep.subr.mxu0 0.0
    %666 = vmatpush1.xpose.msra.mxu0 0.0
    %667 = vmatprep.subr.mxu0 0.0
    %668 = vmatpush1.xpose.msra.mxu0 0.0
    %669 = vmatprep.subr.mxu0 0.0
    %670 = vmatpush1.xpose.msra.mxu0 0.0
    %671 = vmatprep.subr.mxu0 0.0
    %672 = vmatpush1.xpose.msra.mxu0 0.0
    %673 = vmatprep.subr.mxu0 0.0
    %674 = vmatpush1.xpose.msra.mxu0 %v643
    %675 = vmatprep.subr.mxu0 0.0
    %676 = vmatpush1.xpose.msra.mxu0 %v640
    %677 = vmatprep.subr.mxu0 0.0
    %678 = vmatpush2.xpose.msra.mxu0 0.0
    %679 = vmatprep.subr.mxu0 0.0
    %680 = vmatpush2.xpose.msra.mxu0 0.0
    %681 = vmatprep.subr.mxu0 0.0
    %682 = vmatpush2.xpose.msra.mxu0 0.0
    %683 = vmatprep.subr.mxu0 0.0
    %684 = vmatpush2.xpose.msra.mxu0 0.0
    %685 = vmatprep.subr.mxu0 0.0
    %686 = vmatpush2.xpose.msra.mxu0 0.0
    %687 = vmatprep.subr.mxu0 0.0
    %688 = vmatpush2.xpose.msra.mxu0 0.0
    %689 = vmatprep.subr.mxu0 0.0
    %690 = vmatpush2.xpose.msra.mxu0 0.0
    %691 = vmatprep.subr.mxu0 0.0
    %692 = vmatpush2.xpose.msra.mxu0 0.0
    %693 = vmatprep.subr.mxu0 0.0
    %694 = vmatpush2.xpose.msra.mxu0 0.0
    %695 = vmatprep.subr.mxu0 0.0
    %696 = vmatpush2.xpose.msra.mxu0 0.0
    %697 = vmatprep.subr.mxu0 0.0
    %698 = vmatpush2.xpose.msra.mxu0 0.0
    %699 = vmatprep.subr.mxu0 0.0
    %700 = vmatpush2.xpose.msra.mxu0 0.0
    %701 = vmatprep.subr.mxu0 0.0
    %702 = vmatpush2.xpose.msra.mxu0 0.0
    %703 = vmatprep.subr.mxu0 0.0
    %704 = vmatpush2.xpose.msra.mxu0 0.0
    %705 = vmatprep.subr.mxu0 0.0
    %706 = vmatpush2.xpose.msra.mxu0 0.0
    %707 = vmatprep.subr.mxu0 0.0
    %708 = vmatpush2.xpose.msra.mxu0 0.0
    %709 = vmatprep.mubr.f32.mxu0 0.0
    %710 = vmatmul.mubr.f32.gmra.mxu0 %v634
    %v711 = vpop.f32.mrf.mxu0
    %v712 = vadd.f32 0.0, %v711
    %v713 = vpop.f32.mrf.mxu0
    %714 = vmatprep.mubr.f32.mxu0 0.0
    %715 = vmatmul.mubr.f32.gmra.mxu0 %v637
    %v716 = vpop.f32.mrf.mxu0
    %v717 = vadd.f32 0.0, %v716
    %v718 = vpop.f32.mrf.mxu0
    %719 = vdwg.mxu0
    %v720 = vmul.f32 %v712, 0.70710677
    %v721 = vmul.f32 %v717, 0.70710677
    %v722 = vadd.f32 %v720, %v624
    %v723 = vadd.f32 %v721, %v625
    %vm724 = vcmask 130048
    %v725 = vsel %vm724, %v722, -inf
    %726 = vmax.xlane.f32.xlu0 %v725
    %v727 = vpop.xlane.xlu0 %726
    %v728 = vsel %vm724, %v723, -inf
    %729 = vmax.xlane.f32.xlu0 %v728
    %v730 = vpop.xlane.xlu0 %729
    %v731 = vsub.f32 %v722, %v727
    %v732 = vsub.f32 %v723, %v730
    %v733 = vmul.f32 %v731, 1.442695
    %v734 = vpow.pop %v733
    %v735 = vmul.f32 %v732, 1.442695
    %v736 = vpow.pop %v735
    %v737 = vsel %vm724, %v734, 0.0
    %738 = vadd.xlane.f32.xlu0 %v737
    %v739 = vpop.xlane.xlu0 %738
    %v740 = vsel %vm724, %v736, 0.0
    %741 = vadd.xlane.f32.xlu0 %v740
    %v742 = vpop.xlane.xlu0 %741
    %v743 = vrcp.pop %v739
    %v744 = vmul.f32 %v734, %v743
    %v745 = vrcp.pop %v742
    %v746 = vmul.f32 %v736, %v745
    %v748 = vsel %vm724, %v744, 0
    %v751 = vsel %vm724, %v746, 0
    %753 = vmatprep.subr.mxu0 0.0
    %754 = vmatpush1.msra.mxu0 0.0
    %755 = vmatprep.subr.mxu0 0.0
    %756 = vmatpush1.msra.mxu0 0.0
    %757 = vmatprep.subr.mxu0 0.0
    %758 = vmatpush1.msra.mxu0 0.0
    %759 = vmatprep.subr.mxu0 0.0
    %760 = vmatpush1.msra.mxu0 0.0
    %761 = vmatprep.subr.mxu0 0.0
    %762 = vmatpush1.msra.mxu0 0.0
    %763 = vmatprep.subr.mxu0 0.0
    %764 = vmatpush1.msra.mxu0 0.0
    %765 = vmatprep.subr.mxu0 0.0
    %766 = vmatpush1.msra.mxu0 0.0
    %767 = vmatprep.subr.mxu0 0.0
    %768 = vmatpush1.msra.mxu0 0.0
    %769 = vmatprep.subr.mxu0 0.0
    %770 = vmatpush1.msra.mxu0 0.0
    %771 = vmatprep.subr.mxu0 0.0
    %772 = vmatpush1.msra.mxu0 0.0
    %773 = vmatprep.subr.mxu0 0.0
    %774 = vmatpush1.msra.mxu0 0.0
    %775 = vmatprep.subr.mxu0 0.0
    %776 = vmatpush1.msra.mxu0 0.0
    %777 = vmatprep.subr.mxu0 0.0
    %778 = vmatpush1.msra.mxu0 0.0
    %779 = vmatprep.subr.mxu0 0.0
    %780 = vmatpush1.msra.mxu0 0.0
    %781 = vmatprep.subr.mxu0 0.0
    %782 = vmatpush1.msra.mxu0 %v621
    %783 = vmatprep.subr.mxu0 0.0
    %784 = vmatpush1.msra.mxu0 %v616
    %785 = vmatprep.subr.mxu0 0.0
    %786 = vmatpush2.msra.mxu0 0.0
    %787 = vmatprep.subr.mxu0 0.0
    %788 = vmatpush2.msra.mxu0 0.0
    %789 = vmatprep.subr.mxu0 0.0
    %790 = vmatpush2.msra.mxu0 0.0
    %791 = vmatprep.subr.mxu0 0.0
    %792 = vmatpush2.msra.mxu0 0.0
    %793 = vmatprep.subr.mxu0 0.0
    %794 = vmatpush2.msra.mxu0 0.0
    %795 = vmatprep.subr.mxu0 0.0
    %796 = vmatpush2.msra.mxu0 0.0
    %797 = vmatprep.subr.mxu0 0.0
    %798 = vmatpush2.msra.mxu0 0.0
    %799 = vmatprep.subr.mxu0 0.0
    %800 = vmatpush2.msra.mxu0 0.0
    %801 = vmatprep.subr.mxu0 0.0
    %802 = vmatpush2.msra.mxu0 0.0
    %803 = vmatprep.subr.mxu0 0.0
    %804 = vmatpush2.msra.mxu0 0.0
    %805 = vmatprep.subr.mxu0 0.0
    %806 = vmatpush2.msra.mxu0 0.0
    %807 = vmatprep.subr.mxu0 0.0
    %808 = vmatpush2.msra.mxu0 0.0
    %809 = vmatprep.subr.mxu0 0.0
    %810 = vmatpush2.msra.mxu0 0.0
    %811 = vmatprep.subr.mxu0 0.0
    %812 = vmatpush2.msra.mxu0 0.0
    %813 = vmatprep.subr.mxu0 0.0
    %814 = vmatpush2.msra.mxu0 0.0
    %815 = vmatprep.subr.mxu0 0.0
    %816 = vmatpush2.msra.mxu0 0.0
    %817 = vmatprep.mubr.f32.mxu0 0.0
    %818 = vmatmul.mubr.f32.gmra.mxu0 %v748
    %v819 = vpop.f32.mrf.mxu0
    %v820 = vadd.f32 0.0, %v819
    %v821 = vpop.f32.mrf.mxu0
    %822 = vmatprep.mubr.f32.mxu0 0.0
    %823 = vmatmul.mubr.f32.gmra.mxu0 %v751
    %v824 = vpop.f32.mrf.mxu0
    %v825 = vadd.f32 0.0, %v824
    %v826 = vpop.f32.mrf.mxu0
    %827 = vdwg.mxu0
    %v828 = vmul.f32 %v820, %v630
    %v829 = vmul.f32 %v825, %v630
    %v830 = vadd.f32 %v828, 0.0
    %v831 = vadd.f32 %v829, 0.0
    %v832 = vld [vmem:[%s2 + $0x1] sm:$0x1]
    %v833 = vlaneseq
    %v834 = vshrl.u32 %v833, 7
    %v835 = vsub.s32 0, %v834
    %v836 = vrot.slane %v832, %v835
    %v837 = vmul.f32 %v533, %v836
    %v838 = vmul.f32 %v538, %v836
    %v840 = vsel %vm376, %v837, 0
    %v843 = vsel %vm376, %v838, 0
    %845 = vmatprep.subr.mxu0 0.0
    %846 = vmatpush1.xpose.msra.mxu0 0.0
    %847 = vmatprep.subr.mxu0 0.0
    %848 = vmatpush1.xpose.msra.mxu0 0.0
    %849 = vmatprep.subr.mxu0 0.0
    %850 = vmatpush1.xpose.msra.mxu0 0.0
    %851 = vmatprep.subr.mxu0 0.0
    %852 = vmatpush1.xpose.msra.mxu0 0.0
    %853 = vmatprep.subr.mxu0 0.0
    %854 = vmatpush1.xpose.msra.mxu0 0.0
    %855 = vmatprep.subr.mxu0 0.0
    %856 = vmatpush1.xpose.msra.mxu0 0.0
    %857 = vmatprep.subr.mxu0 0.0
    %858 = vmatpush1.xpose.msra.mxu0 0.0
    %859 = vmatprep.subr.mxu0 0.0
    %860 = vmatpush1.xpose.msra.mxu0 0.0
    %861 = vmatprep.subr.mxu0 0.0
    %862 = vmatpush1.xpose.msra.mxu0 0.0
    %863 = vmatprep.subr.mxu0 0.0
    %864 = vmatpush1.xpose.msra.mxu0 0.0
    %865 = vmatprep.subr.mxu0 0.0
    %866 = vmatpush1.xpose.msra.mxu0 0.0
    %867 = vmatprep.subr.mxu0 0.0
    %868 = vmatpush1.xpose.msra.mxu0 0.0
    %869 = vmatprep.subr.mxu0 0.0
    %870 = vmatpush1.xpose.msra.mxu0 0.0
    %871 = vmatprep.subr.mxu0 0.0
    %872 = vmatpush1.xpose.msra.mxu0 0.0
    %873 = vmatprep.subr.mxu0 0.0
    %874 = vmatpush1.xpose.msra.mxu0 %v843
    %875 = vmatprep.subr.mxu0 0.0
    %876 = vmatpush1.xpose.msra.mxu0 %v840
    %877 = vmatprep.subr.mxu0 0.0
    %878 = vmatpush2.xpose.msra.mxu0 0.0
    %879 = vmatprep.subr.mxu0 0.0
    %880 = vmatpush2.xpose.msra.mxu0 0.0
    %881 = vmatprep.subr.mxu0 0.0
    %882 = vmatpush2.xpose.msra.mxu0 0.0
    %883 = vmatprep.subr.mxu0 0.0
    %884 = vmatpush2.xpose.msra.mxu0 0.0
    %885 = vmatprep.subr.mxu0 0.0
    %886 = vmatpush2.xpose.msra.mxu0 0.0
    %887 = vmatprep.subr.mxu0 0.0
    %888 = vmatpush2.xpose.msra.mxu0 0.0
    %889 = vmatprep.subr.mxu0 0.0
    %890 = vmatpush2.xpose.msra.mxu0 0.0
    %891 = vmatprep.subr.mxu0 0.0
    %892 = vmatpush2.xpose.msra.mxu0 0.0
    %893 = vmatprep.subr.mxu0 0.0
    %894 = vmatpush2.xpose.msra.mxu0 0.0
    %895 = vmatprep.subr.mxu0 0.0
    %896 = vmatpush2.xpose.msra.mxu0 0.0
    %897 = vmatprep.subr.mxu0 0.0
    %898 = vmatpush2.xpose.msra.mxu0 0.0
    %899 = vmatprep.subr.mxu0 0.0
    %900 = vmatpush2.xpose.msra.mxu0 0.0
    %901 = vmatprep.subr.mxu0 0.0
    %902 = vmatpush2.xpose.msra.mxu0 0.0
    %903 = vmatprep.subr.mxu0 0.0
    %904 = vmatpush2.xpose.msra.mxu0 0.0
    %905 = vmatprep.subr.mxu0 0.0
    %906 = vmatpush2.xpose.msra.mxu0 0.0
    %907 = vmatprep.subr.mxu0 0.0
    %908 = vmatpush2.xpose.msra.mxu0 0.0
    %909 = vmatprep.mubr.f32.mxu0 0.0
    %910 = vmatmul.mubr.f32.gmra.mxu0 %v634
    %v911 = vpop.f32.mrf.mxu0
    %v912 = vadd.f32 0.0, %v911
    %v913 = vpop.f32.mrf.mxu0
    %914 = vmatprep.mubr.f32.mxu0 0.0
    %915 = vmatmul.mubr.f32.gmra.mxu0 %v637
    %v916 = vpop.f32.mrf.mxu0
    %v917 = vadd.f32 0.0, %v916
    %v918 = vpop.f32.mrf.mxu0
    %919 = vdwg.mxu0
    %v920 = vmul.f32 %v912, 0.70710677
    %v921 = vmul.f32 %v917, 0.70710677
    %v922 = vadd.f32 %v920, %v624
    %v923 = vadd.f32 %v921, %v625
    %v924 = vsel %vm724, %v922, -inf
    %925 = vmax.xlane.f32.xlu0 %v924
    %v926 = vpop.xlane.xlu0 %925
    %v927 = vsel %vm724, %v923, -inf
    %928 = vmax.xlane.f32.xlu0 %v927
    %v929 = vpop.xlane.xlu0 %928
    %v930 = vsub.f32 %v922, %v926
    %v931 = vsub.f32 %v923, %v929
    %v932 = vmul.f32 %v930, 1.442695
    %v933 = vpow.pop %v932
    %v934 = vmul.f32 %v931, 1.442695
    %v935 = vpow.pop %v934
    %v936 = vsel %vm724, %v933, 0.0
    %937 = vadd.xlane.f32.xlu0 %v936
    %v938 = vpop.xlane.xlu0 %937
    %v939 = vsel %vm724, %v935, 0.0
    %940 = vadd.xlane.f32.xlu0 %v939
    %v941 = vpop.xlane.xlu0 %940
    %v942 = vrcp.pop %v938
    %v943 = vmul.f32 %v933, %v942
    %v944 = vrcp.pop %v941
    %v945 = vmul.f32 %v935, %v944
    %v947 = vsel %vm724, %v943, 0
    %v950 = vsel %vm724, %v945, 0
    %952 = vmatprep.subr.mxu0 0.0
    %953 = vmatpush1.msra.mxu0 0.0
    %954 = vmatprep.subr.mxu0 0.0
    %955 = vmatpush1.msra.mxu0 0.0
    %956 = vmatprep.subr.mxu0 0.0
    %957 = vmatpush1.msra.mxu0 0.0
    %958 = vmatprep.subr.mxu0 0.0
    %959 = vmatpush1.msra.mxu0 0.0
    %960 = vmatprep.subr.mxu0 0.0
    %961 = vmatpush1.msra.mxu0 0.0
    %962 = vmatprep.subr.mxu0 0.0
    %963 = vmatpush1.msra.mxu0 0.0
    %964 = vmatprep.subr.mxu0 0.0
    %965 = vmatpush1.msra.mxu0 0.0
    %966 = vmatprep.subr.mxu0 0.0
    %967 = vmatpush1.msra.mxu0 0.0
    %968 = vmatprep.subr.mxu0 0.0
    %969 = vmatpush1.msra.mxu0 0.0
    %970 = vmatprep.subr.mxu0 0.0
    %971 = vmatpush1.msra.mxu0 0.0
    %972 = vmatprep.subr.mxu0 0.0
    %973 = vmatpush1.msra.mxu0 0.0
    %974 = vmatprep.subr.mxu0 0.0
    %975 = vmatpush1.msra.mxu0 0.0
    %976 = vmatprep.subr.mxu0 0.0
    %977 = vmatpush1.msra.mxu0 0.0
    %978 = vmatprep.subr.mxu0 0.0
    %979 = vmatpush1.msra.mxu0 0.0
    %980 = vmatprep.subr.mxu0 0.0
    %981 = vmatpush1.msra.mxu0 %v621
    %982 = vmatprep.subr.mxu0 0.0
    %983 = vmatpush1.msra.mxu0 %v616
    %984 = vmatprep.subr.mxu0 0.0
    %985 = vmatpush2.msra.mxu0 0.0
    %986 = vmatprep.subr.mxu0 0.0
    %987 = vmatpush2.msra.mxu0 0.0
    %988 = vmatprep.subr.mxu0 0.0
    %989 = vmatpush2.msra.mxu0 0.0
    %990 = vmatprep.subr.mxu0 0.0
    %991 = vmatpush2.msra.mxu0 0.0
    %992 = vmatprep.subr.mxu0 0.0
    %993 = vmatpush2.msra.mxu0 0.0
    %994 = vmatprep.subr.mxu0 0.0
    %995 = vmatpush2.msra.mxu0 0.0
    %996 = vmatprep.subr.mxu0 0.0
    %997 = vmatpush2.msra.mxu0 0.0
    %998 = vmatprep.subr.mxu0 0.0
    %999 = vmatpush2.msra.mxu0 0.0
    %1000 = vmatprep.subr.mxu0 0.0
    %1001 = vmatpush2.msra.mxu0 0.0
    %1002 = vmatprep.subr.mxu0 0.0
    %1003 = vmatpush2.msra.mxu0 0.0
    %1004 = vmatprep.subr.mxu0 0.0
    %1005 = vmatpush2.msra.mxu0 0.0
    %1006 = vmatprep.subr.mxu0 0.0
    %1007 = vmatpush2.msra.mxu0 0.0
    %1008 = vmatprep.subr.mxu0 0.0
    %1009 = vmatpush2.msra.mxu0 0.0
    %1010 = vmatprep.subr.mxu0 0.0
    %1011 = vmatpush2.msra.mxu0 0.0
    %1012 = vmatprep.subr.mxu0 0.0
    %1013 = vmatpush2.msra.mxu0 0.0
    %1014 = vmatprep.subr.mxu0 0.0
    %1015 = vmatpush2.msra.mxu0 0.0
    %1016 = vmatprep.mubr.f32.mxu0 0.0
    %1017 = vmatmul.mubr.f32.gmra.mxu0 %v947
    %v1018 = vpop.f32.mrf.mxu0
    %v1019 = vadd.f32 0.0, %v1018
    %v1020 = vpop.f32.mrf.mxu0
    %1021 = vmatprep.mubr.f32.mxu0 0.0
    %1022 = vmatmul.mubr.f32.gmra.mxu0 %v950
    %v1023 = vpop.f32.mrf.mxu0
    %v1024 = vadd.f32 0.0, %v1023
    %v1025 = vpop.f32.mrf.mxu0
    %1026 = vdwg.mxu0
    %v1027 = vmul.f32 %v1019, %v836
    %v1028 = vmul.f32 %v1024, %v836
    %v1029 = vadd.f32 %v830, %v1027
    %v1030 = vadd.f32 %v831, %v1028
    %v1031 = vld [vmem:[%s2 + $0x2] sm:$0x1]
    %v1032 = vlaneseq
    %v1033 = vshrl.u32 %v1032, 7
    %v1034 = vsub.s32 0, %v1033
    %v1035 = vrot.slane %v1031, %v1034
    %v1036 = vmul.f32 %v533, %v1035
    %v1037 = vmul.f32 %v538, %v1035
    %v1039 = vsel %vm376, %v1036, 0
    %v1042 = vsel %vm376, %v1037, 0
    %1044 = vmatprep.subr.mxu0 0.0
    %1045 = vmatpush1.xpose.msra.mxu0 0.0
    %1046 = vmatprep.subr.mxu0 0.0
    %1047 = vmatpush1.xpose.msra.mxu0 0.0
    %1048 = vmatprep.subr.mxu0 0.0
    %1049 = vmatpush1.xpose.msra.mxu0 0.0
    %1050 = vmatprep.subr.mxu0 0.0
    %1051 = vmatpush1.xpose.msra.mxu0 0.0
    %1052 = vmatprep.subr.mxu0 0.0
    %1053 = vmatpush1.xpose.msra.mxu0 0.0
    %1054 = vmatprep.subr.mxu0 0.0
    %1055 = vmatpush1.xpose.msra.mxu0 0.0
    %1056 = vmatprep.subr.mxu0 0.0
    %1057 = vmatpush1.xpose.msra.mxu0 0.0
    %1058 = vmatprep.subr.mxu0 0.0
    %1059 = vmatpush1.xpose.msra.mxu0 0.0
    %1060 = vmatprep.subr.mxu0 0.0
    %1061 = vmatpush1.xpose.msra.mxu0 0.0
    %1062 = vmatprep.subr.mxu0 0.0
    %1063 = vmatpush1.xpose.msra.mxu0 0.0
    %1064 = vmatprep.subr.mxu0 0.0
    %1065 = vmatpush1.xpose.msra.mxu0 0.0
    %1066 = vmatprep.subr.mxu0 0.0
    %1067 = vmatpush1.xpose.msra.mxu0 0.0
    %1068 = vmatprep.subr.mxu0 0.0
    %1069 = vmatpush1.xpose.msra.mxu0 0.0
    %1070 = vmatprep.subr.mxu0 0.0
    %1071 = vmatpush1.xpose.msra.mxu0 0.0
    %1072 = vmatprep.subr.mxu0 0.0
    %1073 = vmatpush1.xpose.msra.mxu0 %v1042
    %1074 = vmatprep.subr.mxu0 0.0
    %1075 = vmatpush1.xpose.msra.mxu0 %v1039
    %1076 = vmatprep.subr.mxu0 0.0
    %1077 = vmatpush2.xpose.msra.mxu0 0.0
    %1078 = vmatprep.subr.mxu0 0.0
    %1079 = vmatpush2.xpose.msra.mxu0 0.0
    %1080 = vmatprep.subr.mxu0 0.0
    %1081 = vmatpush2.xpose.msra.mxu0 0.0
    %1082 = vmatprep.subr.mxu0 0.0
    %1083 = vmatpush2.xpose.msra.mxu0 0.0
    %1084 = vmatprep.subr.mxu0 0.0
    %1085 = vmatpush2.xpose.msra.mxu0 0.0
    %1086 = vmatprep.subr.mxu0 0.0
    %1087 = vmatpush2.xpose.msra.mxu0 0.0
    %1088 = vmatprep.subr.mxu0 0.0
    %1089 = vmatpush2.xpose.msra.mxu0 0.0
    %1090 = vmatprep.subr.mxu0 0.0
    %1091 = vmatpush2.xpose.msra.mxu0 0.0
    %1092 = vmatprep.subr.mxu0 0.0
    %1093 = vmatpush2.xpose.msra.mxu0 0.0
    %1094 = vmatprep.subr.mxu0 0.0
    %1095 = vmatpush2.xpose.msra.mxu0 0.0
    %1096 = vmatprep.subr.mxu0 0.0
    %1097 = vmatpush2.xpose.msra.mxu0 0.0
    %1098 = vmatprep.subr.mxu0 0.0
    %1099 = vmatpush2.xpose.msra.mxu0 0.0
    %1100 = vmatprep.subr.mxu0 0.0
    %1101 = vmatpush2.xpose.msra.mxu0 0.0
    %1102 = vmatprep.subr.mxu0 0.0
    %1103 = vmatpush2.xpose.msra.mxu0 0.0
    %1104 = vmatprep.subr.mxu0 0.0
    %1105 = vmatpush2.xpose.msra.mxu0 0.0
    %1106 = vmatprep.subr.mxu0 0.0
    %1107 = vmatpush2.xpose.msra.mxu0 0.0
    %1108 = vmatprep.mubr.f32.mxu0 0.0
    %1109 = vmatmul.mubr.f32.gmra.mxu0 %v634
    %v1110 = vpop.f32.mrf.mxu0
    %v1111 = vadd.f32 0.0, %v1110
    %v1112 = vpop.f32.mrf.mxu0
    %1113 = vmatprep.mubr.f32.mxu0 0.0
    %1114 = vmatmul.mubr.f32.gmra.mxu0 %v637
    %v1115 = vpop.f32.mrf.mxu0
    %v1116 = vadd.f32 0.0, %v1115
    %v1117 = vpop.f32.mrf.mxu0
    %1118 = vdwg.mxu0
    %v1119 = vmul.f32 %v1111, 0.70710677
    %v1120 = vmul.f32 %v1116, 0.70710677
    %v1121 = vadd.f32 %v1119, %v624
    %v1122 = vadd.f32 %v1120, %v625
    %v1123 = vsel %vm724, %v1121, -inf
    %1124 = vmax.xlane.f32.xlu0 %v1123
    %v1125 = vpop.xlane.xlu0 %1124
    %v1126 = vsel %vm724, %v1122, -inf
    %1127 = vmax.xlane.f32.xlu0 %v1126
    %v1128 = vpop.xlane.xlu0 %1127
    %v1129 = vsub.f32 %v1121, %v1125
    %v1130 = vsub.f32 %v1122, %v1128
    %v1131 = vmul.f32 %v1129, 1.442695
    %v1132 = vpow.pop %v1131
    %v1133 = vmul.f32 %v1130, 1.442695
    %v1134 = vpow.pop %v1133
    %v1135 = vsel %vm724, %v1132, 0.0
    %1136 = vadd.xlane.f32.xlu0 %v1135
    %v1137 = vpop.xlane.xlu0 %1136
    %v1138 = vsel %vm724, %v1134, 0.0
    %1139 = vadd.xlane.f32.xlu0 %v1138
    %v1140 = vpop.xlane.xlu0 %1139
    %v1141 = vrcp.pop %v1137
    %v1142 = vmul.f32 %v1132, %v1141
    %v1143 = vrcp.pop %v1140
    %v1144 = vmul.f32 %v1134, %v1143
    %v1146 = vsel %vm724, %v1142, 0
    %v1149 = vsel %vm724, %v1144, 0
    %1151 = vmatprep.subr.mxu0 0.0
    %1152 = vmatpush1.msra.mxu0 0.0
    %1153 = vmatprep.subr.mxu0 0.0
    %1154 = vmatpush1.msra.mxu0 0.0
    %1155 = vmatprep.subr.mxu0 0.0
    %1156 = vmatpush1.msra.mxu0 0.0
    %1157 = vmatprep.subr.mxu0 0.0
    %1158 = vmatpush1.msra.mxu0 0.0
    %1159 = vmatprep.subr.mxu0 0.0
    %1160 = vmatpush1.msra.mxu0 0.0
    %1161 = vmatprep.subr.mxu0 0.0
    %1162 = vmatpush1.msra.mxu0 0.0
    %1163 = vmatprep.subr.mxu0 0.0
    %1164 = vmatpush1.msra.mxu0 0.0
    %1165 = vmatprep.subr.mxu0 0.0
    %1166 = vmatpush1.msra.mxu0 0.0
    %1167 = vmatprep.subr.mxu0 0.0
    %1168 = vmatpush1.msra.mxu0 0.0
    %1169 = vmatprep.subr.mxu0 0.0
    %1170 = vmatpush1.msra.mxu0 0.0
    %1171 = vmatprep.subr.mxu0 0.0
    %1172 = vmatpush1.msra.mxu0 0.0
    %1173 = vmatprep.subr.mxu0 0.0
    %1174 = vmatpush1.msra.mxu0 0.0
    %1175 = vmatprep.subr.mxu0 0.0
    %1176 = vmatpush1.msra.mxu0 0.0
    %1177 = vmatprep.subr.mxu0 0.0
    %1178 = vmatpush1.msra.mxu0 0.0
    %1179 = vmatprep.subr.mxu0 0.0
    %1180 = vmatpush1.msra.mxu0 %v621
    %1181 = vmatprep.subr.mxu0 0.0
    %1182 = vmatpush1.msra.mxu0 %v616
    %1183 = vmatprep.subr.mxu0 0.0
    %1184 = vmatpush2.msra.mxu0 0.0
    %1185 = vmatprep.subr.mxu0 0.0
    %1186 = vmatpush2.msra.mxu0 0.0
    %1187 = vmatprep.subr.mxu0 0.0
    %1188 = vmatpush2.msra.mxu0 0.0
    %1189 = vmatprep.subr.mxu0 0.0
    %1190 = vmatpush2.msra.mxu0 0.0
    %1191 = vmatprep.subr.mxu0 0.0
    %1192 = vmatpush2.msra.mxu0 0.0
    %1193 = vmatprep.subr.mxu0 0.0
    %1194 = vmatpush2.msra.mxu0 0.0
    %1195 = vmatprep.subr.mxu0 0.0
    %1196 = vmatpush2.msra.mxu0 0.0
    %1197 = vmatprep.subr.mxu0 0.0
    %1198 = vmatpush2.msra.mxu0 0.0
    %1199 = vmatprep.subr.mxu0 0.0
    %1200 = vmatpush2.msra.mxu0 0.0
    %1201 = vmatprep.subr.mxu0 0.0
    %1202 = vmatpush2.msra.mxu0 0.0
    %1203 = vmatprep.subr.mxu0 0.0
    %1204 = vmatpush2.msra.mxu0 0.0
    %1205 = vmatprep.subr.mxu0 0.0
    %1206 = vmatpush2.msra.mxu0 0.0
    %1207 = vmatprep.subr.mxu0 0.0
    %1208 = vmatpush2.msra.mxu0 0.0
    %1209 = vmatprep.subr.mxu0 0.0
    %1210 = vmatpush2.msra.mxu0 0.0
    %1211 = vmatprep.subr.mxu0 0.0
    %1212 = vmatpush2.msra.mxu0 0.0
    %1213 = vmatprep.subr.mxu0 0.0
    %1214 = vmatpush2.msra.mxu0 0.0
    %1215 = vmatprep.mubr.f32.mxu0 0.0
    %1216 = vmatmul.mubr.f32.gmra.mxu0 %v1146
    %v1217 = vpop.f32.mrf.mxu0
    %v1218 = vadd.f32 0.0, %v1217
    %v1219 = vpop.f32.mrf.mxu0
    %1220 = vmatprep.mubr.f32.mxu0 0.0
    %1221 = vmatmul.mubr.f32.gmra.mxu0 %v1149
    %v1222 = vpop.f32.mrf.mxu0
    %v1223 = vadd.f32 0.0, %v1222
    %v1224 = vpop.f32.mrf.mxu0
    %1225 = vdwg.mxu0
    %v1226 = vmul.f32 %v1218, %v1035
    %v1227 = vmul.f32 %v1223, %v1035
    %v1228 = vadd.f32 %v1029, %v1226
    %v1229 = vadd.f32 %v1030, %v1227
    %v1230 = vld [vmem:[%s2 + $0x3] sm:$0x1]
    %v1231 = vlaneseq
    %v1232 = vshrl.u32 %v1231, 7
    %v1233 = vsub.s32 0, %v1232
    %v1234 = vrot.slane %v1230, %v1233
    %v1235 = vmul.f32 %v533, %v1234
    %v1236 = vmul.f32 %v538, %v1234
    %v1238 = vsel %vm376, %v1235, 0
    %v1241 = vsel %vm376, %v1236, 0
    %1243 = vmatprep.subr.mxu0 0.0
    %1244 = vmatpush1.xpose.msra.mxu0 0.0
    %1245 = vmatprep.subr.mxu0 0.0
    %1246 = vmatpush1.xpose.msra.mxu0 0.0
    %1247 = vmatprep.subr.mxu0 0.0
    %1248 = vmatpush1.xpose.msra.mxu0 0.0
    %1249 = vmatprep.subr.mxu0 0.0
    %1250 = vmatpush1.xpose.msra.mxu0 0.0
    %1251 = vmatprep.subr.mxu0 0.0
    %1252 = vmatpush1.xpose.msra.mxu0 0.0
    %1253 = vmatprep.subr.mxu0 0.0
    %1254 = vmatpush1.xpose.msra.mxu0 0.0
    %1255 = vmatprep.subr.mxu0 0.0
    %1256 = vmatpush1.xpose.msra.mxu0 0.0
    %1257 = vmatprep.subr.mxu0 0.0
    %1258 = vmatpush1.xpose.msra.mxu0 0.0
    %1259 = vmatprep.subr.mxu0 0.0
    %1260 = vmatpush1.xpose.msra.mxu0 0.0
    %1261 = vmatprep.subr.mxu0 0.0
    %1262 = vmatpush1.xpose.msra.mxu0 0.0
    %1263 = vmatprep.subr.mxu0 0.0
    %1264 = vmatpush1.xpose.msra.mxu0 0.0
    %1265 = vmatprep.subr.mxu0 0.0
    %1266 = vmatpush1.xpose.msra.mxu0 0.0
    %1267 = vmatprep.subr.mxu0 0.0
    %1268 = vmatpush1.xpose.msra.mxu0 0.0
    %1269 = vmatprep.subr.mxu0 0.0
    %1270 = vmatpush1.xpose.msra.mxu0 0.0
    %1271 = vmatprep.subr.mxu0 0.0
    %1272 = vmatpush1.xpose.msra.mxu0 %v1241
    %1273 = vmatprep.subr.mxu0 0.0
    %1274 = vmatpush1.xpose.msra.mxu0 %v1238
    %1275 = vmatprep.subr.mxu0 0.0
    %1276 = vmatpush2.xpose.msra.mxu0 0.0
    %1277 = vmatprep.subr.mxu0 0.0
    %1278 = vmatpush2.xpose.msra.mxu0 0.0
    %1279 = vmatprep.subr.mxu0 0.0
    %1280 = vmatpush2.xpose.msra.mxu0 0.0
    %1281 = vmatprep.subr.mxu0 0.0
    %1282 = vmatpush2.xpose.msra.mxu0 0.0
    %1283 = vmatprep.subr.mxu0 0.0
    %1284 = vmatpush2.xpose.msra.mxu0 0.0
    %1285 = vmatprep.subr.mxu0 0.0
    %1286 = vmatpush2.xpose.msra.mxu0 0.0
    %1287 = vmatprep.subr.mxu0 0.0
    %1288 = vmatpush2.xpose.msra.mxu0 0.0
    %1289 = vmatprep.subr.mxu0 0.0
    %1290 = vmatpush2.xpose.msra.mxu0 0.0
    %1291 = vmatprep.subr.mxu0 0.0
    %1292 = vmatpush2.xpose.msra.mxu0 0.0
    %1293 = vmatprep.subr.mxu0 0.0
    %1294 = vmatpush2.xpose.msra.mxu0 0.0
    %1295 = vmatprep.subr.mxu0 0.0
    %1296 = vmatpush2.xpose.msra.mxu0 0.0
    %1297 = vmatprep.subr.mxu0 0.0
    %1298 = vmatpush2.xpose.msra.mxu0 0.0
    %1299 = vmatprep.subr.mxu0 0.0
    %1300 = vmatpush2.xpose.msra.mxu0 0.0
    %1301 = vmatprep.subr.mxu0 0.0
    %1302 = vmatpush2.xpose.msra.mxu0 0.0
    %1303 = vmatprep.subr.mxu0 0.0
    %1304 = vmatpush2.xpose.msra.mxu0 0.0
    %1305 = vmatprep.subr.mxu0 0.0
    %1306 = vmatpush2.xpose.msra.mxu0 0.0
    %1307 = vmatprep.mubr.f32.mxu0 0.0
    %1308 = vmatmul.mubr.f32.gmra.mxu0 %v634
    %v1309 = vpop.f32.mrf.mxu0
    %v1310 = vadd.f32 0.0, %v1309
    %v1311 = vpop.f32.mrf.mxu0
    %1312 = vmatprep.mubr.f32.mxu0 0.0
    %1313 = vmatmul.mubr.f32.gmra.mxu0 %v637
    %v1314 = vpop.f32.mrf.mxu0
    %v1315 = vadd.f32 0.0, %v1314
    %v1316 = vpop.f32.mrf.mxu0
    %1317 = vdwg.mxu0
    %v1318 = vmul.f32 %v1310, 0.70710677
    %v1319 = vmul.f32 %v1315, 0.70710677
    %v1320 = vadd.f32 %v1318, %v624
    %v1321 = vadd.f32 %v1319, %v625
    %v1322 = vsel %vm724, %v1320, -inf
    %1323 = vmax.xlane.f32.xlu0 %v1322
    %v1324 = vpop.xlane.xlu0 %1323
    %v1325 = vsel %vm724, %v1321, -inf
    %1326 = vmax.xlane.f32.xlu0 %v1325
    %v1327 = vpop.xlane.xlu0 %1326
    %v1328 = vsub.f32 %v1320, %v1324
    %v1329 = vsub.f32 %v1321, %v1327
    %v1330 = vmul.f32 %v1328, 1.442695
    %v1331 = vpow.pop %v1330
    %v1332 = vmul.f32 %v1329, 1.442695
    %v1333 = vpow.pop %v1332
    %v1334 = vsel %vm724, %v1331, 0.0
    %1335 = vadd.xlane.f32.xlu0 %v1334
    %v1336 = vpop.xlane.xlu0 %1335
    %v1337 = vsel %vm724, %v1333, 0.0
    %1338 = vadd.xlane.f32.xlu0 %v1337
    %v1339 = vpop.xlane.xlu0 %1338
    %v1340 = vrcp.pop %v1336
    %v1341 = vmul.f32 %v1331, %v1340
    %v1342 = vrcp.pop %v1339
    %v1343 = vmul.f32 %v1333, %v1342
    %v1345 = vsel %vm724, %v1341, 0
    %v1348 = vsel %vm724, %v1343, 0
    %1350 = vmatprep.subr.mxu0 0.0
    %1351 = vmatpush1.msra.mxu0 0.0
    %1352 = vmatprep.subr.mxu0 0.0
    %1353 = vmatpush1.msra.mxu0 0.0
    %1354 = vmatprep.subr.mxu0 0.0
    %1355 = vmatpush1.msra.mxu0 0.0
    %1356 = vmatprep.subr.mxu0 0.0
    %1357 = vmatpush1.msra.mxu0 0.0
    %1358 = vmatprep.subr.mxu0 0.0
    %1359 = vmatpush1.msra.mxu0 0.0
    %1360 = vmatprep.subr.mxu0 0.0
    %1361 = vmatpush1.msra.mxu0 0.0
    %1362 = vmatprep.subr.mxu0 0.0
    %1363 = vmatpush1.msra.mxu0 0.0
    %1364 = vmatprep.subr.mxu0 0.0
    %1365 = vmatpush1.msra.mxu0 0.0
    %1366 = vmatprep.subr.mxu0 0.0
    %1367 = vmatpush1.msra.mxu0 0.0
    %1368 = vmatprep.subr.mxu0 0.0
    %1369 = vmatpush1.msra.mxu0 0.0
    %1370 = vmatprep.subr.mxu0 0.0
    %1371 = vmatpush1.msra.mxu0 0.0
    %1372 = vmatprep.subr.mxu0 0.0
    %1373 = vmatpush1.msra.mxu0 0.0
    %1374 = vmatprep.subr.mxu0 0.0
    %1375 = vmatpush1.msra.mxu0 0.0
    %1376 = vmatprep.subr.mxu0 0.0
    %1377 = vmatpush1.msra.mxu0 0.0
    %1378 = vmatprep.subr.mxu0 0.0
    %1379 = vmatpush1.msra.mxu0 %v621
    %1380 = vmatprep.subr.mxu0 0.0
    %1381 = vmatpush1.msra.mxu0 %v616
    %1382 = vmatprep.subr.mxu0 0.0
    %1383 = vmatpush2.msra.mxu0 0.0
    %1384 = vmatprep.subr.mxu0 0.0
    %1385 = vmatpush2.msra.mxu0 0.0
    %1386 = vmatprep.subr.mxu0 0.0
    %1387 = vmatpush2.msra.mxu0 0.0
    %1388 = vmatprep.subr.mxu0 0.0
    %1389 = vmatpush2.msra.mxu0 0.0
    %1390 = vmatprep.subr.mxu0 0.0
    %1391 = vmatpush2.msra.mxu0 0.0
    %1392 = vmatprep.subr.mxu0 0.0
    %1393 = vmatpush2.msra.mxu0 0.0
    %1394 = vmatprep.subr.mxu0 0.0
    %1395 = vmatpush2.msra.mxu0 0.0
    %1396 = vmatprep.subr.mxu0 0.0
    %1397 = vmatpush2.msra.mxu0 0.0
    %1398 = vmatprep.subr.mxu0 0.0
    %1399 = vmatpush2.msra.mxu0 0.0
    %1400 = vmatprep.subr.mxu0 0.0
    %1401 = vmatpush2.msra.mxu0 0.0
    %1402 = vmatprep.subr.mxu0 0.0
    %1403 = vmatpush2.msra.mxu0 0.0
    %1404 = vmatprep.subr.mxu0 0.0
    %1405 = vmatpush2.msra.mxu0 0.0
    %1406 = vmatprep.subr.mxu0 0.0
    %1407 = vmatpush2.msra.mxu0 0.0
    %1408 = vmatprep.subr.mxu0 0.0
    %1409 = vmatpush2.msra.mxu0 0.0
    %1410 = vmatprep.subr.mxu0 0.0
    %1411 = vmatpush2.msra.mxu0 0.0
    %1412 = vmatprep.subr.mxu0 0.0
    %1413 = vmatpush2.msra.mxu0 0.0
    %1414 = vmatprep.mubr.f32.mxu0 0.0
    %1415 = vmatmul.mubr.f32.gmra.mxu0 %v1345
    %v1416 = vpop.f32.mrf.mxu0
    %v1417 = vadd.f32 0.0, %v1416
    %v1418 = vpop.f32.mrf.mxu0
    %1419 = vmatprep.mubr.f32.mxu0 0.0
    %1420 = vmatmul.mubr.f32.gmra.mxu0 %v1348
    %v1421 = vpop.f32.mrf.mxu0
    %v1422 = vadd.f32 0.0, %v1421
    %v1423 = vpop.f32.mrf.mxu0
    %1424 = vdwg.mxu0
    %v1425 = vmul.f32 %v1417, %v1234
    %v1426 = vmul.f32 %v1422, %v1234
    %v1427 = vadd.f32 %v1228, %v1425
    %v1428 = vadd.f32 %v1229, %v1426
    %v1429 = vld [vmem:[#allocation14] sm:$0xff]
    %v1430 = vld [vmem:[#allocation16] sm:$0x1]
    %v1432 = vlaneseq
    %v1433 = vshrl.u32 %v1432, 7
    %v1434 = vsub.s32 0, %v1433
    %v1435 = vrot.slane %v1430, %v1434
    %v1438 = vsel %vm376, %v1427, 0
    %v1441 = vsel %vm376, %v1428, 0
    %1443 = vmatprep.subr.mxu0 0.0
    %1444 = vmatpush1.msra.mxu0 0.0
    %1445 = vmatprep.subr.mxu0 0.0
    %1446 = vmatpush1.msra.mxu0 0.0
    %1447 = vmatprep.subr.mxu0 0.0
    %1448 = vmatpush1.msra.mxu0 0.0
    %1449 = vmatprep.subr.mxu0 0.0
    %1450 = vmatpush1.msra.mxu0 0.0
    %1451 = vmatprep.subr.mxu0 0.0
    %1452 = vmatpush1.msra.mxu0 0.0
    %1453 = vmatprep.subr.mxu0 0.0
    %1454 = vmatpush1.msra.mxu0 0.0
    %1455 = vmatprep.subr.mxu0 0.0
    %1456 = vmatpush1.msra.mxu0 0.0
    %1457 = vmatprep.subr.mxu0 0.0
    %1458 = vmatpush1.msra.mxu0 0.0
    %1459 = vmatprep.subr.mxu0 0.0
    %1460 = vmatpush1.msra.mxu0 0.0
    %1461 = vmatprep.subr.mxu0 0.0
    %1462 = vmatpush1.msra.mxu0 0.0
    %1463 = vmatprep.subr.mxu0 0.0
    %1464 = vmatpush1.msra.mxu0 0.0
    %1465 = vmatprep.subr.mxu0 0.0
    %1466 = vmatpush1.msra.mxu0 0.0
    %1467 = vmatprep.subr.mxu0 0.0
    %1468 = vmatpush1.msra.mxu0 0.0
    %1469 = vmatprep.subr.mxu0 0.0
    %1470 = vmatpush1.msra.mxu0 0.0
    %1471 = vmatprep.subr.mxu0 0.0
    %1472 = vmatpush1.msra.mxu0 0.0
    %1473 = vmatprep.subr.mxu0 0.0
    %1474 = vmatpush1.msra.mxu0 %v1429
    %1475 = vmatprep.subr.mxu0 0.0
    %1476 = vmatpush2.msra.mxu0 0.0
    %1477 = vmatprep.subr.mxu0 0.0
    %1478 = vmatpush2.msra.mxu0 0.0
    %1479 = vmatprep.subr.mxu0 0.0
    %1480 = vmatpush2.msra.mxu0 0.0
    %1481 = vmatprep.subr.mxu0 0.0
    %1482 = vmatpush2.msra.mxu0 0.0
    %1483 = vmatprep.subr.mxu0 0.0
    %1484 = vmatpush2.msra.mxu0 0.0
    %1485 = vmatprep.subr.mxu0 0.0
    %1486 = vmatpush2.msra.mxu0 0.0
    %1487 = vmatprep.subr.mxu0 0.0
    %1488 = vmatpush2.msra.mxu0 0.0
    %1489 = vmatprep.subr.mxu0 0.0
    %1490 = vmatpush2.msra.mxu0 0.0
    %1491 = vmatprep.subr.mxu0 0.0
    %1492 = vmatpush2.msra.mxu0 0.0
    %1493 = vmatprep.subr.mxu0 0.0
    %1494 = vmatpush2.msra.mxu0 0.0
    %1495 = vmatprep.subr.mxu0 0.0
    %1496 = vmatpush2.msra.mxu0 0.0
    %1497 = vmatprep.subr.mxu0 0.0
    %1498 = vmatpush2.msra.mxu0 0.0
    %1499 = vmatprep.subr.mxu0 0.0
    %1500 = vmatpush2.msra.mxu0 0.0
    %1501 = vmatprep.subr.mxu0 0.0
    %1502 = vmatpush2.msra.mxu0 0.0
    %1503 = vmatprep.subr.mxu0 0.0
    %1504 = vmatpush2.msra.mxu0 0.0
    %1505 = vmatprep.subr.mxu0 0.0
    %1506 = vmatpush2.msra.mxu0 0.0
    %1507 = vmatprep.mubr.f32.mxu0 0.0
    %1508 = vmatmul.mubr.f32.gmra.mxu0 %v1438
    %v1509 = vpop.f32.mrf.mxu0
    %v1510 = vadd.f32 %v1435, %v1509
    %v1511 = vpop.f32.mrf.mxu0
    %1512 = vmatprep.mubr.f32.mxu0 0.0
    %1513 = vmatmul.mubr.f32.gmra.mxu0 %v1441
    %v1514 = vpop.f32.mrf.mxu0
    %v1515 = vadd.f32 %v1435, %v1514
    %v1516 = vpop.f32.mrf.mxu0
    %1517 = vdwg.mxu0
    %v1518 = vadd.f32 %v366, %v1510
    %v1519 = vadd.f32 %v367, %v1515
    %v1520 = vld [vmem:[%s13] sm:$0xff]
    %v1521 = vld [vmem:[%s13 + $0x8] sm:$0xff]
    %v1522 = vld [vmem:[%s14] sm:$0xff]
    %v1523 = vld [vmem:[%s14 + $0x8] sm:$0xff]
    %v1524 = vld [vmem:[%s14 + $0x10] sm:$0xff]
    %v1525 = vld [vmem:[%s14 + $0x18] sm:$0xff]
    %v1526 = vld [vmem:[%s14 + $0x20] sm:$0xff]
    %v1527 = vld [vmem:[%s14 + $0x28] sm:$0xff]
    %v1528 = vld [vmem:[%s14 + $0x30] sm:$0xff]
    %v1529 = vld [vmem:[%s14 + $0x38] sm:$0xff]
    %v1530 = vld [vmem:[%s14 + $0x40] sm:$0xff]
    %v1531 = vld [vmem:[%s14 + $0x48] sm:$0xff]
    %v1532 = vld [vmem:[%s14 + $0x50] sm:$0xff]
    %v1533 = vld [vmem:[%s14 + $0x58] sm:$0xff]
    %v1534 = vld [vmem:[%s14 + $0x60] sm:$0xff]
    %v1535 = vld [vmem:[%s14 + $0x68] sm:$0xff]
    %v1536 = vld [vmem:[%s14 + $0x70] sm:$0xff]
    %v1537 = vld [vmem:[%s14 + $0x78] sm:$0xff]
    %v1538 = vld [vmem:[%s15] sm:$0x3]
    %v1539 = vld [vmem:[#allocation17] sm:$0xff]
    %v1540 = vld [vmem:[#allocation17 + $0x8] sm:$0xff]
    %v1541 = vld [vmem:[#allocation19] sm:$0xff]
    %v1542 = vld [vmem:[#allocation19 + $0x8] sm:$0xff]
    %v1543 = vld [vmem:[#allocation19 + $0x10] sm:$0xff]
    %v1544 = vld [vmem:[#allocation19 + $0x18] sm:$0xff]
    %v1545 = vld [vmem:[#allocation19 + $0x20] sm:$0xff]
    %v1546 = vld [vmem:[#allocation19 + $0x28] sm:$0xff]
    %v1547 = vld [vmem:[#allocation19 + $0x30] sm:$0xff]
    %v1548 = vld [vmem:[#allocation19 + $0x38] sm:$0xff]
    %v1549 = vld [vmem:[#allocation19 + $0x40] sm:$0xff]
    %v1550 = vld [vmem:[#allocation19 + $0x48] sm:$0xff]
    %v1551 = vld [vmem:[#allocation19 + $0x50] sm:$0xff]
    %v1552 = vld [vmem:[#allocation19 + $0x58] sm:$0xff]
    %v1553 = vld [vmem:[#allocation19 + $0x60] sm:$0xff]
    %v1554 = vld [vmem:[#allocation19 + $0x68] sm:$0xff]
    %v1555 = vld [vmem:[#allocation19 + $0x70] sm:$0xff]
    %v1556 = vld [vmem:[#allocation19 + $0x78] sm:$0xff]
    %v1557 = vld [vmem:[%s18] sm:$0x3]
    %v1559 = vlaneseq
    %v1560 = vshrl.u32 %v1559, 7
    %v1561 = vsub.s32 0, %v1560
    %v1562 = vrot.slane %v1538, %v1561
    %v1563 = vlaneseq
    %v1564 = vshrl.u32 %v1563, 7
    %v1565 = vsub.s32 1, %v1564
    %v1566 = vrot.slane %v1538, %v1565
    %v1570 = vsel %vm376, %v1518, 0
    %v1573 = vsel %vm376, %v1519, 0
    %1575 = vmatprep.subr.mxu0 0.0
    %1576 = vmatpush1.msra.mxu0 0.0
    %1577 = vmatprep.subr.mxu0 0.0
    %1578 = vmatpush1.msra.mxu0 0.0
    %1579 = vmatprep.subr.mxu0 0.0
    %1580 = vmatpush1.msra.mxu0 0.0
    %1581 = vmatprep.subr.mxu0 0.0
    %1582 = vmatpush1.msra.mxu0 0.0
    %1583 = vmatprep.subr.mxu0 0.0
    %1584 = vmatpush1.msra.mxu0 0.0
    %1585 = vmatprep.subr.mxu0 0.0
    %1586 = vmatpush1.msra.mxu0 0.0
    %1587 = vmatprep.subr.mxu0 0.0
    %1588 = vmatpush1.msra.mxu0 0.0
    %1589 = vmatprep.subr.mxu0 0.0
    %1590 = vmatpush1.msra.mxu0 0.0
    %1591 = vmatprep.subr.mxu0 0.0
    %1592 = vmatpush1.msra.mxu0 0.0
    %1593 = vmatprep.subr.mxu0 0.0
    %1594 = vmatpush1.msra.mxu0 0.0
    %1595 = vmatprep.subr.mxu0 0.0
    %1596 = vmatpush1.msra.mxu0 0.0
    %1597 = vmatprep.subr.mxu0 0.0
    %1598 = vmatpush1.msra.mxu0 0.0
    %1599 = vmatprep.subr.mxu0 0.0
    %1600 = vmatpush1.msra.mxu0 0.0
    %1601 = vmatprep.subr.mxu0 0.0
    %1602 = vmatpush1.msra.mxu0 0.0
    %1603 = vmatprep.subr.mxu0 0.0
    %1604 = vmatpush1.msra.mxu0 0.0
    %1605 = vmatprep.subr.mxu0 %v1521
    %1606 = vmatpush1.msra.mxu0 %v1520
    %1607 = vmatprep.subr.mxu0 0.0
    %1608 = vmatpush2.msra.mxu0 0.0
    %1609 = vmatprep.subr.mxu0 0.0
    %1610 = vmatpush2.msra.mxu0 0.0
    %1611 = vmatprep.subr.mxu0 0.0
    %1612 = vmatpush2.msra.mxu0 0.0
    %1613 = vmatprep.subr.mxu0 0.0
    %1614 = vmatpush2.msra.mxu0 0.0
    %1615 = vmatprep.subr.mxu0 0.0
    %1616 = vmatpush2.msra.mxu0 0.0
    %1617 = vmatprep.subr.mxu0 0.0
    %1618 = vmatpush2.msra.mxu0 0.0
    %1619 = vmatprep.subr.mxu0 0.0
    %1620 = vmatpush2.msra.mxu0 0.0
    %1621 = vmatprep.subr.mxu0 0.0
    %1622 = vmatpush2.msra.mxu0 0.0
    %1623 = vmatprep.subr.mxu0 0.0
    %1624 = vmatpush2.msra.mxu0 0.0
    %1625 = vmatprep.subr.mxu0 0.0
    %1626 = vmatpush2.msra.mxu0 0.0
    %1627 = vmatprep.subr.mxu0 0.0
    %1628 = vmatpush2.msra.mxu0 0.0
    %1629 = vmatprep.subr.mxu0 0.0
    %1630 = vmatpush2.msra.mxu0 0.0
    %1631 = vmatprep.subr.mxu0 0.0
    %1632 = vmatpush2.msra.mxu0 0.0
    %1633 = vmatprep.subr.mxu0 0.0
    %1634 = vmatpush2.msra.mxu0 0.0
    %1635 = vmatprep.subr.mxu0 0.0
    %1636 = vmatpush2.msra.mxu0 0.0
    %1637 = vmatprep.subr.mxu0 0.0
    %1638 = vmatpush2.msra.mxu0 0.0
    %1639 = vmatprep.mubr.f32.mxu0 0.0
    %1640 = vmatmul.mubr.f32.gmra.mxu0 %v1570
    %v1641 = vpop.f32.mrf.mxu0
    %v1642 = vadd.f32 %v1562, %v1641
    %v1643 = vpop.f32.mrf.mxu0
    %v1644 = vadd.f32 %v1566, %v1643
    %1645 = vmatprep.mubr.f32.mxu0 0.0
    %1646 = vmatmul.mubr.f32.gmra.mxu0 %v1573
    %v1647 = vpop.f32.mrf.mxu0
    %v1648 = vadd.f32 %v1562, %v1647
    %v1649 = vpop.f32.mrf.mxu0
    %v1650 = vadd.f32 %v1566, %v1649
    %1651 = vdwg.mxu0
    %v1653 = vlaneseq
    %v1654 = vshrl.u32 %v1653, 7
    %v1655 = vsub.s32 0, %v1654
    %v1656 = vrot.slane %v1557, %v1655
    %v1657 = vlaneseq
    %v1658 = vshrl.u32 %v1657, 7
    %v1659 = vsub.s32 1, %v1658
    %v1660 = vrot.slane %v1557, %v1659
    %1663 = vmatprep.subr.mxu0 0.0
    %1664 = vmatpush1.msra.mxu0 0.0
    %1665 = vmatprep.subr.mxu0 0.0
    %1666 = vmatpush1.msra.mxu0 0.0
    %1667 = vmatprep.subr.mxu0 0.0
    %1668 = vmatpush1.msra.mxu0 0.0
    %1669 = vmatprep.subr.mxu0 0.0
    %1670 = vmatpush1.msra.mxu0 0.0
    %1671 = vmatprep.subr.mxu0 0.0
    %1672 = vmatpush1.msra.mxu0 0.0
    %1673 = vmatprep.subr.mxu0 0.0
    %1674 = vmatpush1.msra.mxu0 0.0
    %1675 = vmatprep.subr.mxu0 0.0
    %1676 = vmatpush1.msra.mxu0 0.0
    %1677 = vmatprep.subr.mxu0 0.0
    %1678 = vmatpush1.msra.mxu0 0.0
    %1679 = vmatprep.subr.mxu0 0.0
    %1680 = vmatpush1.msra.mxu0 0.0
    %1681 = vmatprep.subr.mxu0 0.0
    %1682 = vmatpush1.msra.mxu0 0.0
    %1683 = vmatprep.subr.mxu0 0.0
    %1684 = vmatpush1.msra.mxu0 0.0
    %1685 = vmatprep.subr.mxu0 0.0
    %1686 = vmatpush1.msra.mxu0 0.0
    %1687 = vmatprep.subr.mxu0 0.0
    %1688 = vmatpush1.msra.mxu0 0.0
    %1689 = vmatprep.subr.mxu0 0.0
    %1690 = vmatpush1.msra.mxu0 0.0
    %1691 = vmatprep.subr.mxu0 0.0
    %1692 = vmatpush1.msra.mxu0 0.0
    %1693 = vmatprep.subr.mxu0 %v1540
    %1694 = vmatpush1.msra.mxu0 %v1539
    %1695 = vmatprep.subr.mxu0 0.0
    %1696 = vmatpush2.msra.mxu0 0.0
    %1697 = vmatprep.subr.mxu0 0.0
    %1698 = vmatpush2.msra.mxu0 0.0
    %1699 = vmatprep.subr.mxu0 0.0
    %1700 = vmatpush2.msra.mxu0 0.0
    %1701 = vmatprep.subr.mxu0 0.0
    %1702 = vmatpush2.msra.mxu0 0.0
    %1703 = vmatprep.subr.mxu0 0.0
    %1704 = vmatpush2.msra.mxu0 0.0
    %1705 = vmatprep.subr.mxu0 0.0
    %1706 = vmatpush2.msra.mxu0 0.0
    %1707 = vmatprep.subr.mxu0 0.0
    %1708 = vmatpush2.msra.mxu0 0.0
    %1709 = vmatprep.subr.mxu0 0.0
    %1710 = vmatpush2.msra.mxu0 0.0
    %1711 = vmatprep.subr.mxu0 0.0
    %1712 = vmatpush2.msra.mxu0 0.0
    %1713 = vmatprep.subr.mxu0 0.0
    %1714 = vmatpush2.msra.mxu0 0.0
    %1715 = vmatprep.subr.mxu0 0.0
    %1716 = vmatpush2.msra.mxu0 0.0
    %1717 = vmatprep.subr.mxu0 0.0
    %1718 = vmatpush2.msra.mxu0 0.0
    %1719 = vmatprep.subr.mxu0 0.0
    %1720 = vmatpush2.msra.mxu0 0.0
    %1721 = vmatprep.subr.mxu0 0.0
    %1722 = vmatpush2.msra.mxu0 0.0
    %1723 = vmatprep.subr.mxu0 0.0
    %1724 = vmatpush2.msra.mxu0 0.0
    %1725 = vmatprep.subr.mxu0 0.0
    %1726 = vmatpush2.msra.mxu0 0.0
    %1727 = vmatprep.mubr.f32.mxu0 0.0
    %1728 = vmatmul.mubr.f32.gmra.mxu0 %v1570
    %v1729 = vpop.f32.mrf.mxu0
    %v1730 = vadd.f32 %v1656, %v1729
    %v1731 = vpop.f32.mrf.mxu0
    %v1732 = vadd.f32 %v1660, %v1731
    %1733 = vmatprep.mubr.f32.mxu0 0.0
    %1734 = vmatmul.mubr.f32.gmra.mxu0 %v1573
    %v1735 = vpop.f32.mrf.mxu0
    %v1736 = vadd.f32 %v1656, %v1735
    %v1737 = vpop.f32.mrf.mxu0
    %v1738 = vadd.f32 %v1660, %v1737
    %1739 = vdwg.mxu0
    %vm1740 = vcmask 523264
    %v1742 = vsel %vm1740, 0.0, 0
    %1744 = vmatprep.subr.mxu0 0.0
    %1745 = vmatpush1.msra.mxu0 0.0
    %1746 = vmatprep.subr.mxu0 0.0
    %1747 = vmatpush1.msra.mxu0 0.0
    %1748 = vmatprep.subr.mxu0 0.0
    %1749 = vmatpush1.msra.mxu0 0.0
    %1750 = vmatprep.subr.mxu0 0.0
    %1751 = vmatpush1.msra.mxu0 0.0
    %1752 = vmatprep.subr.mxu0 0.0
    %1753 = vmatpush1.msra.mxu0 0.0
    %1754 = vmatprep.subr.mxu0 0.0
    %1755 = vmatpush1.msra.mxu0 0.0
    %1756 = vmatprep.subr.mxu0 0.0
    %1757 = vmatpush1.msra.mxu0 0.0
    %1758 = vmatprep.subr.mxu0 0.0
    %1759 = vmatpush1.msra.mxu0 0.0
    %1760 = vmatprep.subr.mxu0 %v1537
    %1761 = vmatpush1.msra.mxu0 %v1536
    %1762 = vmatprep.subr.mxu0 %v1535
    %1763 = vmatpush1.msra.mxu0 %v1534
    %1764 = vmatprep.subr.mxu0 %v1533
    %1765 = vmatpush1.msra.mxu0 %v1532
    %1766 = vmatprep.subr.mxu0 %v1531
    %1767 = vmatpush1.msra.mxu0 %v1530
    %1768 = vmatprep.subr.mxu0 %v1529
    %1769 = vmatpush1.msra.mxu0 %v1528
    %1770 = vmatprep.subr.mxu0 %v1527
    %1771 = vmatpush1.msra.mxu0 %v1526
    %1772 = vmatprep.subr.mxu0 %v1525
    %1773 = vmatpush1.msra.mxu0 %v1524
    %1774 = vmatprep.subr.mxu0 %v1523
    %1775 = vmatpush1.msra.mxu0 %v1522
    %1776 = vmatprep.subr.mxu0 0.0
    %1777 = vmatpush2.msra.mxu0 0.0
    %1778 = vmatprep.subr.mxu0 0.0
    %1779 = vmatpush2.msra.mxu0 0.0
    %1780 = vmatprep.subr.mxu0 0.0
    %1781 = vmatpush2.msra.mxu0 0.0
    %1782 = vmatprep.subr.mxu0 0.0
    %1783 = vmatpush2.msra.mxu0 0.0
    %1784 = vmatprep.subr.mxu0 0.0
    %1785 = vmatpush2.msra.mxu0 0.0
    %1786 = vmatprep.subr.mxu0 0.0
    %1787 = vmatpush2.msra.mxu0 0.0
    %1788 = vmatprep.subr.mxu0 0.0
    %1789 = vmatpush2.msra.mxu0 0.0
    %1790 = vmatprep.subr.mxu0 0.0
    %1791 = vmatpush2.msra.mxu0 0.0
    %1792 = vmatprep.subr.mxu0 0.0
    %1793 = vmatpush2.msra.mxu0 0.0
    %1794 = vmatprep.subr.mxu0 0.0
    %1795 = vmatpush2.msra.mxu0 0.0
    %1796 = vmatprep.subr.mxu0 0.0
    %1797 = vmatpush2.msra.mxu0 0.0
    %1798 = vmatprep.subr.mxu0 0.0
    %1799 = vmatpush2.msra.mxu0 0.0
    %1800 = vmatprep.subr.mxu0 0.0
    %1801 = vmatpush2.msra.mxu0 0.0
    %1802 = vmatprep.subr.mxu0 0.0
    %1803 = vmatpush2.msra.mxu0 0.0
    %1804 = vmatprep.subr.mxu0 0.0
    %1805 = vmatpush2.msra.mxu0 0.0
    %1806 = vmatprep.subr.mxu0 0.0
    %1807 = vmatpush2.msra.mxu0 0.0
    %1808 = vmatprep.mubr.f32.mxu0 0.0
    %1809 = vmatmul.mubr.f32.gmra.mxu0 %v1742
    %v1810 = vpop.f32.mrf.mxu0
    %v1811 = vadd.f32 0.0, %v1810
    %v1812 = vpop.f32.mrf.mxu0
    %v1813 = vadd.f32 0.0, %v1812
    %1814 = vdwg.mxu0
    %v1815 = vadd.f32 %v1642, %v1811
    %v1816 = vadd.f32 %v1644, %v1813
    %v1817 = vxor.u32 %v1815, 2147483648
    %v1818 = vmul.f32 %v1817, 1.442695
    %v1819 = vpow.pop %v1818
    %v1820 = vadd.f32 %v1819, 1.0
    %v1821 = vrcp.pop %v1820
    %v1822 = vmul.f32 1.0, %v1821
    %v1823 = vtanh.pop %v1816
    %v1824 = vxor.u32 %v1816, 2147483648
    %v1825 = vmul.f32 %v1824, 1.442695
    %v1826 = vpow.pop %v1825
    %v1827 = vadd.f32 %v1826, 1.0
    %v1828 = vrcp.pop %v1827
    %v1829 = vmul.f32 1.0, %v1828
    %v1830 = vmul.f32 %v1822, 0.0
    %v1831 = vmul.f32 %v1822, %v1823
    %1833 = vrot.lane.b32.xlu0 %v1831, 64
    %v1834 = vpop.permute.xlu0 %1833
    %v1836 = vadd.f32 %v1830, %v1834
    %v1837 = vtanh.pop %v1836
    %v1838 = vmul.f32 %v1829, %v1837
    %1840 = vrot.lane.b32.xlu0 %v1838, 64
    %v1841 = vpop.permute.xlu0 %1840
    %v1842 = vsel %vm1740, %v1841, 0
    %1844 = vmatprep.subr.mxu0 0.0
    %1845 = vmatpush1.msra.mxu0 0.0
    %1846 = vmatprep.subr.mxu0 0.0
    %1847 = vmatpush1.msra.mxu0 0.0
    %1848 = vmatprep.subr.mxu0 0.0
    %1849 = vmatpush1.msra.mxu0 0.0
    %1850 = vmatprep.subr.mxu0 0.0
    %1851 = vmatpush1.msra.mxu0 0.0
    %1852 = vmatprep.subr.mxu0 0.0
    %1853 = vmatpush1.msra.mxu0 0.0
    %1854 = vmatprep.subr.mxu0 0.0
    %1855 = vmatpush1.msra.mxu0 0.0
    %1856 = vmatprep.subr.mxu0 0.0
    %1857 = vmatpush1.msra.mxu0 0.0
    %1858 = vmatprep.subr.mxu0 0.0
    %1859 = vmatpush1.msra.mxu0 0.0
    %1860 = vmatprep.subr.mxu0 %v1537
    %1861 = vmatpush1.msra.mxu0 %v1536
    %1862 = vmatprep.subr.mxu0 %v1535
    %1863 = vmatpush1.msra.mxu0 %v1534
    %1864 = vmatprep.subr.mxu0 %v1533
    %1865 = vmatpush1.msra.mxu0 %v1532
    %1866 = vmatprep.subr.mxu0 %v1531
    %1867 = vmatpush1.msra.mxu0 %v1530
    %1868 = vmatprep.subr.mxu0 %v1529
    %1869 = vmatpush1.msra.mxu0 %v1528
    %1870 = vmatprep.subr.mxu0 %v1527
    %1871 = vmatpush1.msra.mxu0 %v1526
    %1872 = vmatprep.subr.mxu0 %v1525
    %1873 = vmatpush1.msra.mxu0 %v1524
    %1874 = vmatprep.subr.mxu0 %v1523
    %1875 = vmatpush1.msra.mxu0 %v1522
    %1876 = vmatprep.subr.mxu0 0.0
    %1877 = vmatpush2.msra.mxu0 0.0
    %1878 = vmatprep.subr.mxu0 0.0
    %1879 = vmatpush2.msra.mxu0 0.0
    %1880 = vmatprep.subr.mxu0 0.0
    %1881 = vmatpush2.msra.mxu0 0.0
    %1882 = vmatprep.subr.mxu0 0.0
    %1883 = vmatpush2.msra.mxu0 0.0
    %1884 = vmatprep.subr.mxu0 0.0
    %1885 = vmatpush2.msra.mxu0 0.0
    %1886 = vmatprep.subr.mxu0 0.0
    %1887 = vmatpush2.msra.mxu0 0.0
    %1888 = vmatprep.subr.mxu0 0.0
    %1889 = vmatpush2.msra.mxu0 0.0
    %1890 = vmatprep.subr.mxu0 0.0
    %1891 = vmatpush2.msra.mxu0 0.0
    %1892 = vmatprep.subr.mxu0 0.0
    %1893 = vmatpush2.msra.mxu0 0.0
    %1894 = vmatprep.subr.mxu0 0.0
    %1895 = vmatpush2.msra.mxu0 0.0
    %1896 = vmatprep.subr.mxu0 0.0
    %1897 = vmatpush2.msra.mxu0 0.0
    %1898 = vmatprep.subr.mxu0 0.0
    %1899 = vmatpush2.msra.mxu0 0.0
    %1900 = vmatprep.subr.mxu0 0.0
    %1901 = vmatpush2.msra.mxu0 0.0
    %1902 = vmatprep.subr.mxu0 0.0
    %1903 = vmatpush2.msra.mxu0 0.0
    %1904 = vmatprep.subr.mxu0 0.0
    %1905 = vmatpush2.msra.mxu0 0.0
    %1906 = vmatprep.subr.mxu0 0.0
    %1907 = vmatpush2.msra.mxu0 0.0
    %1908 = vmatprep.mubr.f32.mxu0 0.0
    %1909 = vmatmul.mubr.f32.gmra.mxu0 %v1842
    %v1910 = vpop.f32.mrf.mxu0
    %v1911 = vadd.f32 0.0, %v1910
    %v1912 = vpop.f32.mrf.mxu0
    %v1913 = vadd.f32 0.0, %v1912
    %1914 = vdwg.mxu0
    %v1917 = vrot.slane %v1911, 6
    %v1918 = vrot.slane %v1913, 6
    %v1921 = vadd.f32 %v1642, %v1917
    %v1922 = vadd.f32 %v1644, %v1918
    %v1923 = vxor.u32 %v1921, 2147483648
    %v1924 = vmul.f32 %v1923, 1.442695
    %v1925 = vpow.pop %v1924
    %v1926 = vadd.f32 %v1925, 1.0
    %v1927 = vrcp.pop %v1926
    %v1928 = vmul.f32 1.0, %v1927
    %v1929 = vtanh.pop %v1922
    %v1930 = vxor.u32 %v1922, 2147483648
    %v1931 = vmul.f32 %v1930, 1.442695
    %v1932 = vpow.pop %v1931
    %v1933 = vadd.f32 %v1932, 1.0
    %v1934 = vrcp.pop %v1933
    %v1935 = vmul.f32 1.0, %v1934
    %v1937 = vrot.slane %v1836, 6
    %v1939 = vmul.f32 %v1928, %v1937
    %v1940 = vmul.f32 %v1928, %v1929
    %1942 = vrot.lane.b32.xlu0 %v1940, 64
    %v1943 = vpop.permute.xlu0 %1942
    %v1945 = vadd.f32 %v1939, %v1943
    %v1946 = vtanh.pop %v1945
    %v1947 = vmul.f32 %v1935, %v1946
    %v1949 = vrot.slane %v1947, 2
    %1950 = vrot.lane.b32.xlu0 %v1949, 64
    %v1951 = vpop.permute.xlu0 %1950
    %v1952 = vsel %vm1740, %v1951, 0
    %1954 = vmatprep.subr.mxu0 0.0
    %1955 = vmatpush1.msra.mxu0 0.0
    %1956 = vmatprep.subr.mxu0 0.0
    %1957 = vmatpush1.msra.mxu0 0.0
    %1958 = vmatprep.subr.mxu0 0.0
    %1959 = vmatpush1.msra.mxu0 0.0
    %1960 = vmatprep.subr.mxu0 0.0
    %1961 = vmatpush1.msra.mxu0 0.0
    %1962 = vmatprep.subr.mxu0 0.0
    %1963 = vmatpush1.msra.mxu0 0.0
    %1964 = vmatprep.subr.mxu0 0.0
    %1965 = vmatpush1.msra.mxu0 0.0
    %1966 = vmatprep.subr.mxu0 0.0
    %1967 = vmatpush1.msra.mxu0 0.0
    %1968 = vmatprep.subr.mxu0 0.0
    %1969 = vmatpush1.msra.mxu0 0.0
    %1970 = vmatprep.subr.mxu0 %v1537
    %1971 = vmatpush1.msra.mxu0 %v1536
    %1972 = vmatprep.subr.mxu0 %v1535
    %1973 = vmatpush1.msra.mxu0 %v1534
    %1974 = vmatprep.subr.mxu0 %v1533
    %1975 = vmatpush1.msra.mxu0 %v1532
    %1976 = vmatprep.subr.mxu0 %v1531
    %1977 = vmatpush1.msra.mxu0 %v1530
    %1978 = vmatprep.subr.mxu0 %v1529
    %1979 = vmatpush1.msra.mxu0 %v1528
    %1980 = vmatprep.subr.mxu0 %v1527
    %1981 = vmatpush1.msra.mxu0 %v1526
    %1982 = vmatprep.subr.mxu0 %v1525
    %1983 = vmatpush1.msra.mxu0 %v1524
    %1984 = vmatprep.subr.mxu0 %v1523
    %1985 = vmatpush1.msra.mxu0 %v1522
    %1986 = vmatprep.subr.mxu0 0.0
    %1987 = vmatpush2.msra.mxu0 0.0
    %1988 = vmatprep.subr.mxu0 0.0
    %1989 = vmatpush2.msra.mxu0 0.0
    %1990 = vmatprep.subr.mxu0 0.0
    %1991 = vmatpush2.msra.mxu0 0.0
    %1992 = vmatprep.subr.mxu0 0.0
    %1993 = vmatpush2.msra.mxu0 0.0
    %1994 = vmatprep.subr.mxu0 0.0
    %1995 = vmatpush2.msra.mxu0 0.0
    %1996 = vmatprep.subr.mxu0 0.0
    %1997 = vmatpush2.msra.mxu0 0.0
    %1998 = vmatprep.subr.mxu0 0.0
    %1999 = vmatpush2.msra.mxu0 0.0
    %2000 = vmatprep.subr.mxu0 0.0
    %2001 = vmatpush2.msra.mxu0 0.0
    %2002 = vmatprep.subr.mxu0 0.0
    %2003 = vmatpush2.msra.mxu0 0.0
    %2004 = vmatprep.subr.mxu0 0.0
    %2005 = vmatpush2.msra.mxu0 0.0
    %2006 = vmatprep.subr.mxu0 0.0
    %2007 = vmatpush2.msra.mxu0 0.0
    %2008 = vmatprep.subr.mxu0 0.0
    %2009 = vmatpush2.msra.mxu0 0.0
    %2010 = vmatprep.subr.mxu0 0.0
    %2011 = vmatpush2.msra.mxu0 0.0
    %2012 = vmatprep.subr.mxu0 0.0
    %2013 = vmatpush2.msra.mxu0 0.0
    %2014 = vmatprep.subr.mxu0 0.0
    %2015 = vmatpush2.msra.mxu0 0.0
    %2016 = vmatprep.subr.mxu0 0.0
    %2017 = vmatpush2.msra.mxu0 0.0
    %2018 = vmatprep.mubr.f32.mxu0 0.0
    %2019 = vmatmul.mubr.f32.gmra.mxu0 %v1952
    %v2020 = vpop.f32.mrf.mxu0
    %v2021 = vadd.f32 0.0, %v2020
    %v2022 = vpop.f32.mrf.mxu0
    %v2023 = vadd.f32 0.0, %v2022
    %2024 = vdwg.mxu0
    %v2027 = vrot.slane %v2021, 4
    %v2028 = vrot.slane %v2023, 4
    %v2031 = vadd.f32 %v1642, %v2027
    %v2032 = vadd.f32 %v1644, %v2028
    %v2033 = vxor.u32 %v2031, 2147483648
    %v2034 = vmul.f32 %v2033, 1.442695
    %v2035 = vpow.pop %v2034
    %v2036 = vadd.f32 %v2035, 1.0
    %v2037 = vrcp.pop %v2036
    %v2038 = vmul.f32 1.0, %v2037
    %v2039 = vtanh.pop %v2032
    %v2040 = vxor.u32 %v2032, 2147483648
    %v2041 = vmul.f32 %v2040, 1.442695
    %v2042 = vpow.pop %v2041
    %v2043 = vadd.f32 %v2042, 1.0
    %v2044 = vrcp.pop %v2043
    %v2045 = vmul.f32 1.0, %v2044
    %v2047 = vrot.slane %v1945, 6
    %v2049 = vmul.f32 %v2038, %v2047
    %v2050 = vmul.f32 %v2038, %v2039
    %2052 = vrot.lane.b32.xlu0 %v2050, 64
    %v2053 = vpop.permute.xlu0 %2052
    %v2055 = vadd.f32 %v2049, %v2053
    %v2056 = vtanh.pop %v2055
    %v2057 = vmul.f32 %v2045, %v2056
    %v2059 = vrot.slane %v2057, 4
    %2060 = vrot.lane.b32.xlu0 %v2059, 64
    %v2061 = vpop.permute.xlu0 %2060
    %v2062 = vsel %vm1740, %v2061, 0
    %2064 = vmatprep.subr.mxu0 0.0
    %2065 = vmatpush1.msra.mxu0 0.0
    %2066 = vmatprep.subr.mxu0 0.0
    %2067 = vmatpush1.msra.mxu0 0.0
    %2068 = vmatprep.subr.mxu0 0.0
    %2069 = vmatpush1.msra.mxu0 0.0
    %2070 = vmatprep.subr.mxu0 0.0
    %2071 = vmatpush1.msra.mxu0 0.0
    %2072 = vmatprep.subr.mxu0 0.0
    %2073 = vmatpush1.msra.mxu0 0.0
    %2074 = vmatprep.subr.mxu0 0.0
    %2075 = vmatpush1.msra.mxu0 0.0
    %2076 = vmatprep.subr.mxu0 0.0
    %2077 = vmatpush1.msra.mxu0 0.0
    %2078 = vmatprep.subr.mxu0 0.0
    %2079 = vmatpush1.msra.mxu0 0.0
    %2080 = vmatprep.subr.mxu0 %v1537
    %2081 = vmatpush1.msra.mxu0 %v1536
    %2082 = vmatprep.subr.mxu0 %v1535
    %2083 = vmatpush1.msra.mxu0 %v1534
    %2084 = vmatprep.subr.mxu0 %v1533
    %2085 = vmatpush1.msra.mxu0 %v1532
    %2086 = vmatprep.subr.mxu0 %v1531
    %2087 = vmatpush1.msra.mxu0 %v1530
    %2088 = vmatprep.subr.mxu0 %v1529
    %2089 = vmatpush1.msra.mxu0 %v1528
    %2090 = vmatprep.subr.mxu0 %v1527
    %2091 = vmatpush1.msra.mxu0 %v1526
    %2092 = vmatprep.subr.mxu0 %v1525
    %2093 = vmatpush1.msra.mxu0 %v1524
    %2094 = vmatprep.subr.mxu0 %v1523
    %2095 = vmatpush1.msra.mxu0 %v1522
    %2096 = vmatprep.subr.mxu0 0.0
    %2097 = vmatpush2.msra.mxu0 0.0
    %2098 = vmatprep.subr.mxu0 0.0
    %2099 = vmatpush2.msra.mxu0 0.0
    %2100 = vmatprep.subr.mxu0 0.0
    %2101 = vmatpush2.msra.mxu0 0.0
    %2102 = vmatprep.subr.mxu0 0.0
    %2103 = vmatpush2.msra.mxu0 0.0
    %2104 = vmatprep.subr.mxu0 0.0
    %2105 = vmatpush2.msra.mxu0 0.0
    %2106 = vmatprep.subr.mxu0 0.0
    %2107 = vmatpush2.msra.mxu0 0.0
    %2108 = vmatprep.subr.mxu0 0.0
    %2109 = vmatpush2.msra.mxu0 0.0
    %2110 = vmatprep.subr.mxu0 0.0
    %2111 = vmatpush2.msra.mxu0 0.0
    %2112 = vmatprep.subr.mxu0 0.0
    %2113 = vmatpush2.msra.mxu0 0.0
    %2114 = vmatprep.subr.mxu0 0.0
    %2115 = vmatpush2.msra.mxu0 0.0
    %2116 = vmatprep.subr.mxu0 0.0
    %2117 = vmatpush2.msra.mxu0 0.0
    %2118 = vmatprep.subr.mxu0 0.0
    %2119 = vmatpush2.msra.mxu0 0.0
    %2120 = vmatprep.subr.mxu0 0.0
    %2121 = vmatpush2.msra.mxu0 0.0
    %2122 = vmatprep.subr.mxu0 0.0
    %2123 = vmatpush2.msra.mxu0 0.0
    %2124 = vmatprep.subr.mxu0 0.0
    %2125 = vmatpush2.msra.mxu0 0.0
    %2126 = vmatprep.subr.mxu0 0.0
    %2127 = vmatpush2.msra.mxu0 0.0
    %2128 = vmatprep.mubr.f32.mxu0 0.0
    %2129 = vmatmul.mubr.f32.gmra.mxu0 %v2062
    %v2130 = vpop.f32.mrf.mxu0
    %v2131 = vadd.f32 0.0, %v2130
    %v2132 = vpop.f32.mrf.mxu0
    %v2133 = vadd.f32 0.0, %v2132
    %2134 = vdwg.mxu0
    %v2137 = vrot.slane %v2131, 2
    %v2138 = vrot.slane %v2133, 2
    %v2141 = vadd.f32 %v1642, %v2137
    %v2142 = vadd.f32 %v1644, %v2138
    %v2143 = vxor.u32 %v2141, 2147483648
    %v2144 = vmul.f32 %v2143, 1.442695
    %v2145 = vpow.pop %v2144
    %v2146 = vadd.f32 %v2145, 1.0
    %v2147 = vrcp.pop %v2146
    %v2148 = vmul.f32 1.0, %v2147
    %v2149 = vtanh.pop %v2142
    %v2150 = vxor.u32 %v2142, 2147483648
    %v2151 = vmul.f32 %v2150, 1.442695
    %v2152 = vpow.pop %v2151
    %v2153 = vadd.f32 %v2152, 1.0
    %v2154 = vrcp.pop %v2153
    %v2155 = vmul.f32 1.0, %v2154
    %v2157 = vrot.slane %v2055, 6
    %v2159 = vmul.f32 %v2148, %v2157
    %v2160 = vmul.f32 %v2148, %v2149
    %2162 = vrot.lane.b32.xlu0 %v2160, 64
    %v2163 = vpop.permute.xlu0 %2162
    %v2165 = vadd.f32 %v2159, %v2163
    %v2166 = vtanh.pop %v2165
    %v2167 = vmul.f32 %v2155, %v2166
    %v2169 = vrot.slane %v2167, 6
    %2170 = vrot.lane.b32.xlu0 %v2169, 64
    %v2171 = vpop.permute.xlu0 %2170
    %v2172 = vsel %vm1740, %v2171, 0
    %2174 = vmatprep.subr.mxu0 0.0
    %2175 = vmatpush1.msra.mxu0 0.0
    %2176 = vmatprep.subr.mxu0 0.0
    %2177 = vmatpush1.msra.mxu0 0.0
    %2178 = vmatprep.subr.mxu0 0.0
    %2179 = vmatpush1.msra.mxu0 0.0
    %2180 = vmatprep.subr.mxu0 0.0
    %2181 = vmatpush1.msra.mxu0 0.0
    %2182 = vmatprep.subr.mxu0 0.0
    %2183 = vmatpush1.msra.mxu0 0.0
    %2184 = vmatprep.subr.mxu0 0.0
    %2185 = vmatpush1.msra.mxu0 0.0
    %2186 = vmatprep.subr.mxu0 0.0
    %2187 = vmatpush1.msra.mxu0 0.0
    %2188 = vmatprep.subr.mxu0 0.0
    %2189 = vmatpush1.msra.mxu0 0.0
    %2190 = vmatprep.subr.mxu0 %v1537
    %2191 = vmatpush1.msra.mxu0 %v1536
    %2192 = vmatprep.subr.mxu0 %v1535
    %2193 = vmatpush1.msra.mxu0 %v1534
    %2194 = vmatprep.subr.mxu0 %v1533
    %2195 = vmatpush1.msra.mxu0 %v1532
    %2196 = vmatprep.subr.mxu0 %v1531
    %2197 = vmatpush1.msra.mxu0 %v1530
    %2198 = vmatprep.subr.mxu0 %v1529
    %2199 = vmatpush1.msra.mxu0 %v1528
    %2200 = vmatprep.subr.mxu0 %v1527
    %2201 = vmatpush1.msra.mxu0 %v1526
    %2202 = vmatprep.subr.mxu0 %v1525
    %2203 = vmatpush1.msra.mxu0 %v1524
    %2204 = vmatprep.subr.mxu0 %v1523
    %2205 = vmatpush1.msra.mxu0 %v1522
    %2206 = vmatprep.subr.mxu0 0.0
    %2207 = vmatpush2.msra.mxu0 0.0
    %2208 = vmatprep.subr.mxu0 0.0
    %2209 = vmatpush2.msra.mxu0 0.0
    %2210 = vmatprep.subr.mxu0 0.0
    %2211 = vmatpush2.msra.mxu0 0.0
    %2212 = vmatprep.subr.mxu0 0.0
    %2213 = vmatpush2.msra.mxu0 0.0
    %2214 = vmatprep.subr.mxu0 0.0
    %2215 = vmatpush2.msra.mxu0 0.0
    %2216 = vmatprep.subr.mxu0 0.0
    %2217 = vmatpush2.msra.mxu0 0.0
    %2218 = vmatprep.subr.mxu0 0.0
    %2219 = vmatpush2.msra.mxu0 0.0
    %2220 = vmatprep.subr.mxu0 0.0
    %2221 = vmatpush2.msra.mxu0 0.0
    %2222 = vmatprep.subr.mxu0 0.0
    %2223 = vmatpush2.msra.mxu0 0.0
    %2224 = vmatprep.subr.mxu0 0.0
    %2225 = vmatpush2.msra.mxu0 0.0
    %2226 = vmatprep.subr.mxu0 0.0
    %2227 = vmatpush2.msra.mxu0 0.0
    %2228 = vmatprep.subr.mxu0 0.0
    %2229 = vmatpush2.msra.mxu0 0.0
    %2230 = vmatprep.subr.mxu0 0.0
    %2231 = vmatpush2.msra.mxu0 0.0
    %2232 = vmatprep.subr.mxu0 0.0
    %2233 = vmatpush2.msra.mxu0 0.0
    %2234 = vmatprep.subr.mxu0 0.0
    %2235 = vmatpush2.msra.mxu0 0.0
    %2236 = vmatprep.subr.mxu0 0.0
    %2237 = vmatpush2.msra.mxu0 0.0
    %2238 = vmatprep.mubr.f32.mxu0 0.0
    %2239 = vmatmul.mubr.f32.gmra.mxu0 %v2172
    %v2240 = vpop.f32.mrf.mxu0
    %v2241 = vadd.f32 0.0, %v2240
    %v2242 = vpop.f32.mrf.mxu0
    %v2243 = vadd.f32 0.0, %v2242
    %2244 = vdwg.mxu0
    %v2245 = vadd.f32 %v1648, %v2241
    %v2246 = vadd.f32 %v1650, %v2243
    %v2247 = vxor.u32 %v2245, 2147483648
    %v2248 = vmul.f32 %v2247, 1.442695
    %v2249 = vpow.pop %v2248
    %v2250 = vadd.f32 %v2249, 1.0
    %v2251 = vrcp.pop %v2250
    %v2252 = vmul.f32 1.0, %v2251
    %v2253 = vtanh.pop %v2246
    %v2254 = vxor.u32 %v2246, 2147483648
    %v2255 = vmul.f32 %v2254, 1.442695
    %v2256 = vpow.pop %v2255
    %v2257 = vadd.f32 %v2256, 1.0
    %v2258 = vrcp.pop %v2257
    %v2259 = vmul.f32 1.0, %v2258
    %v2261 = vrot.slane %v2165, 6
    %v2263 = vmul.f32 %v2252, %v2261
    %v2264 = vmul.f32 %v2252, %v2253
    %2266 = vrot.lane.b32.xlu0 %v2264, 64
    %v2267 = vpop.permute.xlu0 %2266
    %v2269 = vadd.f32 %v2263, %v2267
    %v2270 = vtanh.pop %v2269
    %v2271 = vmul.f32 %v2259, %v2270
    %2273 = vrot.lane.b32.xlu0 %v2271, 64
    %v2274 = vpop.permute.xlu0 %2273
    %v2275 = vsel %vm1740, %v2274, 0
    %2277 = vmatprep.subr.mxu0 0.0
    %2278 = vmatpush1.msra.mxu0 0.0
    %2279 = vmatprep.subr.mxu0 0.0
    %2280 = vmatpush1.msra.mxu0 0.0
    %2281 = vmatprep.subr.mxu0 0.0
    %2282 = vmatpush1.msra.mxu0 0.0
    %2283 = vmatprep.subr.mxu0 0.0
    %2284 = vmatpush1.msra.mxu0 0.0
    %2285 = vmatprep.subr.mxu0 0.0
    %2286 = vmatpush1.msra.mxu0 0.0
    %2287 = vmatprep.subr.mxu0 0.0
    %2288 = vmatpush1.msra.mxu0 0.0
    %2289 = vmatprep.subr.mxu0 0.0
    %2290 = vmatpush1.msra.mxu0 0.0
    %2291 = vmatprep.subr.mxu0 0.0
    %2292 = vmatpush1.msra.mxu0 0.0
    %2293 = vmatprep.subr.mxu0 %v1537
    %2294 = vmatpush1.msra.mxu0 %v1536
    %2295 = vmatprep.subr.mxu0 %v1535
    %2296 = vmatpush1.msra.mxu0 %v1534
    %2297 = vmatprep.subr.mxu0 %v1533
    %2298 = vmatpush1.msra.mxu0 %v1532
    %2299 = vmatprep.subr.mxu0 %v1531
    %2300 = vmatpush1.msra.mxu0 %v1530
    %2301 = vmatprep.subr.mxu0 %v1529
    %2302 = vmatpush1.msra.mxu0 %v1528
    %2303 = vmatprep.subr.mxu0 %v1527
    %2304 = vmatpush1.msra.mxu0 %v1526
    %2305 = vmatprep.subr.mxu0 %v1525
    %2306 = vmatpush1.msra.mxu0 %v1524
    %2307 = vmatprep.subr.mxu0 %v1523
    %2308 = vmatpush1.msra.mxu0 %v1522
    %2309 = vmatprep.subr.mxu0 0.0
    %2310 = vmatpush2.msra.mxu0 0.0
    %2311 = vmatprep.subr.mxu0 0.0
    %2312 = vmatpush2.msra.mxu0 0.0
    %2313 = vmatprep.subr.mxu0 0.0
    %2314 = vmatpush2.msra.mxu0 0.0
    %2315 = vmatprep.subr.mxu0 0.0
    %2316 = vmatpush2.msra.mxu0 0.0
    %2317 = vmatprep.subr.mxu0 0.0
    %2318 = vmatpush2.msra.mxu0 0.0
    %2319 = vmatprep.subr.mxu0 0.0
    %2320 = vmatpush2.msra.mxu0 0.0
    %2321 = vmatprep.subr.mxu0 0.0
    %2322 = vmatpush2.msra.mxu0 0.0
    %2323 = vmatprep.subr.mxu0 0.0
    %2324 = vmatpush2.msra.mxu0 0.0
    %2325 = vmatprep.subr.mxu0 0.0
    %2326 = vmatpush2.msra.mxu0 0.0
    %2327 = vmatprep.subr.mxu0 0.0
    %2328 = vmatpush2.msra.mxu0 0.0
    %2329 = vmatprep.subr.mxu0 0.0
    %2330 = vmatpush2.msra.mxu0 0.0
    %2331 = vmatprep.subr.mxu0 0.0
    %2332 = vmatpush2.msra.mxu0 0.0
    %2333 = vmatprep.subr.mxu0 0.0
    %2334 = vmatpush2.msra.mxu0 0.0
    %2335 = vmatprep.subr.mxu0 0.0
    %2336 = vmatpush2.msra.mxu0 0.0
    %2337 = vmatprep.subr.mxu0 0.0
    %2338 = vmatpush2.msra.mxu0 0.0
    %2339 = vmatprep.subr.mxu0 0.0
    %2340 = vmatpush2.msra.mxu0 0.0
    %2341 = vmatprep.mubr.f32.mxu0 0.0
    %2342 = vmatmul.mubr.f32.gmra.mxu0 %v2275
    %v2343 = vpop.f32.mrf.mxu0
    %v2344 = vadd.f32 0.0, %v2343
    %v2345 = vpop.f32.mrf.mxu0
    %v2346 = vadd.f32 0.0, %v2345
    %2347 = vdwg.mxu0
    %v2350 = vrot.slane %v2344, 6
    %v2351 = vrot.slane %v2346, 6
    %v2354 = vadd.f32 %v1648, %v2350
    %v2355 = vadd.f32 %v1650, %v2351
    %v2356 = vxor.u32 %v2354, 2147483648
    %v2357 = vmul.f32 %v2356, 1.442695
    %v2358 = vpow.pop %v2357
    %v2359 = vadd.f32 %v2358, 1.0
    %v2360 = vrcp.pop %v2359
    %v2361 = vmul.f32 1.0, %v2360
    %v2362 = vtanh.pop %v2355
    %v2363 = vxor.u32 %v2355, 2147483648
    %v2364 = vmul.f32 %v2363, 1.442695
    %v2365 = vpow.pop %v2364
    %v2366 = vadd.f32 %v2365, 1.0
    %v2367 = vrcp.pop %v2366
    %v2368 = vmul.f32 1.0, %v2367
    %v2370 = vrot.slane %v2269, 6
    %v2372 = vmul.f32 %v2361, %v2370
    %v2373 = vmul.f32 %v2361, %v2362
    %2375 = vrot.lane.b32.xlu0 %v2373, 64
    %v2376 = vpop.permute.xlu0 %2375
    %v2378 = vadd.f32 %v2372, %v2376
    %v2379 = vtanh.pop %v2378
    %v2380 = vmul.f32 %v2368, %v2379
    %v2382 = vrot.slane %v2380, 2
    %2383 = vrot.lane.b32.xlu0 %v2382, 64
    %v2384 = vpop.permute.xlu0 %2383
    %v2385 = vsel %vm1740, %v2384, 0
    %2387 = vmatprep.subr.mxu0 0.0
    %2388 = vmatpush1.msra.mxu0 0.0
    %2389 = vmatprep.subr.mxu0 0.0
    %2390 = vmatpush1.msra.mxu0 0.0
    %2391 = vmatprep.subr.mxu0 0.0
    %2392 = vmatpush1.msra.mxu0 0.0
    %2393 = vmatprep.subr.mxu0 0.0
    %2394 = vmatpush1.msra.mxu0 0.0
    %2395 = vmatprep.subr.mxu0 0.0
    %2396 = vmatpush1.msra.mxu0 0.0
    %2397 = vmatprep.subr.mxu0 0.0
    %2398 = vmatpush1.msra.mxu0 0.0
    %2399 = vmatprep.subr.mxu0 0.0
    %2400 = vmatpush1.msra.mxu0 0.0
    %2401 = vmatprep.subr.mxu0 0.0
    %2402 = vmatpush1.msra.mxu0 0.0
    %2403 = vmatprep.subr.mxu0 %v1537
    %2404 = vmatpush1.msra.mxu0 %v1536
    %2405 = vmatprep.subr.mxu0 %v1535
    %2406 = vmatpush1.msra.mxu0 %v1534
    %2407 = vmatprep.subr.mxu0 %v1533
    %2408 = vmatpush1.msra.mxu0 %v1532
    %2409 = vmatprep.subr.mxu0 %v1531
    %2410 = vmatpush1.msra.mxu0 %v1530
    %2411 = vmatprep.subr.mxu0 %v1529
    %2412 = vmatpush1.msra.mxu0 %v1528
    %2413 = vmatprep.subr.mxu0 %v1527
    %2414 = vmatpush1.msra.mxu0 %v1526
    %2415 = vmatprep.subr.mxu0 %v1525
    %2416 = vmatpush1.msra.mxu0 %v1524
    %2417 = vmatprep.subr.mxu0 %v1523
    %2418 = vmatpush1.msra.mxu0 %v1522
    %2419 = vmatprep.subr.mxu0 0.0
    %2420 = vmatpush2.msra.mxu0 0.0
    %2421 = vmatprep.subr.mxu0 0.0
    %2422 = vmatpush2.msra.mxu0 0.0
    %2423 = vmatprep.subr.mxu0 0.0
    %2424 = vmatpush2.msra.mxu0 0.0
    %2425 = vmatprep.subr.mxu0 0.0
    %2426 = vmatpush2.msra.mxu0 0.0
    %2427 = vmatprep.subr.mxu0 0.0
    %2428 = vmatpush2.msra.mxu0 0.0
    %2429 = vmatprep.subr.mxu0 0.0
    %2430 = vmatpush2.msra.mxu0 0.0
    %2431 = vmatprep.subr.mxu0 0.0
    %2432 = vmatpush2.msra.mxu0 0.0
    %2433 = vmatprep.subr.mxu0 0.0
    %2434 = vmatpush2.msra.mxu0 0.0
    %2435 = vmatprep.subr.mxu0 0.0
    %2436 = vmatpush2.msra.mxu0 0.0
    %2437 = vmatprep.subr.mxu0 0.0
    %2438 = vmatpush2.msra.mxu0 0.0
    %2439 = vmatprep.subr.mxu0 0.0
    %2440 = vmatpush2.msra.mxu0 0.0
    %2441 = vmatprep.subr.mxu0 0.0
    %2442 = vmatpush2.msra.mxu0 0.0
    %2443 = vmatprep.subr.mxu0 0.0
    %2444 = vmatpush2.msra.mxu0 0.0
    %2445 = vmatprep.subr.mxu0 0.0
    %2446 = vmatpush2.msra.mxu0 0.0
    %2447 = vmatprep.subr.mxu0 0.0
    %2448 = vmatpush2.msra.mxu0 0.0
    %2449 = vmatprep.subr.mxu0 0.0
    %2450 = vmatpush2.msra.mxu0 0.0
    %2451 = vmatprep.mubr.f32.mxu0 0.0
    %2452 = vmatmul.mubr.f32.gmra.mxu0 %v2385
    %v2453 = vpop.f32.mrf.mxu0
    %v2454 = vadd.f32 0.0, %v2453
    %v2455 = vpop.f32.mrf.mxu0
    %v2456 = vadd.f32 0.0, %v2455
    %2457 = vdwg.mxu0
    %v2460 = vrot.slane %v2454, 4
    %v2461 = vrot.slane %v2456, 4
    %v2464 = vadd.f32 %v1648, %v2460
    %v2465 = vadd.f32 %v1650, %v2461
    %v2466 = vxor.u32 %v2464, 2147483648
    %v2467 = vmul.f32 %v2466, 1.442695
    %v2468 = vpow.pop %v2467
    %v2469 = vadd.f32 %v2468, 1.0
    %v2470 = vrcp.pop %v2469
    %v2471 = vmul.f32 1.0, %v2470
    %v2472 = vtanh.pop %v2465
    %v2473 = vxor.u32 %v2465, 2147483648
    %v2474 = vmul.f32 %v2473, 1.442695
    %v2475 = vpow.pop %v2474
    %v2476 = vadd.f32 %v2475, 1.0
    %v2477 = vrcp.pop %v2476
    %v2478 = vmul.f32 1.0, %v2477
    %v2480 = vrot.slane %v2378, 6
    %v2482 = vmul.f32 %v2471, %v2480
    %v2483 = vmul.f32 %v2471, %v2472
    %2485 = vrot.lane.b32.xlu0 %v2483, 64
    %v2486 = vpop.permute.xlu0 %2485
    %v2488 = vadd.f32 %v2482, %v2486
    %v2489 = vtanh.pop %v2488
    %v2490 = vmul.f32 %v2478, %v2489
    %v2492 = vrot.slane %v2490, 4
    %2493 = vrot.lane.b32.xlu0 %v2492, 64
    %v2494 = vpop.permute.xlu0 %2493
    %v2495 = vsel %vm1740, %v2494, 0
    %2497 = vmatprep.subr.mxu0 0.0
    %2498 = vmatpush1.msra.mxu0 0.0
    %2499 = vmatprep.subr.mxu0 0.0
    %2500 = vmatpush1.msra.mxu0 0.0
    %2501 = vmatprep.subr.mxu0 0.0
    %2502 = vmatpush1.msra.mxu0 0.0
    %2503 = vmatprep.subr.mxu0 0.0
    %2504 = vmatpush1.msra.mxu0 0.0
    %2505 = vmatprep.subr.mxu0 0.0
    %2506 = vmatpush1.msra.mxu0 0.0
    %2507 = vmatprep.subr.mxu0 0.0
    %2508 = vmatpush1.msra.mxu0 0.0
    %2509 = vmatprep.subr.mxu0 0.0
    %2510 = vmatpush1.msra.mxu0 0.0
    %2511 = vmatprep.subr.mxu0 0.0
    %2512 = vmatpush1.msra.mxu0 0.0
    %2513 = vmatprep.subr.mxu0 %v1537
    %2514 = vmatpush1.msra.mxu0 %v1536
    %2515 = vmatprep.subr.mxu0 %v1535
    %2516 = vmatpush1.msra.mxu0 %v1534
    %2517 = vmatprep.subr.mxu0 %v1533
    %2518 = vmatpush1.msra.mxu0 %v1532
    %2519 = vmatprep.subr.mxu0 %v1531
    %2520 = vmatpush1.msra.mxu0 %v1530
    %2521 = vmatprep.subr.mxu0 %v1529
    %2522 = vmatpush1.msra.mxu0 %v1528
    %2523 = vmatprep.subr.mxu0 %v1527
    %2524 = vmatpush1.msra.mxu0 %v1526
    %2525 = vmatprep.subr.mxu0 %v1525
    %2526 = vmatpush1.msra.mxu0 %v1524
    %2527 = vmatprep.subr.mxu0 %v1523
    %2528 = vmatpush1.msra.mxu0 %v1522
    %2529 = vmatprep.subr.mxu0 0.0
    %2530 = vmatpush2.msra.mxu0 0.0
    %2531 = vmatprep.subr.mxu0 0.0
    %2532 = vmatpush2.msra.mxu0 0.0
    %2533 = vmatprep.subr.mxu0 0.0
    %2534 = vmatpush2.msra.mxu0 0.0
    %2535 = vmatprep.subr.mxu0 0.0
    %2536 = vmatpush2.msra.mxu0 0.0
    %2537 = vmatprep.subr.mxu0 0.0
    %2538 = vmatpush2.msra.mxu0 0.0
    %2539 = vmatprep.subr.mxu0 0.0
    %2540 = vmatpush2.msra.mxu0 0.0
    %2541 = vmatprep.subr.mxu0 0.0
    %2542 = vmatpush2.msra.mxu0 0.0
    %2543 = vmatprep.subr.mxu0 0.0
    %2544 = vmatpush2.msra.mxu0 0.0
    %2545 = vmatprep.subr.mxu0 0.0
    %2546 = vmatpush2.msra.mxu0 0.0
    %2547 = vmatprep.subr.mxu0 0.0
    %2548 = vmatpush2.msra.mxu0 0.0
    %2549 = vmatprep.subr.mxu0 0.0
    %2550 = vmatpush2.msra.mxu0 0.0
    %2551 = vmatprep.subr.mxu0 0.0
    %2552 = vmatpush2.msra.mxu0 0.0
    %2553 = vmatprep.subr.mxu0 0.0
    %2554 = vmatpush2.msra.mxu0 0.0
    %2555 = vmatprep.subr.mxu0 0.0
    %2556 = vmatpush2.msra.mxu0 0.0
    %2557 = vmatprep.subr.mxu0 0.0
    %2558 = vmatpush2.msra.mxu0 0.0
    %2559 = vmatprep.subr.mxu0 0.0
    %2560 = vmatpush2.msra.mxu0 0.0
    %2561 = vmatprep.mubr.f32.mxu0 0.0
    %2562 = vmatmul.mubr.f32.gmra.mxu0 %v2495
    %v2563 = vpop.f32.mrf.mxu0
    %v2564 = vadd.f32 0.0, %v2563
    %v2565 = vpop.f32.mrf.mxu0
    %v2566 = vadd.f32 0.0, %v2565
    %2567 = vdwg.mxu0
    %v2570 = vrot.slane %v2564, 2
    %v2571 = vrot.slane %v2566, 2
    %v2574 = vadd.f32 %v1648, %v2570
    %v2575 = vadd.f32 %v1650, %v2571
    %v2576 = vxor.u32 %v2574, 2147483648
    %v2577 = vmul.f32 %v2576, 1.442695
    %v2578 = vpow.pop %v2577
    %v2579 = vadd.f32 %v2578, 1.0
    %v2580 = vrcp.pop %v2579
    %v2581 = vmul.f32 1.0, %v2580
    %v2582 = vtanh.pop %v2575
    %v2583 = vxor.u32 %v2575, 2147483648
    %v2584 = vmul.f32 %v2583, 1.442695
    %v2585 = vpow.pop %v2584
    %v2586 = vadd.f32 %v2585, 1.0
    %v2587 = vrcp.pop %v2586
    %v2588 = vmul.f32 1.0, %v2587
    %v2590 = vrot.slane %v2488, 6
    %v2592 = vmul.f32 %v2581, %v2590
    %v2593 = vmul.f32 %v2581, %v2582
    %2595 = vrot.lane.b32.xlu0 %v2593, 64
    %v2596 = vpop.permute.xlu0 %2595
    %v2598 = vadd.f32 %v2592, %v2596
    %v2599 = vtanh.pop %v2598
    %v2600 = vmul.f32 %v2588, %v2599
    %2601 = vmatprep.subr.mxu0 0.0
    %2602 = vmatpush1.msra.mxu0 0.0
    %2603 = vmatprep.subr.mxu0 0.0
    %2604 = vmatpush1.msra.mxu0 0.0
    %2605 = vmatprep.subr.mxu0 0.0
    %2606 = vmatpush1.msra.mxu0 0.0
    %2607 = vmatprep.subr.mxu0 0.0
    %2608 = vmatpush1.msra.mxu0 0.0
    %2609 = vmatprep.subr.mxu0 0.0
    %2610 = vmatpush1.msra.mxu0 0.0
    %2611 = vmatprep.subr.mxu0 0.0
    %2612 = vmatpush1.msra.mxu0 0.0
    %2613 = vmatprep.subr.mxu0 0.0
    %2614 = vmatpush1.msra.mxu0 0.0
    %2615 = vmatprep.subr.mxu0 0.0
    %2616 = vmatpush1.msra.mxu0 0.0
    %2617 = vmatprep.subr.mxu0 %v1556
    %2618 = vmatpush1.msra.mxu0 %v1555
    %2619 = vmatprep.subr.mxu0 %v1554
    %2620 = vmatpush1.msra.mxu0 %v1553
    %2621 = vmatprep.subr.mxu0 %v1552
    %2622 = vmatpush1.msra.mxu0 %v1551
    %2623 = vmatprep.subr.mxu0 %v1550
    %2624 = vmatpush1.msra.mxu0 %v1549
    %2625 = vmatprep.subr.mxu0 %v1548
    %2626 = vmatpush1.msra.mxu0 %v1547
    %2627 = vmatprep.subr.mxu0 %v1546
    %2628 = vmatpush1.msra.mxu0 %v1545
    %2629 = vmatprep.subr.mxu0 %v1544
    %2630 = vmatpush1.msra.mxu0 %v1543
    %2631 = vmatprep.subr.mxu0 %v1542
    %2632 = vmatpush1.msra.mxu0 %v1541
    %2633 = vmatprep.subr.mxu0 0.0
    %2634 = vmatpush2.msra.mxu0 0.0
    %2635 = vmatprep.subr.mxu0 0.0
    %2636 = vmatpush2.msra.mxu0 0.0
    %2637 = vmatprep.subr.mxu0 0.0
    %2638 = vmatpush2.msra.mxu0 0.0
    %2639 = vmatprep.subr.mxu0 0.0
    %2640 = vmatpush2.msra.mxu0 0.0
    %2641 = vmatprep.subr.mxu0 0.0
    %2642 = vmatpush2.msra.mxu0 0.0
    %2643 = vmatprep.subr.mxu0 0.0
    %2644 = vmatpush2.msra.mxu0 0.0
    %2645 = vmatprep.subr.mxu0 0.0
    %2646 = vmatpush2.msra.mxu0 0.0
    %2647 = vmatprep.subr.mxu0 0.0
    %2648 = vmatpush2.msra.mxu0 0.0
    %2649 = vmatprep.subr.mxu0 0.0
    %2650 = vmatpush2.msra.mxu0 0.0
    %2651 = vmatprep.subr.mxu0 0.0
    %2652 = vmatpush2.msra.mxu0 0.0
    %2653 = vmatprep.subr.mxu0 0.0
    %2654 = vmatpush2.msra.mxu0 0.0
    %2655 = vmatprep.subr.mxu0 0.0
    %2656 = vmatpush2.msra.mxu0 0.0
    %2657 = vmatprep.subr.mxu0 0.0
    %2658 = vmatpush2.msra.mxu0 0.0
    %2659 = vmatprep.subr.mxu0 0.0
    %2660 = vmatpush2.msra.mxu0 0.0
    %2661 = vmatprep.subr.mxu0 0.0
    %2662 = vmatpush2.msra.mxu0 0.0
    %2663 = vmatprep.subr.mxu0 0.0
    %2664 = vmatpush2.msra.mxu0 0.0
    %2665 = vmatprep.mubr.f32.mxu0 0.0
    %2666 = vmatmul.mubr.f32.gmra.mxu0 %v1742
    %v2667 = vpop.f32.mrf.mxu0
    %v2668 = vadd.f32 0.0, %v2667
    %v2669 = vpop.f32.mrf.mxu0
    %v2670 = vadd.f32 0.0, %v2669
    %2671 = vdwg.mxu0
    %v2674 = vrot.slane %v2668, 2
    %v2675 = vrot.slane %v2670, 2
    %v2678 = vadd.f32 %v1736, %v2674
    %v2679 = vadd.f32 %v1738, %v2675
    %v2680 = vxor.u32 %v2678, 2147483648
    %v2681 = vmul.f32 %v2680, 1.442695
    %v2682 = vpow.pop %v2681
    %v2683 = vadd.f32 %v2682, 1.0
    %v2684 = vrcp.pop %v2683
    %v2685 = vmul.f32 1.0, %v2684
    %v2686 = vtanh.pop %v2679
    %v2687 = vxor.u32 %v2679, 2147483648
    %v2688 = vmul.f32 %v2687, 1.442695
    %v2689 = vpow.pop %v2688
    %v2690 = vadd.f32 %v2689, 1.0
    %v2691 = vrcp.pop %v2690
    %v2692 = vmul.f32 1.0, %v2691
    %v2693 = vmul.f32 %v2685, 0.0
    %v2694 = vmul.f32 %v2685, %v2686
    %2696 = vrot.lane.b32.xlu0 %v2694, 64
    %v2697 = vpop.permute.xlu0 %2696
    %v2699 = vadd.f32 %v2693, %v2697
    %v2700 = vtanh.pop %v2699
    %v2701 = vmul.f32 %v2692, %v2700
    %v2703 = vrot.slane %v2701, 6
    %2704 = vrot.lane.b32.xlu0 %v2703, 64
    %v2705 = vpop.permute.xlu0 %2704
    %v2706 = vsel %vm1740, %v2705, 0
    %2708 = vmatprep.subr.mxu0 0.0
    %2709 = vmatpush1.msra.mxu0 0.0
    %2710 = vmatprep.subr.mxu0 0.0
    %2711 = vmatpush1.msra.mxu0 0.0
    %2712 = vmatprep.subr.mxu0 0.0
    %2713 = vmatpush1.msra.mxu0 0.0
    %2714 = vmatprep.subr.mxu0 0.0
    %2715 = vmatpush1.msra.mxu0 0.0
    %2716 = vmatprep.subr.mxu0 0.0
    %2717 = vmatpush1.msra.mxu0 0.0
    %2718 = vmatprep.subr.mxu0 0.0
    %2719 = vmatpush1.msra.mxu0 0.0
    %2720 = vmatprep.subr.mxu0 0.0
    %2721 = vmatpush1.msra.mxu0 0.0
    %2722 = vmatprep.subr.mxu0 0.0
    %2723 = vmatpush1.msra.mxu0 0.0
    %2724 = vmatprep.subr.mxu0 %v1556
    %2725 = vmatpush1.msra.mxu0 %v1555
    %2726 = vmatprep.subr.mxu0 %v1554
    %2727 = vmatpush1.msra.mxu0 %v1553
    %2728 = vmatprep.subr.mxu0 %v1552
    %2729 = vmatpush1.msra.mxu0 %v1551
    %2730 = vmatprep.subr.mxu0 %v1550
    %2731 = vmatpush1.msra.mxu0 %v1549
    %2732 = vmatprep.subr.mxu0 %v1548
    %2733 = vmatpush1.msra.mxu0 %v1547
    %2734 = vmatprep.subr.mxu0 %v1546
    %2735 = vmatpush1.msra.mxu0 %v1545
    %2736 = vmatprep.subr.mxu0 %v1544
    %2737 = vmatpush1.msra.mxu0 %v1543
    %2738 = vmatprep.subr.mxu0 %v1542
    %2739 = vmatpush1.msra.mxu0 %v1541
    %2740 = vmatprep.subr.mxu0 0.0
    %2741 = vmatpush2.msra.mxu0 0.0
    %2742 = vmatprep.subr.mxu0 0.0
    %2743 = vmatpush2.msra.mxu0 0.0
    %2744 = vmatprep.subr.mxu0 0.0
    %2745 = vmatpush2.msra.mxu0 0.0
    %2746 = vmatprep.subr.mxu0 0.0
    %2747 = vmatpush2.msra.mxu0 0.0
    %2748 = vmatprep.subr.mxu0 0.0
    %2749 = vmatpush2.msra.mxu0 0.0
    %2750 = vmatprep.subr.mxu0 0.0
    %2751 = vmatpush2.msra.mxu0 0.0
    %2752 = vmatprep.subr.mxu0 0.0
    %2753 = vmatpush2.msra.mxu0 0.0
    %2754 = vmatprep.subr.mxu0 0.0
    %2755 = vmatpush2.msra.mxu0 0.0
    %2756 = vmatprep.subr.mxu0 0.0
    %2757 = vmatpush2.msra.mxu0 0.0
    %2758 = vmatprep.subr.mxu0 0.0
    %2759 = vmatpush2.msra.mxu0 0.0
    %2760 = vmatprep.subr.mxu0 0.0
    %2761 = vmatpush2.msra.mxu0 0.0
    %2762 = vmatprep.subr.mxu0 0.0
    %2763 = vmatpush2.msra.mxu0 0.0
    %2764 = vmatprep.subr.mxu0 0.0
    %2765 = vmatpush2.msra.mxu0 0.0
    %2766 = vmatprep.subr.mxu0 0.0
    %2767 = vmatpush2.msra.mxu0 0.0
    %2768 = vmatprep.subr.mxu0 0.0
    %2769 = vmatpush2.msra.mxu0 0.0
    %2770 = vmatprep.subr.mxu0 0.0
    %2771 = vmatpush2.msra.mxu0 0.0
    %2772 = vmatprep.mubr.f32.mxu0 0.0
    %2773 = vmatmul.mubr.f32.gmra.mxu0 %v2706
    %v2774 = vpop.f32.mrf.mxu0
    %v2775 = vadd.f32 0.0, %v2774
    %v2776 = vpop.f32.mrf.mxu0
    %v2777 = vadd.f32 0.0, %v2776
    %2778 = vdwg.mxu0
    %v2781 = vrot.slane %v2775, 4
    %v2782 = vrot.slane %v2777, 4
    %v2785 = vadd.f32 %v1736, %v2781
    %v2786 = vadd.f32 %v1738, %v2782
    %v2787 = vxor.u32 %v2785, 2147483648
    %v2788 = vmul.f32 %v2787, 1.442695
    %v2789 = vpow.pop %v2788
    %v2790 = vadd.f32 %v2789, 1.0
    %v2791 = vrcp.pop %v2790
    %v2792 = vmul.f32 1.0, %v2791
    %v2793 = vtanh.pop %v2786
    %v2794 = vxor.u32 %v2786, 2147483648
    %v2795 = vmul.f32 %v2794, 1.442695
    %v2796 = vpow.pop %v2795
    %v2797 = vadd.f32 %v2796, 1.0
    %v2798 = vrcp.pop %v2797
    %v2799 = vmul.f32 1.0, %v2798
    %v2801 = vrot.slane %v2699, 2
    %v2803 = vmul.f32 %v2792, %v2801
    %v2804 = vmul.f32 %v2792, %v2793
    %2806 = vrot.lane.b32.xlu0 %v2804, 64
    %v2807 = vpop.permute.xlu0 %2806
    %v2809 = vadd.f32 %v2803, %v2807
    %v2810 = vtanh.pop %v2809
    %v2811 = vmul.f32 %v2799, %v2810
    %v2813 = vrot.slane %v2811, 4
    %2814 = vrot.lane.b32.xlu0 %v2813, 64
    %v2815 = vpop.permute.xlu0 %2814
    %v2816 = vsel %vm1740, %v2815, 0
    %2818 = vmatprep.subr.mxu0 0.0
    %2819 = vmatpush1.msra.mxu0 0.0
    %2820 = vmatprep.subr.mxu0 0.0
    %2821 = vmatpush1.msra.mxu0 0.0
    %2822 = vmatprep.subr.mxu0 0.0
    %2823 = vmatpush1.msra.mxu0 0.0
    %2824 = vmatprep.subr.mxu0 0.0
    %2825 = vmatpush1.msra.mxu0 0.0
    %2826 = vmatprep.subr.mxu0 0.0
    %2827 = vmatpush1.msra.mxu0 0.0
    %2828 = vmatprep.subr.mxu0 0.0
    %2829 = vmatpush1.msra.mxu0 0.0
    %2830 = vmatprep.subr.mxu0 0.0
    %2831 = vmatpush1.msra.mxu0 0.0
    %2832 = vmatprep.subr.mxu0 0.0
    %2833 = vmatpush1.msra.mxu0 0.0
    %2834 = vmatprep.subr.mxu0 %v1556
    %2835 = vmatpush1.msra.mxu0 %v1555
    %2836 = vmatprep.subr.mxu0 %v1554
    %2837 = vmatpush1.msra.mxu0 %v1553
    %2838 = vmatprep.subr.mxu0 %v1552
    %2839 = vmatpush1.msra.mxu0 %v1551
    %2840 = vmatprep.subr.mxu0 %v1550
    %2841 = vmatpush1.msra.mxu0 %v1549
    %2842 = vmatprep.subr.mxu0 %v1548
    %2843 = vmatpush1.msra.mxu0 %v1547
    %2844 = vmatprep.subr.mxu0 %v1546
    %2845 = vmatpush1.msra.mxu0 %v1545
    %2846 = vmatprep.subr.mxu0 %v1544
    %2847 = vmatpush1.msra.mxu0 %v1543
    %2848 = vmatprep.subr.mxu0 %v1542
    %2849 = vmatpush1.msra.mxu0 %v1541
    %2850 = vmatprep.subr.mxu0 0.0
    %2851 = vmatpush2.msra.mxu0 0.0
    %2852 = vmatprep.subr.mxu0 0.0
    %2853 = vmatpush2.msra.mxu0 0.0
    %2854 = vmatprep.subr.mxu0 0.0
    %2855 = vmatpush2.msra.mxu0 0.0
    %2856 = vmatprep.subr.mxu0 0.0
    %2857 = vmatpush2.msra.mxu0 0.0
    %2858 = vmatprep.subr.mxu0 0.0
    %2859 = vmatpush2.msra.mxu0 0.0
    %2860 = vmatprep.subr.mxu0 0.0
    %2861 = vmatpush2.msra.mxu0 0.0
    %2862 = vmatprep.subr.mxu0 0.0
    %2863 = vmatpush2.msra.mxu0 0.0
    %2864 = vmatprep.subr.mxu0 0.0
    %2865 = vmatpush2.msra.mxu0 0.0
    %2866 = vmatprep.subr.mxu0 0.0
    %2867 = vmatpush2.msra.mxu0 0.0
    %2868 = vmatprep.subr.mxu0 0.0
    %2869 = vmatpush2.msra.mxu0 0.0
    %2870 = vmatprep.subr.mxu0 0.0
    %2871 = vmatpush2.msra.mxu0 0.0
    %2872 = vmatprep.subr.mxu0 0.0
    %2873 = vmatpush2.msra.mxu0 0.0
    %2874 = vmatprep.subr.mxu0 0.0
    %2875 = vmatpush2.msra.mxu0 0.0
    %2876 = vmatprep.subr.mxu0 0.0
    %2877 = vmatpush2.msra.mxu0 0.0
    %2878 = vmatprep.subr.mxu0 0.0
    %2879 = vmatpush2.msra.mxu0 0.0
    %2880 = vmatprep.subr.mxu0 0.0
    %2881 = vmatpush2.msra.mxu0 0.0
    %2882 = vmatprep.mubr.f32.mxu0 0.0
    %2883 = vmatmul.mubr.f32.gmra.mxu0 %v2816
    %v2884 = vpop.f32.mrf.mxu0
    %v2885 = vadd.f32 0.0, %v2884
    %v2886 = vpop.f32.mrf.mxu0
    %v2887 = vadd.f32 0.0, %v2886
    %2888 = vdwg.mxu0
    %v2891 = vrot.slane %v2885, 6
    %v2892 = vrot.slane %v2887, 6
    %v2895 = vadd.f32 %v1736, %v2891
    %v2896 = vadd.f32 %v1738, %v2892
    %v2897 = vxor.u32 %v2895, 2147483648
    %v2898 = vmul.f32 %v2897, 1.442695
    %v2899 = vpow.pop %v2898
    %v2900 = vadd.f32 %v2899, 1.0
    %v2901 = vrcp.pop %v2900
    %v2902 = vmul.f32 1.0, %v2901
    %v2903 = vtanh.pop %v2896
    %v2904 = vxor.u32 %v2896, 2147483648
    %v2905 = vmul.f32 %v2904, 1.442695
    %v2906 = vpow.pop %v2905
    %v2907 = vadd.f32 %v2906, 1.0
    %v2908 = vrcp.pop %v2907
    %v2909 = vmul.f32 1.0, %v2908
    %v2911 = vrot.slane %v2809, 2
    %v2913 = vmul.f32 %v2902, %v2911
    %v2914 = vmul.f32 %v2902, %v2903
    %2916 = vrot.lane.b32.xlu0 %v2914, 64
    %v2917 = vpop.permute.xlu0 %2916
    %v2919 = vadd.f32 %v2913, %v2917
    %v2920 = vtanh.pop %v2919
    %v2921 = vmul.f32 %v2909, %v2920
    %v2923 = vrot.slane %v2921, 2
    %2924 = vrot.lane.b32.xlu0 %v2923, 64
    %v2925 = vpop.permute.xlu0 %2924
    %v2926 = vsel %vm1740, %v2925, 0
    %2928 = vmatprep.subr.mxu0 0.0
    %2929 = vmatpush1.msra.mxu0 0.0
    %2930 = vmatprep.subr.mxu0 0.0
    %2931 = vmatpush1.msra.mxu0 0.0
    %2932 = vmatprep.subr.mxu0 0.0
    %2933 = vmatpush1.msra.mxu0 0.0
    %2934 = vmatprep.subr.mxu0 0.0
    %2935 = vmatpush1.msra.mxu0 0.0
    %2936 = vmatprep.subr.mxu0 0.0
    %2937 = vmatpush1.msra.mxu0 0.0
    %2938 = vmatprep.subr.mxu0 0.0
    %2939 = vmatpush1.msra.mxu0 0.0
    %2940 = vmatprep.subr.mxu0 0.0
    %2941 = vmatpush1.msra.mxu0 0.0
    %2942 = vmatprep.subr.mxu0 0.0
    %2943 = vmatpush1.msra.mxu0 0.0
    %2944 = vmatprep.subr.mxu0 %v1556
    %2945 = vmatpush1.msra.mxu0 %v1555
    %2946 = vmatprep.subr.mxu0 %v1554
    %2947 = vmatpush1.msra.mxu0 %v1553
    %2948 = vmatprep.subr.mxu0 %v1552
    %2949 = vmatpush1.msra.mxu0 %v1551
    %2950 = vmatprep.subr.mxu0 %v1550
    %2951 = vmatpush1.msra.mxu0 %v1549
    %2952 = vmatprep.subr.mxu0 %v1548
    %2953 = vmatpush1.msra.mxu0 %v1547
    %2954 = vmatprep.subr.mxu0 %v1546
    %2955 = vmatpush1.msra.mxu0 %v1545
    %2956 = vmatprep.subr.mxu0 %v1544
    %2957 = vmatpush1.msra.mxu0 %v1543
    %2958 = vmatprep.subr.mxu0 %v1542
    %2959 = vmatpush1.msra.mxu0 %v1541
    %2960 = vmatprep.subr.mxu0 0.0
    %2961 = vmatpush2.msra.mxu0 0.0
    %2962 = vmatprep.subr.mxu0 0.0
    %2963 = vmatpush2.msra.mxu0 0.0
    %2964 = vmatprep.subr.mxu0 0.0
    %2965 = vmatpush2.msra.mxu0 0.0
    %2966 = vmatprep.subr.mxu0 0.0
    %2967 = vmatpush2.msra.mxu0 0.0
    %2968 = vmatprep.subr.mxu0 0.0
    %2969 = vmatpush2.msra.mxu0 0.0
    %2970 = vmatprep.subr.mxu0 0.0
    %2971 = vmatpush2.msra.mxu0 0.0
    %2972 = vmatprep.subr.mxu0 0.0
    %2973 = vmatpush2.msra.mxu0 0.0
    %2974 = vmatprep.subr.mxu0 0.0
    %2975 = vmatpush2.msra.mxu0 0.0
    %2976 = vmatprep.subr.mxu0 0.0
    %2977 = vmatpush2.msra.mxu0 0.0
    %2978 = vmatprep.subr.mxu0 0.0
    %2979 = vmatpush2.msra.mxu0 0.0
    %2980 = vmatprep.subr.mxu0 0.0
    %2981 = vmatpush2.msra.mxu0 0.0
    %2982 = vmatprep.subr.mxu0 0.0
    %2983 = vmatpush2.msra.mxu0 0.0
    %2984 = vmatprep.subr.mxu0 0.0
    %2985 = vmatpush2.msra.mxu0 0.0
    %2986 = vmatprep.subr.mxu0 0.0
    %2987 = vmatpush2.msra.mxu0 0.0
    %2988 = vmatprep.subr.mxu0 0.0
    %2989 = vmatpush2.msra.mxu0 0.0
    %2990 = vmatprep.subr.mxu0 0.0
    %2991 = vmatpush2.msra.mxu0 0.0
    %2992 = vmatprep.mubr.f32.mxu0 0.0
    %2993 = vmatmul.mubr.f32.gmra.mxu0 %v2926
    %v2994 = vpop.f32.mrf.mxu0
    %v2995 = vadd.f32 0.0, %v2994
    %v2996 = vpop.f32.mrf.mxu0
    %v2997 = vadd.f32 0.0, %v2996
    %2998 = vdwg.mxu0
    %v2999 = vadd.f32 %v1736, %v2995
    %v3000 = vadd.f32 %v1738, %v2997
    %v3001 = vxor.u32 %v2999, 2147483648
    %v3002 = vmul.f32 %v3001, 1.442695
    %v3003 = vpow.pop %v3002
    %v3004 = vadd.f32 %v3003, 1.0
    %v3005 = vrcp.pop %v3004
    %v3006 = vmul.f32 1.0, %v3005
    %v3007 = vtanh.pop %v3000
    %v3008 = vxor.u32 %v3000, 2147483648
    %v3009 = vmul.f32 %v3008, 1.442695
    %v3010 = vpow.pop %v3009
    %v3011 = vadd.f32 %v3010, 1.0
    %v3012 = vrcp.pop %v3011
    %v3013 = vmul.f32 1.0, %v3012
    %v3015 = vrot.slane %v2919, 2
    %v3017 = vmul.f32 %v3006, %v3015
    %v3018 = vmul.f32 %v3006, %v3007
    %3020 = vrot.lane.b32.xlu0 %v3018, 64
    %v3021 = vpop.permute.xlu0 %3020
    %v3023 = vadd.f32 %v3017, %v3021
    %v3024 = vtanh.pop %v3023
    %v3025 = vmul.f32 %v3013, %v3024
    %3027 = vrot.lane.b32.xlu0 %v3025, 64
    %v3028 = vpop.permute.xlu0 %3027
    %v3029 = vsel %vm1740, %v3028, 0
    %3031 = vmatprep.subr.mxu0 0.0
    %3032 = vmatpush1.msra.mxu0 0.0
    %3033 = vmatprep.subr.mxu0 0.0
    %3034 = vmatpush1.msra.mxu0 0.0
    %3035 = vmatprep.subr.mxu0 0.0
    %3036 = vmatpush1.msra.mxu0 0.0
    %3037 = vmatprep.subr.mxu0 0.0
    %3038 = vmatpush1.msra.mxu0 0.0
    %3039 = vmatprep.subr.mxu0 0.0
    %3040 = vmatpush1.msra.mxu0 0.0
    %3041 = vmatprep.subr.mxu0 0.0
    %3042 = vmatpush1.msra.mxu0 0.0
    %3043 = vmatprep.subr.mxu0 0.0
    %3044 = vmatpush1.msra.mxu0 0.0
    %3045 = vmatprep.subr.mxu0 0.0
    %3046 = vmatpush1.msra.mxu0 0.0
    %3047 = vmatprep.subr.mxu0 %v1556
    %3048 = vmatpush1.msra.mxu0 %v1555
    %3049 = vmatprep.subr.mxu0 %v1554
    %3050 = vmatpush1.msra.mxu0 %v1553
    %3051 = vmatprep.subr.mxu0 %v1552
    %3052 = vmatpush1.msra.mxu0 %v1551
    %3053 = vmatprep.subr.mxu0 %v1550
    %3054 = vmatpush1.msra.mxu0 %v1549
    %3055 = vmatprep.subr.mxu0 %v1548
    %3056 = vmatpush1.msra.mxu0 %v1547
    %3057 = vmatprep.subr.mxu0 %v1546
    %3058 = vmatpush1.msra.mxu0 %v1545
    %3059 = vmatprep.subr.mxu0 %v1544
    %3060 = vmatpush1.msra.mxu0 %v1543
    %3061 = vmatprep.subr.mxu0 %v1542
    %3062 = vmatpush1.msra.mxu0 %v1541
    %3063 = vmatprep.subr.mxu0 0.0
    %3064 = vmatpush2.msra.mxu0 0.0
    %3065 = vmatprep.subr.mxu0 0.0
    %3066 = vmatpush2.msra.mxu0 0.0
    %3067 = vmatprep.subr.mxu0 0.0
    %3068 = vmatpush2.msra.mxu0 0.0
    %3069 = vmatprep.subr.mxu0 0.0
    %3070 = vmatpush2.msra.mxu0 0.0
    %3071 = vmatprep.subr.mxu0 0.0
    %3072 = vmatpush2.msra.mxu0 0.0
    %3073 = vmatprep.subr.mxu0 0.0
    %3074 = vmatpush2.msra.mxu0 0.0
    %3075 = vmatprep.subr.mxu0 0.0
    %3076 = vmatpush2.msra.mxu0 0.0
    %3077 = vmatprep.subr.mxu0 0.0
    %3078 = vmatpush2.msra.mxu0 0.0
    %3079 = vmatprep.subr.mxu0 0.0
    %3080 = vmatpush2.msra.mxu0 0.0
    %3081 = vmatprep.subr.mxu0 0.0
    %3082 = vmatpush2.msra.mxu0 0.0
    %3083 = vmatprep.subr.mxu0 0.0
    %3084 = vmatpush2.msra.mxu0 0.0
    %3085 = vmatprep.subr.mxu0 0.0
    %3086 = vmatpush2.msra.mxu0 0.0
    %3087 = vmatprep.subr.mxu0 0.0
    %3088 = vmatpush2.msra.mxu0 0.0
    %3089 = vmatprep.subr.mxu0 0.0
    %3090 = vmatpush2.msra.mxu0 0.0
    %3091 = vmatprep.subr.mxu0 0.0
    %3092 = vmatpush2.msra.mxu0 0.0
    %3093 = vmatprep.subr.mxu0 0.0
    %3094 = vmatpush2.msra.mxu0 0.0
    %3095 = vmatprep.mubr.f32.mxu0 0.0
    %3096 = vmatmul.mubr.f32.gmra.mxu0 %v3029
    %v3097 = vpop.f32.mrf.mxu0
    %v3098 = vadd.f32 0.0, %v3097
    %v3099 = vpop.f32.mrf.mxu0
    %v3100 = vadd.f32 0.0, %v3099
    %3101 = vdwg.mxu0
    %v3104 = vrot.slane %v3098, 2
    %v3105 = vrot.slane %v3100, 2
    %v3108 = vadd.f32 %v1730, %v3104
    %v3109 = vadd.f32 %v1732, %v3105
    %v3110 = vxor.u32 %v3108, 2147483648
    %v3111 = vmul.f32 %v3110, 1.442695
    %v3112 = vpow.pop %v3111
    %v3113 = vadd.f32 %v3112, 1.0
    %v3114 = vrcp.pop %v3113
    %v3115 = vmul.f32 1.0, %v3114
    %v3116 = vtanh.pop %v3109
    %v3117 = vxor.u32 %v3109, 2147483648
    %v3118 = vmul.f32 %v3117, 1.442695
    %v3119 = vpow.pop %v3118
    %v3120 = vadd.f32 %v3119, 1.0
    %v3121 = vrcp.pop %v3120
    %v3122 = vmul.f32 1.0, %v3121
    %v3124 = vrot.slane %v3023, 2
    %v3126 = vmul.f32 %v3115, %v3124
    %v3127 = vmul.f32 %v3115, %v3116
    %3129 = vrot.lane.b32.xlu0 %v3127, 64
    %v3130 = vpop.permute.xlu0 %3129
    %v3132 = vadd.f32 %v3126, %v3130
    %v3133 = vtanh.pop %v3132
    %v3134 = vmul.f32 %v3122, %v3133
    %v3136 = vrot.slane %v3134, 6
    %3137 = vrot.lane.b32.xlu0 %v3136, 64
    %v3138 = vpop.permute.xlu0 %3137
    %v3139 = vsel %vm1740, %v3138, 0
    %3141 = vmatprep.subr.mxu0 0.0
    %3142 = vmatpush1.msra.mxu0 0.0
    %3143 = vmatprep.subr.mxu0 0.0
    %3144 = vmatpush1.msra.mxu0 0.0
    %3145 = vmatprep.subr.mxu0 0.0
    %3146 = vmatpush1.msra.mxu0 0.0
    %3147 = vmatprep.subr.mxu0 0.0
    %3148 = vmatpush1.msra.mxu0 0.0
    %3149 = vmatprep.subr.mxu0 0.0
    %3150 = vmatpush1.msra.mxu0 0.0
    %3151 = vmatprep.subr.mxu0 0.0
    %3152 = vmatpush1.msra.mxu0 0.0
    %3153 = vmatprep.subr.mxu0 0.0
    %3154 = vmatpush1.msra.mxu0 0.0
    %3155 = vmatprep.subr.mxu0 0.0
    %3156 = vmatpush1.msra.mxu0 0.0
    %3157 = vmatprep.subr.mxu0 %v1556
    %3158 = vmatpush1.msra.mxu0 %v1555
    %3159 = vmatprep.subr.mxu0 %v1554
    %3160 = vmatpush1.msra.mxu0 %v1553
    %3161 = vmatprep.subr.mxu0 %v1552
    %3162 = vmatpush1.msra.mxu0 %v1551
    %3163 = vmatprep.subr.mxu0 %v1550
    %3164 = vmatpush1.msra.mxu0 %v1549
    %3165 = vmatprep.subr.mxu0 %v1548
    %3166 = vmatpush1.msra.mxu0 %v1547
    %3167 = vmatprep.subr.mxu0 %v1546
    %3168 = vmatpush1.msra.mxu0 %v1545
    %3169 = vmatprep.subr.mxu0 %v1544
    %3170 = vmatpush1.msra.mxu0 %v1543
    %3171 = vmatprep.subr.mxu0 %v1542
    %3172 = vmatpush1.msra.mxu0 %v1541
    %3173 = vmatprep.subr.mxu0 0.0
    %3174 = vmatpush2.msra.mxu0 0.0
    %3175 = vmatprep.subr.mxu0 0.0
    %3176 = vmatpush2.msra.mxu0 0.0
    %3177 = vmatprep.subr.mxu0 0.0
    %3178 = vmatpush2.msra.mxu0 0.0
    %3179 = vmatprep.subr.mxu0 0.0
    %3180 = vmatpush2.msra.mxu0 0.0
    %3181 = vmatprep.subr.mxu0 0.0
    %3182 = vmatpush2.msra.mxu0 0.0
    %3183 = vmatprep.subr.mxu0 0.0
    %3184 = vmatpush2.msra.mxu0 0.0
    %3185 = vmatprep.subr.mxu0 0.0
    %3186 = vmatpush2.msra.mxu0 0.0
    %3187 = vmatprep.subr.mxu0 0.0
    %3188 = vmatpush2.msra.mxu0 0.0
    %3189 = vmatprep.subr.mxu0 0.0
    %3190 = vmatpush2.msra.mxu0 0.0
    %3191 = vmatprep.subr.mxu0 0.0
    %3192 = vmatpush2.msra.mxu0 0.0
    %3193 = vmatprep.subr.mxu0 0.0
    %3194 = vmatpush2.msra.mxu0 0.0
    %3195 = vmatprep.subr.mxu0 0.0
    %3196 = vmatpush2.msra.mxu0 0.0
    %3197 = vmatprep.subr.mxu0 0.0
    %3198 = vmatpush2.msra.mxu0 0.0
    %3199 = vmatprep.subr.mxu0 0.0
    %3200 = vmatpush2.msra.mxu0 0.0
    %3201 = vmatprep.subr.mxu0 0.0
    %3202 = vmatpush2.msra.mxu0 0.0
    %3203 = vmatprep.subr.mxu0 0.0
    %3204 = vmatpush2.msra.mxu0 0.0
    %3205 = vmatprep.mubr.f32.mxu0 0.0
    %3206 = vmatmul.mubr.f32.gmra.mxu0 %v3139
    %v3207 = vpop.f32.mrf.mxu0
    %v3208 = vadd.f32 0.0, %v3207
    %v3209 = vpop.f32.mrf.mxu0
    %v3210 = vadd.f32 0.0, %v3209
    %3211 = vdwg.mxu0
    %v3214 = vrot.slane %v3208, 4
    %v3215 = vrot.slane %v3210, 4
    %v3218 = vadd.f32 %v1730, %v3214
    %v3219 = vadd.f32 %v1732, %v3215
    %v3220 = vxor.u32 %v3218, 2147483648
    %v3221 = vmul.f32 %v3220, 1.442695
    %v3222 = vpow.pop %v3221
    %v3223 = vadd.f32 %v3222, 1.0
    %v3224 = vrcp.pop %v3223
    %v3225 = vmul.f32 1.0, %v3224
    %v3226 = vtanh.pop %v3219
    %v3227 = vxor.u32 %v3219, 2147483648
    %v3228 = vmul.f32 %v3227, 1.442695
    %v3229 = vpow.pop %v3228
    %v3230 = vadd.f32 %v3229, 1.0
    %v3231 = vrcp.pop %v3230
    %v3232 = vmul.f32 1.0, %v3231
    %v3234 = vrot.slane %v3132, 2
    %v3236 = vmul.f32 %v3225, %v3234
    %v3237 = vmul.f32 %v3225, %v3226
    %3239 = vrot.lane.b32.xlu0 %v3237, 64
    %v3240 = vpop.permute.xlu0 %3239
    %v3242 = vadd.f32 %v3236, %v3240
    %v3243 = vtanh.pop %v3242
    %v3244 = vmul.f32 %v3232, %v3243
    %v3246 = vrot.slane %v3244, 4
    %3247 = vrot.lane.b32.xlu0 %v3246, 64
    %v3248 = vpop.permute.xlu0 %3247
    %v3249 = vsel %vm1740, %v3248, 0
    %3251 = vmatprep.subr.mxu0 0.0
    %3252 = vmatpush1.msra.mxu0 0.0
    %3253 = vmatprep.subr.mxu0 0.0
    %3254 = vmatpush1.msra.mxu0 0.0
    %3255 = vmatprep.subr.mxu0 0.0
    %3256 = vmatpush1.msra.mxu0 0.0
    %3257 = vmatprep.subr.mxu0 0.0
    %3258 = vmatpush1.msra.mxu0 0.0
    %3259 = vmatprep.subr.mxu0 0.0
    %3260 = vmatpush1.msra.mxu0 0.0
    %3261 = vmatprep.subr.mxu0 0.0
    %3262 = vmatpush1.msra.mxu0 0.0
    %3263 = vmatprep.subr.mxu0 0.0
    %3264 = vmatpush1.msra.mxu0 0.0
    %3265 = vmatprep.subr.mxu0 0.0
    %3266 = vmatpush1.msra.mxu0 0.0
    %3267 = vmatprep.subr.mxu0 %v1556
    %3268 = vmatpush1.msra.mxu0 %v1555
    %3269 = vmatprep.subr.mxu0 %v1554
    %3270 = vmatpush1.msra.mxu0 %v1553
    %3271 = vmatprep.subr.mxu0 %v1552
    %3272 = vmatpush1.msra.mxu0 %v1551
    %3273 = vmatprep.subr.mxu0 %v1550
    %3274 = vmatpush1.msra.mxu0 %v1549
    %3275 = vmatprep.subr.mxu0 %v1548
    %3276 = vmatpush1.msra.mxu0 %v1547
    %3277 = vmatprep.subr.mxu0 %v1546
    %3278 = vmatpush1.msra.mxu0 %v1545
    %3279 = vmatprep.subr.mxu0 %v1544
    %3280 = vmatpush1.msra.mxu0 %v1543
    %3281 = vmatprep.subr.mxu0 %v1542
    %3282 = vmatpush1.msra.mxu0 %v1541
    %3283 = vmatprep.subr.mxu0 0.0
    %3284 = vmatpush2.msra.mxu0 0.0
    %3285 = vmatprep.subr.mxu0 0.0
    %3286 = vmatpush2.msra.mxu0 0.0
    %3287 = vmatprep.subr.mxu0 0.0
    %3288 = vmatpush2.msra.mxu0 0.0
    %3289 = vmatprep.subr.mxu0 0.0
    %3290 = vmatpush2.msra.mxu0 0.0
    %3291 = vmatprep.subr.mxu0 0.0
    %3292 = vmatpush2.msra.mxu0 0.0
    %3293 = vmatprep.subr.mxu0 0.0
    %3294 = vmatpush2.msra.mxu0 0.0
    %3295 = vmatprep.subr.mxu0 0.0
    %3296 = vmatpush2.msra.mxu0 0.0
    %3297 = vmatprep.subr.mxu0 0.0
    %3298 = vmatpush2.msra.mxu0 0.0
    %3299 = vmatprep.subr.mxu0 0.0
    %3300 = vmatpush2.msra.mxu0 0.0
    %3301 = vmatprep.subr.mxu0 0.0
    %3302 = vmatpush2.msra.mxu0 0.0
    %3303 = vmatprep.subr.mxu0 0.0
    %3304 = vmatpush2.msra.mxu0 0.0
    %3305 = vmatprep.subr.mxu0 0.0
    %3306 = vmatpush2.msra.mxu0 0.0
    %3307 = vmatprep.subr.mxu0 0.0
    %3308 = vmatpush2.msra.mxu0 0.0
    %3309 = vmatprep.subr.mxu0 0.0
    %3310 = vmatpush2.msra.mxu0 0.0
    %3311 = vmatprep.subr.mxu0 0.0
    %3312 = vmatpush2.msra.mxu0 0.0
    %3313 = vmatprep.subr.mxu0 0.0
    %3314 = vmatpush2.msra.mxu0 0.0
    %3315 = vmatprep.mubr.f32.mxu0 0.0
    %3316 = vmatmul.mubr.f32.gmra.mxu0 %v3249
    %v3317 = vpop.f32.mrf.mxu0
    %v3318 = vadd.f32 0.0, %v3317
    %v3319 = vpop.f32.mrf.mxu0
    %v3320 = vadd.f32 0.0, %v3319
    %3321 = vdwg.mxu0
    %v3324 = vrot.slane %v3318, 6
    %v3325 = vrot.slane %v3320, 6
    %v3328 = vadd.f32 %v1730, %v3324
    %v3329 = vadd.f32 %v1732, %v3325
    %v3330 = vxor.u32 %v3328, 2147483648
    %v3331 = vmul.f32 %v3330, 1.442695
    %v3332 = vpow.pop %v3331
    %v3333 = vadd.f32 %v3332, 1.0
    %v3334 = vrcp.pop %v3333
    %v3335 = vmul.f32 1.0, %v3334
    %v3336 = vtanh.pop %v3329
    %v3337 = vxor.u32 %v3329, 2147483648
    %v3338 = vmul.f32 %v3337, 1.442695
    %v3339 = vpow.pop %v3338
    %v3340 = vadd.f32 %v3339, 1.0
    %v3341 = vrcp.pop %v3340
    %v3342 = vmul.f32 1.0, %v3341
    %v3344 = vrot.slane %v3242, 2
    %v3346 = vmul.f32 %v3335, %v3344
    %v3347 = vmul.f32 %v3335, %v3336
    %3349 = vrot.lane.b32.xlu0 %v3347, 64
    %v3350 = vpop.permute.xlu0 %3349
    %v3352 = vadd.f32 %v3346, %v3350
    %v3353 = vtanh.pop %v3352
    %v3354 = vmul.f32 %v3342, %v3353
    %v3356 = vrot.slane %v3354, 2
    %3357 = vrot.lane.b32.xlu0 %v3356, 64
    %v3358 = vpop.permute.xlu0 %3357
    %v3359 = vsel %vm1740, %v3358, 0
    %3361 = vmatprep.subr.mxu0 0.0
    %3362 = vmatpush1.msra.mxu0 0.0
    %3363 = vmatprep.subr.mxu0 0.0
    %3364 = vmatpush1.msra.mxu0 0.0
    %3365 = vmatprep.subr.mxu0 0.0
    %3366 = vmatpush1.msra.mxu0 0.0
    %3367 = vmatprep.subr.mxu0 0.0
    %3368 = vmatpush1.msra.mxu0 0.0
    %3369 = vmatprep.subr.mxu0 0.0
    %3370 = vmatpush1.msra.mxu0 0.0
    %3371 = vmatprep.subr.mxu0 0.0
    %3372 = vmatpush1.msra.mxu0 0.0
    %3373 = vmatprep.subr.mxu0 0.0
    %3374 = vmatpush1.msra.mxu0 0.0
    %3375 = vmatprep.subr.mxu0 0.0
    %3376 = vmatpush1.msra.mxu0 0.0
    %3377 = vmatprep.subr.mxu0 %v1556
    %3378 = vmatpush1.msra.mxu0 %v1555
    %3379 = vmatprep.subr.mxu0 %v1554
    %3380 = vmatpush1.msra.mxu0 %v1553
    %3381 = vmatprep.subr.mxu0 %v1552
    %3382 = vmatpush1.msra.mxu0 %v1551
    %3383 = vmatprep.subr.mxu0 %v1550
    %3384 = vmatpush1.msra.mxu0 %v1549
    %3385 = vmatprep.subr.mxu0 %v1548
    %3386 = vmatpush1.msra.mxu0 %v1547
    %3387 = vmatprep.subr.mxu0 %v1546
    %3388 = vmatpush1.msra.mxu0 %v1545
    %3389 = vmatprep.subr.mxu0 %v1544
    %3390 = vmatpush1.msra.mxu0 %v1543
    %3391 = vmatprep.subr.mxu0 %v1542
    %3392 = vmatpush1.msra.mxu0 %v1541
    %3393 = vmatprep.subr.mxu0 0.0
    %3394 = vmatpush2.msra.mxu0 0.0
    %3395 = vmatprep.subr.mxu0 0.0
    %3396 = vmatpush2.msra.mxu0 0.0
    %3397 = vmatprep.subr.mxu0 0.0
    %3398 = vmatpush2.msra.mxu0 0.0
    %3399 = vmatprep.subr.mxu0 0.0
    %3400 = vmatpush2.msra.mxu0 0.0
    %3401 = vmatprep.subr.mxu0 0.0
    %3402 = vmatpush2.msra.mxu0 0.0
    %3403 = vmatprep.subr.mxu0 0.0
    %3404 = vmatpush2.msra.mxu0 0.0
    %3405 = vmatprep.subr.mxu0 0.0
    %3406 = vmatpush2.msra.mxu0 0.0
    %3407 = vmatprep.subr.mxu0 0.0
    %3408 = vmatpush2.msra.mxu0 0.0
    %3409 = vmatprep.subr.mxu0 0.0
    %3410 = vmatpush2.msra.mxu0 0.0
    %3411 = vmatprep.subr.mxu0 0.0
    %3412 = vmatpush2.msra.mxu0 0.0
    %3413 = vmatprep.subr.mxu0 0.0
    %3414 = vmatpush2.msra.mxu0 0.0
    %3415 = vmatprep.subr.mxu0 0.0
    %3416 = vmatpush2.msra.mxu0 0.0
    %3417 = vmatprep.subr.mxu0 0.0
    %3418 = vmatpush2.msra.mxu0 0.0
    %3419 = vmatprep.subr.mxu0 0.0
    %3420 = vmatpush2.msra.mxu0 0.0
    %3421 = vmatprep.subr.mxu0 0.0
    %3422 = vmatpush2.msra.mxu0 0.0
    %3423 = vmatprep.subr.mxu0 0.0
    %3424 = vmatpush2.msra.mxu0 0.0
    %3425 = vmatprep.mubr.f32.mxu0 0.0
    %3426 = vmatmul.mubr.f32.gmra.mxu0 %v3359
    %v3427 = vpop.f32.mrf.mxu0
    %v3428 = vadd.f32 0.0, %v3427
    %v3429 = vpop.f32.mrf.mxu0
    %v3430 = vadd.f32 0.0, %v3429
    %3431 = vdwg.mxu0
    %v3432 = vadd.f32 %v1730, %v3428
    %v3433 = vadd.f32 %v1732, %v3430
    %v3434 = vxor.u32 %v3432, 2147483648
    %v3435 = vmul.f32 %v3434, 1.442695
    %v3436 = vpow.pop %v3435
    %v3437 = vadd.f32 %v3436, 1.0
    %v3438 = vrcp.pop %v3437
    %v3439 = vmul.f32 1.0, %v3438
    %v3440 = vtanh.pop %v3433
    %v3441 = vxor.u32 %v3433, 2147483648
    %v3442 = vmul.f32 %v3441, 1.442695
    %v3443 = vpow.pop %v3442
    %v3444 = vadd.f32 %v3443, 1.0
    %v3445 = vrcp.pop %v3444
    %v3446 = vmul.f32 1.0, %v3445
    %v3448 = vrot.slane %v3352, 2
    %v3450 = vmul.f32 %v3439, %v3448
    %v3451 = vmul.f32 %v3439, %v3440
    %3453 = vrot.lane.b32.xlu0 %v3451, 64
    %v3454 = vpop.permute.xlu0 %3453
    %v3456 = vadd.f32 %v3450, %v3454
    %v3457 = vtanh.pop %v3456
    %v3458 = vmul.f32 %v3446, %v3457
    %v3460 = vsel %vm1740, %v1841, %v3458
    %3461 = vrot.lane.b32.xlu0 %v1947, 64
    %v3462 = vpop.permute.xlu0 %3461
    %v3464 = vsel %vm1740, %v3462, %v3354
    %3465 = vrot.lane.b32.xlu0 %v2057, 64
    %v3466 = vpop.permute.xlu0 %3465
    %v3468 = vsel %vm1740, %v3466, %v3244
    %3469 = vrot.lane.b32.xlu0 %v2167, 64
    %v3470 = vpop.permute.xlu0 %3469
    %v3472 = vsel %vm1740, %v3470, %v3134
    %v3474 = vsel %vm1740, %v2274, %v3025
    %3475 = vrot.lane.b32.xlu0 %v2380, 64
    %v3476 = vpop.permute.xlu0 %3475
    %v3478 = vsel %vm1740, %v3476, %v2921
    %3479 = vrot.lane.b32.xlu0 %v2490, 64
    %v3480 = vpop.permute.xlu0 %3479
    %v3482 = vsel %vm1740, %v3480, %v2811
    %3484 = vrot.lane.b32.xlu0 %v2600, 64
    %v3485 = vpop.permute.xlu0 %3484
    %v3487 = vsel %vm1740, %v3485, %v2701
    %vm3488 = vcmask 1041408
    %v3489 = vsel %vm3488, %v3460, %v3464
    %vm3490 = vcmask 1043456
    %v3491 = vsel %vm3490, %v3489, %v3468
    %vm3492 = vcmask 1045504
    %v3493 = vsel %vm3492, %v3491, %v3472
    %v3494 = vsel %vm3488, %v3474, %v3478
    %v3495 = vsel %vm3490, %v3494, %v3482
    %v3496 = vsel %vm3492, %v3495, %v3487
    %v3497 = vld [vmem:[%s19] sm:$0xff]
    %v3498 = vld [vmem:[%s19 + $0x8] sm:$0xff]
    %v3499 = vld [vmem:[%s19 + $0x10] sm:$0xff]
    %v3500 = vld [vmem:[%s19 + $0x18] sm:$0xff]
    %v3501 = vld [vmem:[%s19 + $0x20] sm:$0xff]
    %v3502 = vld [vmem:[%s19 + $0x28] sm:$0xff]
    %v3503 = vld [vmem:[%s19 + $0x30] sm:$0xff]
    %v3504 = vld [vmem:[%s19 + $0x38] sm:$0xff]
    %v3505 = vld [vmem:[%s19 + $0x40] sm:$0xff]
    %v3506 = vld [vmem:[%s19 + $0x48] sm:$0xff]
    %v3507 = vld [vmem:[%s19 + $0x50] sm:$0xff]
    %v3508 = vld [vmem:[%s19 + $0x58] sm:$0xff]
    %v3509 = vld [vmem:[%s19 + $0x60] sm:$0xff]
    %v3510 = vld [vmem:[%s19 + $0x68] sm:$0xff]
    %v3511 = vld [vmem:[%s19 + $0x70] sm:$0xff]
    %v3512 = vld [vmem:[%s19 + $0x78] sm:$0xff]
    %v3513 = vld [vmem:[%s19 + $0x80] sm:$0xff]
    %v3514 = vld [vmem:[%s19 + $0x88] sm:$0xff]
    %v3515 = vld [vmem:[%s19 + $0x90] sm:$0xff]
    %v3516 = vld [vmem:[%s19 + $0x98] sm:$0xff]
    %v3517 = vld [vmem:[%s19 + $0xa0] sm:$0xff]
    %v3518 = vld [vmem:[%s19 + $0xa8] sm:$0xff]
    %v3519 = vld [vmem:[%s19 + $0xb0] sm:$0xff]
    %v3520 = vld [vmem:[%s19 + $0xb8] sm:$0xff]
    %v3521 = vld [vmem:[%s19 + $0xc0] sm:$0xff]
    %v3522 = vld [vmem:[%s19 + $0xc8] sm:$0xff]
    %v3523 = vld [vmem:[%s19 + $0xd0] sm:$0xff]
    %v3524 = vld [vmem:[%s19 + $0xd8] sm:$0xff]
    %v3525 = vld [vmem:[%s19 + $0xe0] sm:$0xff]
    %v3526 = vld [vmem:[%s19 + $0xe8] sm:$0xff]
    %v3527 = vld [vmem:[%s19 + $0xf0] sm:$0xff]
    %v3528 = vld [vmem:[%s19 + $0xf8] sm:$0xff]
    %v3529 = vld [vmem:[#allocation20] sm:$0xff]
    %v3530 = vld [vmem:[#allocation20 + $0x8] sm:$0xff]
    %v3531 = vld [vmem:[#allocation20 + $0x10] sm:$0xff]
    %v3532 = vld [vmem:[#allocation20 + $0x18] sm:$0xff]
    %v3533 = vld [vmem:[#allocation20 + $0x20] sm:$0xff]
    %v3534 = vld [vmem:[#allocation20 + $0x28] sm:$0xff]
    %v3535 = vld [vmem:[#allocation20 + $0x30] sm:$0xff]
    %v3536 = vld [vmem:[#allocation20 + $0x38] sm:$0xff]
    %v3537 = vld [vmem:[#allocation20 + $0x40] sm:$0xff]
    %v3538 = vld [vmem:[#allocation20 + $0x48] sm:$0xff]
    %v3539 = vld [vmem:[#allocation20 + $0x50] sm:$0xff]
    %v3540 = vld [vmem:[#allocation20 + $0x58] sm:$0xff]
    %v3541 = vld [vmem:[#allocation20 + $0x60] sm:$0xff]
    %v3542 = vld [vmem:[#allocation20 + $0x68] sm:$0xff]
    %v3543 = vld [vmem:[#allocation20 + $0x70] sm:$0xff]
    %v3544 = vld [vmem:[#allocation20 + $0x78] sm:$0xff]
    %v3545 = vld [vmem:[%s21] sm:$0x3]
    %v3546 = vld [vmem:[#allocation22] sm:$0xff]
    %v3547 = vld [vmem:[#allocation22 + $0x8] sm:$0xff]
    %v3548 = vld [vmem:[#allocation22 + $0x10] sm:$0xff]
    %v3549 = vld [vmem:[#allocation22 + $0x18] sm:$0xff]
    %v3550 = vld [vmem:[#allocation22 + $0x20] sm:$0xff]
    %v3551 = vld [vmem:[#allocation22 + $0x28] sm:$0xff]
    %v3552 = vld [vmem:[#allocation22 + $0x30] sm:$0xff]
    %v3553 = vld [vmem:[#allocation22 + $0x38] sm:$0xff]
    %v3554 = vld [vmem:[#allocation22 + $0x40] sm:$0xff]
    %v3555 = vld [vmem:[#allocation22 + $0x48] sm:$0xff]
    %v3556 = vld [vmem:[#allocation22 + $0x50] sm:$0xff]
    %v3557 = vld [vmem:[#allocation22 + $0x58] sm:$0xff]
    %v3558 = vld [vmem:[#allocation22 + $0x60] sm:$0xff]
    %v3559 = vld [vmem:[#allocation22 + $0x68] sm:$0xff]
    %v3560 = vld [vmem:[#allocation22 + $0x70] sm:$0xff]
    %v3561 = vld [vmem:[#allocation22 + $0x78] sm:$0xff]
    %v3562 = vld [vmem:[#allocation22 + $0x80] sm:$0xff]
    %v3563 = vld [vmem:[#allocation22 + $0x88] sm:$0xff]
    %v3564 = vld [vmem:[#allocation22 + $0x90] sm:$0xff]
    %v3565 = vld [vmem:[#allocation22 + $0x98] sm:$0xff]
    %v3566 = vld [vmem:[#allocation22 + $0xa0] sm:$0xff]
    %v3567 = vld [vmem:[#allocation22 + $0xa8] sm:$0xff]
    %v3568 = vld [vmem:[#allocation22 + $0xb0] sm:$0xff]
    %v3569 = vld [vmem:[#allocation22 + $0xb8] sm:$0xff]
    %v3570 = vld [vmem:[#allocation22 + $0xc0] sm:$0xff]
    %v3571 = vld [vmem:[#allocation22 + $0xc8] sm:$0xff]
    %v3572 = vld [vmem:[#allocation22 + $0xd0] sm:$0xff]
    %v3573 = vld [vmem:[#allocation22 + $0xd8] sm:$0xff]
    %v3574 = vld [vmem:[#allocation22 + $0xe0] sm:$0xff]
    %v3575 = vld [vmem:[#allocation22 + $0xe8] sm:$0xff]
    %v3576 = vld [vmem:[#allocation22 + $0xf0] sm:$0xff]
    %v3577 = vld [vmem:[#allocation22 + $0xf8] sm:$0xff]
    %v3578 = vld [vmem:[#allocation23] sm:$0xff]
    %v3579 = vld [vmem:[#allocation23 + $0x8] sm:$0xff]
    %v3580 = vld [vmem:[#allocation23 + $0x10] sm:$0xff]
    %v3581 = vld [vmem:[#allocation23 + $0x18] sm:$0xff]
    %v3582 = vld [vmem:[#allocation23 + $0x20] sm:$0xff]
    %v3583 = vld [vmem:[#allocation23 + $0x28] sm:$0xff]
    %v3584 = vld [vmem:[#allocation23 + $0x30] sm:$0xff]
    %v3585 = vld [vmem:[#allocation23 + $0x38] sm:$0xff]
    %v3586 = vld [vmem:[#allocation23 + $0x40] sm:$0xff]
    %v3587 = vld [vmem:[#allocation23 + $0x48] sm:$0xff]
    %v3588 = vld [vmem:[#allocation23 + $0x50] sm:$0xff]
    %v3589 = vld [vmem:[#allocation23 + $0x58] sm:$0xff]
    %v3590 = vld [vmem:[#allocation23 + $0x60] sm:$0xff]
    %v3591 = vld [vmem:[#allocation23 + $0x68] sm:$0xff]
    %v3592 = vld [vmem:[#allocation23 + $0x70] sm:$0xff]
    %v3593 = vld [vmem:[#allocation23 + $0x78] sm:$0xff]
    %v3594 = vld [vmem:[#allocation25] sm:$0x3]
    %v3596 = vlaneseq
    %v3597 = vshrl.u32 %v3596, 7
    %v3598 = vsub.s32 0, %v3597
    %v3599 = vrot.slane %v3545, %v3598
    %v3600 = vlaneseq
    %v3601 = vshrl.u32 %v3600, 7
    %v3602 = vsub.s32 1, %v3601
    %v3603 = vrot.slane %v3545, %v3602
    %3606 = vmatprep.subr.mxu0 %v3528
    %3607 = vmatpush1.msra.mxu0 %v3527
    %3608 = vmatprep.subr.mxu0 %v3526
    %3609 = vmatpush1.msra.mxu0 %v3525
    %3610 = vmatprep.subr.mxu0 %v3524
    %3611 = vmatpush1.msra.mxu0 %v3523
    %3612 = vmatprep.subr.mxu0 %v3522
    %3613 = vmatpush1.msra.mxu0 %v3521
    %3614 = vmatprep.subr.mxu0 %v3520
    %3615 = vmatpush1.msra.mxu0 %v3519
    %3616 = vmatprep.subr.mxu0 %v3518
    %3617 = vmatpush1.msra.mxu0 %v3517
    %3618 = vmatprep.subr.mxu0 %v3516
    %3619 = vmatpush1.msra.mxu0 %v3515
    %3620 = vmatprep.subr.mxu0 %v3514
    %3621 = vmatpush1.msra.mxu0 %v3513
    %3622 = vmatprep.subr.mxu0 %v3512
    %3623 = vmatpush1.msra.mxu0 %v3511
    %3624 = vmatprep.subr.mxu0 %v3510
    %3625 = vmatpush1.msra.mxu0 %v3509
    %3626 = vmatprep.subr.mxu0 %v3508
    %3627 = vmatpush1.msra.mxu0 %v3507
    %3628 = vmatprep.subr.mxu0 %v3506
    %3629 = vmatpush1.msra.mxu0 %v3505
    %3630 = vmatprep.subr.mxu0 %v3504
    %3631 = vmatpush1.msra.mxu0 %v3503
    %3632 = vmatprep.subr.mxu0 %v3502
    %3633 = vmatpush1.msra.mxu0 %v3501
    %3634 = vmatprep.subr.mxu0 %v3500
    %3635 = vmatpush1.msra.mxu0 %v3499
    %3636 = vmatprep.subr.mxu0 %v3498
    %3637 = vmatpush1.msra.mxu0 %v3497
    %3638 = vmatprep.subr.mxu0 0.0
    %3639 = vmatpush2.msra.mxu0 0.0
    %3640 = vmatprep.subr.mxu0 0.0
    %3641 = vmatpush2.msra.mxu0 0.0
    %3642 = vmatprep.subr.mxu0 0.0
    %3643 = vmatpush2.msra.mxu0 0.0
    %3644 = vmatprep.subr.mxu0 0.0
    %3645 = vmatpush2.msra.mxu0 0.0
    %3646 = vmatprep.subr.mxu0 0.0
    %3647 = vmatpush2.msra.mxu0 0.0
    %3648 = vmatprep.subr.mxu0 0.0
    %3649 = vmatpush2.msra.mxu0 0.0
    %3650 = vmatprep.subr.mxu0 0.0
    %3651 = vmatpush2.msra.mxu0 0.0
    %3652 = vmatprep.subr.mxu0 0.0
    %3653 = vmatpush2.msra.mxu0 0.0
    %3654 = vmatprep.subr.mxu0 0.0
    %3655 = vmatpush2.msra.mxu0 0.0
    %3656 = vmatprep.subr.mxu0 0.0
    %3657 = vmatpush2.msra.mxu0 0.0
    %3658 = vmatprep.subr.mxu0 0.0
    %3659 = vmatpush2.msra.mxu0 0.0
    %3660 = vmatprep.subr.mxu0 0.0
    %3661 = vmatpush2.msra.mxu0 0.0
    %3662 = vmatprep.subr.mxu0 0.0
    %3663 = vmatpush2.msra.mxu0 0.0
    %3664 = vmatprep.subr.mxu0 0.0
    %3665 = vmatpush2.msra.mxu0 0.0
    %3666 = vmatprep.subr.mxu0 0.0
    %3667 = vmatpush2.msra.mxu0 0.0
    %3668 = vmatprep.subr.mxu0 0.0
    %3669 = vmatpush2.msra.mxu0 0.0
    %3670 = vmatprep.mubr.f32.mxu0 0.0
    %3671 = vmatmul.mubr.f32.gmra.mxu0 %v3493
    %v3672 = vpop.f32.mrf.mxu0
    %v3673 = vadd.f32 %v3599, %v3672
    %v3674 = vpop.f32.mrf.mxu0
    %v3675 = vadd.f32 %v3603, %v3674
    %3676 = vmatprep.mubr.f32.mxu0 0.0
    %3677 = vmatmul.mubr.f32.gmra.mxu0 %v3496
    %v3678 = vpop.f32.mrf.mxu0
    %v3679 = vadd.f32 %v3599, %v3678
    %v3680 = vpop.f32.mrf.mxu0
    %v3681 = vadd.f32 %v3603, %v3680
    %3682 = vdwg.mxu0
    %v3684 = vlaneseq
    %v3685 = vshrl.u32 %v3684, 7
    %v3686 = vsub.s32 0, %v3685
    %v3687 = vrot.slane %v3594, %v3686
    %v3688 = vlaneseq
    %v3689 = vshrl.u32 %v3688, 7
    %v3690 = vsub.s32 1, %v3689
    %v3691 = vrot.slane %v3594, %v3690
    %3694 = vmatprep.subr.mxu0 %v3577
    %3695 = vmatpush1.msra.mxu0 %v3576
    %3696 = vmatprep.subr.mxu0 %v3575
    %3697 = vmatpush1.msra.mxu0 %v3574
    %3698 = vmatprep.subr.mxu0 %v3573
    %3699 = vmatpush1.msra.mxu0 %v3572
    %3700 = vmatprep.subr.mxu0 %v3571
    %3701 = vmatpush1.msra.mxu0 %v3570
    %3702 = vmatprep.subr.mxu0 %v3569
    %3703 = vmatpush1.msra.mxu0 %v3568
    %3704 = vmatprep.subr.mxu0 %v3567
    %3705 = vmatpush1.msra.mxu0 %v3566
    %3706 = vmatprep.subr.mxu0 %v3565
    %3707 = vmatpush1.msra.mxu0 %v3564
    %3708 = vmatprep.subr.mxu0 %v3563
    %3709 = vmatpush1.msra.mxu0 %v3562
    %3710 = vmatprep.subr.mxu0 %v3561
    %3711 = vmatpush1.msra.mxu0 %v3560
    %3712 = vmatprep.subr.mxu0 %v3559
    %3713 = vmatpush1.msra.mxu0 %v3558
    %3714 = vmatprep.subr.mxu0 %v3557
    %3715 = vmatpush1.msra.mxu0 %v3556
    %3716 = vmatprep.subr.mxu0 %v3555
    %3717 = vmatpush1.msra.mxu0 %v3554
    %3718 = vmatprep.subr.mxu0 %v3553
    %3719 = vmatpush1.msra.mxu0 %v3552
    %3720 = vmatprep.subr.mxu0 %v3551
    %3721 = vmatpush1.msra.mxu0 %v3550
    %3722 = vmatprep.subr.mxu0 %v3549
    %3723 = vmatpush1.msra.mxu0 %v3548
    %3724 = vmatprep.subr.mxu0 %v3547
    %3725 = vmatpush1.msra.mxu0 %v3546
    %3726 = vmatprep.subr.mxu0 0.0
    %3727 = vmatpush2.msra.mxu0 0.0
    %3728 = vmatprep.subr.mxu0 0.0
    %3729 = vmatpush2.msra.mxu0 0.0
    %3730 = vmatprep.subr.mxu0 0.0
    %3731 = vmatpush2.msra.mxu0 0.0
    %3732 = vmatprep.subr.mxu0 0.0
    %3733 = vmatpush2.msra.mxu0 0.0
    %3734 = vmatprep.subr.mxu0 0.0
    %3735 = vmatpush2.msra.mxu0 0.0
    %3736 = vmatprep.subr.mxu0 0.0
    %3737 = vmatpush2.msra.mxu0 0.0
    %3738 = vmatprep.subr.mxu0 0.0
    %3739 = vmatpush2.msra.mxu0 0.0
    %3740 = vmatprep.subr.mxu0 0.0
    %3741 = vmatpush2.msra.mxu0 0.0
    %3742 = vmatprep.subr.mxu0 0.0
    %3743 = vmatpush2.msra.mxu0 0.0
    %3744 = vmatprep.subr.mxu0 0.0
    %3745 = vmatpush2.msra.mxu0 0.0
    %3746 = vmatprep.subr.mxu0 0.0
    %3747 = vmatpush2.msra.mxu0 0.0
    %3748 = vmatprep.subr.mxu0 0.0
    %3749 = vmatpush2.msra.mxu0 0.0
    %3750 = vmatprep.subr.mxu0 0.0
    %3751 = vmatpush2.msra.mxu0 0.0
    %3752 = vmatprep.subr.mxu0 0.0
    %3753 = vmatpush2.msra.mxu0 0.0
    %3754 = vmatprep.subr.mxu0 0.0
    %3755 = vmatpush2.msra.mxu0 0.0
    %3756 = vmatprep.subr.mxu0 0.0
    %3757 = vmatpush2.msra.mxu0 0.0
    %3758 = vmatprep.mubr.f32.mxu0 0.0
    %3759 = vmatmul.mubr.f32.gmra.mxu0 %v3493
    %v3760 = vpop.f32.mrf.mxu0
    %v3761 = vpop.f32.mrf.mxu0
    %3762 = vmatprep.mubr.f32.mxu0 0.0
    %3763 = vmatmul.mubr.f32.gmra.mxu0 %v3496
    %v3764 = vpop.f32.mrf.mxu0
    %v3765 = vadd.f32 %v3687, %v3764
    %v3766 = vpop.f32.mrf.mxu0
    %v3767 = vadd.f32 %v3691, %v3766
    %3768 = vdwg.mxu0
    %3769 = vmatprep.subr.mxu0 0.0
    %3770 = vmatpush1.msra.mxu0 0.0
    %3771 = vmatprep.subr.mxu0 0.0
    %3772 = vmatpush1.msra.mxu0 0.0
    %3773 = vmatprep.subr.mxu0 0.0
    %3774 = vmatpush1.msra.mxu0 0.0
    %3775 = vmatprep.subr.mxu0 0.0
    %3776 = vmatpush1.msra.mxu0 0.0
    %3777 = vmatprep.subr.mxu0 0.0
    %3778 = vmatpush1.msra.mxu0 0.0
    %3779 = vmatprep.subr.mxu0 0.0
    %3780 = vmatpush1.msra.mxu0 0.0
    %3781 = vmatprep.subr.mxu0 0.0
    %3782 = vmatpush1.msra.mxu0 0.0
    %3783 = vmatprep.subr.mxu0 0.0
    %3784 = vmatpush1.msra.mxu0 0.0
    %3785 = vmatprep.subr.mxu0 %v3544
    %3786 = vmatpush1.msra.mxu0 %v3543
    %3787 = vmatprep.subr.mxu0 %v3542
    %3788 = vmatpush1.msra.mxu0 %v3541
    %3789 = vmatprep.subr.mxu0 %v3540
    %3790 = vmatpush1.msra.mxu0 %v3539
    %3791 = vmatprep.subr.mxu0 %v3538
    %3792 = vmatpush1.msra.mxu0 %v3537
    %3793 = vmatprep.subr.mxu0 %v3536
    %3794 = vmatpush1.msra.mxu0 %v3535
    %3795 = vmatprep.subr.mxu0 %v3534
    %3796 = vmatpush1.msra.mxu0 %v3533
    %3797 = vmatprep.subr.mxu0 %v3532
    %3798 = vmatpush1.msra.mxu0 %v3531
    %3799 = vmatprep.subr.mxu0 %v3530
    %3800 = vmatpush1.msra.mxu0 %v3529
    %3801 = vmatprep.subr.mxu0 0.0
    %3802 = vmatpush2.msra.mxu0 0.0
    %3803 = vmatprep.subr.mxu0 0.0
    %3804 = vmatpush2.msra.mxu0 0.0
    %3805 = vmatprep.subr.mxu0 0.0
    %3806 = vmatpush2.msra.mxu0 0.0
    %3807 = vmatprep.subr.mxu0 0.0
    %3808 = vmatpush2.msra.mxu0 0.0
    %3809 = vmatprep.subr.mxu0 0.0
    %3810 = vmatpush2.msra.mxu0 0.0
    %3811 = vmatprep.subr.mxu0 0.0
    %3812 = vmatpush2.msra.mxu0 0.0
    %3813 = vmatprep.subr.mxu0 0.0
    %3814 = vmatpush2.msra.mxu0 0.0
    %3815 = vmatprep.subr.mxu0 0.0
    %3816 = vmatpush2.msra.mxu0 0.0
    %3817 = vmatprep.subr.mxu0 0.0
    %3818 = vmatpush2.msra.mxu0 0.0
    %3819 = vmatprep.subr.mxu0 0.0
    %3820 = vmatpush2.msra.mxu0 0.0
    %3821 = vmatprep.subr.mxu0 0.0
    %3822 = vmatpush2.msra.mxu0 0.0
    %3823 = vmatprep.subr.mxu0 0.0
    %3824 = vmatpush2.msra.mxu0 0.0
    %3825 = vmatprep.subr.mxu0 0.0
    %3826 = vmatpush2.msra.mxu0 0.0
    %3827 = vmatprep.subr.mxu0 0.0
    %3828 = vmatpush2.msra.mxu0 0.0
    %3829 = vmatprep.subr.mxu0 0.0
    %3830 = vmatpush2.msra.mxu0 0.0
    %3831 = vmatprep.subr.mxu0 0.0
    %3832 = vmatpush2.msra.mxu0 0.0
    %3833 = vmatprep.mubr.f32.mxu0 0.0
    %3834 = vmatmul.mubr.f32.gmra.mxu0 %v1742
    %v3835 = vpop.f32.mrf.mxu0
    %v3836 = vadd.f32 0.0, %v3835
    %v3837 = vpop.f32.mrf.mxu0
    %v3838 = vadd.f32 0.0, %v3837
    %3839 = vdwg.mxu0
    %v3840 = vadd.f32 %v3673, %v3836
    %v3841 = vadd.f32 %v3675, %v3838
    %v3842 = vxor.u32 %v3840, 2147483648
    %v3843 = vmul.f32 %v3842, 1.442695
    %v3844 = vpow.pop %v3843
    %v3845 = vadd.f32 %v3844, 1.0
    %v3846 = vrcp.pop %v3845
    %v3847 = vmul.f32 1.0, %v3846
    %v3848 = vtanh.pop %v3841
    %v3849 = vxor.u32 %v3841, 2147483648
    %v3850 = vmul.f32 %v3849, 1.442695
    %v3851 = vpow.pop %v3850
    %v3852 = vadd.f32 %v3851, 1.0
    %v3853 = vrcp.pop %v3852
    %v3854 = vmul.f32 1.0, %v3853
    %v3855 = vmul.f32 %v3847, 0.0
    %v3856 = vmul.f32 %v3847, %v3848
    %3858 = vrot.lane.b32.xlu0 %v3856, 64
    %v3859 = vpop.permute.xlu0 %3858
    %v3861 = vadd.f32 %v3855, %v3859
    %v3862 = vtanh.pop %v3861
    %v3863 = vmul.f32 %v3854, %v3862
    %3865 = vrot.lane.b32.xlu0 %v3863, 64
    %v3866 = vpop.permute.xlu0 %3865
    %v3867 = vsel %vm1740, %v3866, 0
    %3869 = vmatprep.subr.mxu0 0.0
    %3870 = vmatpush1.msra.mxu0 0.0
    %3871 = vmatprep.subr.mxu0 0.0
    %3872 = vmatpush1.msra.mxu0 0.0
    %3873 = vmatprep.subr.mxu0 0.0
    %3874 = vmatpush1.msra.mxu0 0.0
    %3875 = vmatprep.subr.mxu0 0.0
    %3876 = vmatpush1.msra.mxu0 0.0
    %3877 = vmatprep.subr.mxu0 0.0
    %3878 = vmatpush1.msra.mxu0 0.0
    %3879 = vmatprep.subr.mxu0 0.0
    %3880 = vmatpush1.msra.mxu0 0.0
    %3881 = vmatprep.subr.mxu0 0.0
    %3882 = vmatpush1.msra.mxu0 0.0
    %3883 = vmatprep.subr.mxu0 0.0
    %3884 = vmatpush1.msra.mxu0 0.0
    %3885 = vmatprep.subr.mxu0 %v3544
    %3886 = vmatpush1.msra.mxu0 %v3543
    %3887 = vmatprep.subr.mxu0 %v3542
    %3888 = vmatpush1.msra.mxu0 %v3541
    %3889 = vmatprep.subr.mxu0 %v3540
    %3890 = vmatpush1.msra.mxu0 %v3539
    %3891 = vmatprep.subr.mxu0 %v3538
    %3892 = vmatpush1.msra.mxu0 %v3537
    %3893 = vmatprep.subr.mxu0 %v3536
    %3894 = vmatpush1.msra.mxu0 %v3535
    %3895 = vmatprep.subr.mxu0 %v3534
    %3896 = vmatpush1.msra.mxu0 %v3533
    %3897 = vmatprep.subr.mxu0 %v3532
    %3898 = vmatpush1.msra.mxu0 %v3531
    %3899 = vmatprep.subr.mxu0 %v3530
    %3900 = vmatpush1.msra.mxu0 %v3529
    %3901 = vmatprep.subr.mxu0 0.0
    %3902 = vmatpush2.msra.mxu0 0.0
    %3903 = vmatprep.subr.mxu0 0.0
    %3904 = vmatpush2.msra.mxu0 0.0
    %3905 = vmatprep.subr.mxu0 0.0
    %3906 = vmatpush2.msra.mxu0 0.0
    %3907 = vmatprep.subr.mxu0 0.0
    %3908 = vmatpush2.msra.mxu0 0.0
    %3909 = vmatprep.subr.mxu0 0.0
    %3910 = vmatpush2.msra.mxu0 0.0
    %3911 = vmatprep.subr.mxu0 0.0
    %3912 = vmatpush2.msra.mxu0 0.0
    %3913 = vmatprep.subr.mxu0 0.0
    %3914 = vmatpush2.msra.mxu0 0.0
    %3915 = vmatprep.subr.mxu0 0.0
    %3916 = vmatpush2.msra.mxu0 0.0
    %3917 = vmatprep.subr.mxu0 0.0
    %3918 = vmatpush2.msra.mxu0 0.0
    %3919 = vmatprep.subr.mxu0 0.0
    %3920 = vmatpush2.msra.mxu0 0.0
    %3921 = vmatprep.subr.mxu0 0.0
    %3922 = vmatpush2.msra.mxu0 0.0
    %3923 = vmatprep.subr.mxu0 0.0
    %3924 = vmatpush2.msra.mxu0 0.0
    %3925 = vmatprep.subr.mxu0 0.0
    %3926 = vmatpush2.msra.mxu0 0.0
    %3927 = vmatprep.subr.mxu0 0.0
    %3928 = vmatpush2.msra.mxu0 0.0
    %3929 = vmatprep.subr.mxu0 0.0
    %3930 = vmatpush2.msra.mxu0 0.0
    %3931 = vmatprep.subr.mxu0 0.0
    %3932 = vmatpush2.msra.mxu0 0.0
    %3933 = vmatprep.mubr.f32.mxu0 0.0
    %3934 = vmatmul.mubr.f32.gmra.mxu0 %v3867
    %v3935 = vpop.f32.mrf.mxu0
    %v3936 = vadd.f32 0.0, %v3935
    %v3937 = vpop.f32.mrf.mxu0
    %v3938 = vadd.f32 0.0, %v3937
    %3939 = vdwg.mxu0
    %v3942 = vrot.slane %v3936, 6
    %v3943 = vrot.slane %v3938, 6
    %v3946 = vadd.f32 %v3673, %v3942
    %v3947 = vadd.f32 %v3675, %v3943
    %v3948 = vxor.u32 %v3946, 2147483648
    %v3949 = vmul.f32 %v3948, 1.442695
    %v3950 = vpow.pop %v3949
    %v3951 = vadd.f32 %v3950, 1.0
    %v3952 = vrcp.pop %v3951
    %v3953 = vmul.f32 1.0, %v3952
    %v3954 = vtanh.pop %v3947
    %v3955 = vxor.u32 %v3947, 2147483648
    %v3956 = vmul.f32 %v3955, 1.442695
    %v3957 = vpow.pop %v3956
    %v3958 = vadd.f32 %v3957, 1.0
    %v3959 = vrcp.pop %v3958
    %v3960 = vmul.f32 1.0, %v3959
    %v3962 = vrot.slane %v3861, 6
    %v3964 = vmul.f32 %v3953, %v3962
    %v3965 = vmul.f32 %v3953, %v3954
    %3967 = vrot.lane.b32.xlu0 %v3965, 64
    %v3968 = vpop.permute.xlu0 %3967
    %v3970 = vadd.f32 %v3964, %v3968
    %v3971 = vtanh.pop %v3970
    %v3972 = vmul.f32 %v3960, %v3971
    %v3974 = vrot.slane %v3972, 2
    %3975 = vrot.lane.b32.xlu0 %v3974, 64
    %v3976 = vpop.permute.xlu0 %3975
    %v3977 = vsel %vm1740, %v3976, 0
    %3979 = vmatprep.subr.mxu0 0.0
    %3980 = vmatpush1.msra.mxu0 0.0
    %3981 = vmatprep.subr.mxu0 0.0
    %3982 = vmatpush1.msra.mxu0 0.0
    %3983 = vmatprep.subr.mxu0 0.0
    %3984 = vmatpush1.msra.mxu0 0.0
    %3985 = vmatprep.subr.mxu0 0.0
    %3986 = vmatpush1.msra.mxu0 0.0
    %3987 = vmatprep.subr.mxu0 0.0
    %3988 = vmatpush1.msra.mxu0 0.0
    %3989 = vmatprep.subr.mxu0 0.0
    %3990 = vmatpush1.msra.mxu0 0.0
    %3991 = vmatprep.subr.mxu0 0.0
    %3992 = vmatpush1.msra.mxu0 0.0
    %3993 = vmatprep.subr.mxu0 0.0
    %3994 = vmatpush1.msra.mxu0 0.0
    %3995 = vmatprep.subr.mxu0 %v3544
    %3996 = vmatpush1.msra.mxu0 %v3543
    %3997 = vmatprep.subr.mxu0 %v3542
    %3998 = vmatpush1.msra.mxu0 %v3541
    %3999 = vmatprep.subr.mxu0 %v3540
    %4000 = vmatpush1.msra.mxu0 %v3539
    %4001 = vmatprep.subr.mxu0 %v3538
    %4002 = vmatpush1.msra.mxu0 %v3537
    %4003 = vmatprep.subr.mxu0 %v3536
    %4004 = vmatpush1.msra.mxu0 %v3535
    %4005 = vmatprep.subr.mxu0 %v3534
    %4006 = vmatpush1.msra.mxu0 %v3533
    %4007 = vmatprep.subr.mxu0 %v3532
    %4008 = vmatpush1.msra.mxu0 %v3531
    %4009 = vmatprep.subr.mxu0 %v3530
    %4010 = vmatpush1.msra.mxu0 %v3529
    %4011 = vmatprep.subr.mxu0 0.0
    %4012 = vmatpush2.msra.mxu0 0.0
    %4013 = vmatprep.subr.mxu0 0.0
    %4014 = vmatpush2.msra.mxu0 0.0
    %4015 = vmatprep.subr.mxu0 0.0
    %4016 = vmatpush2.msra.mxu0 0.0
    %4017 = vmatprep.subr.mxu0 0.0
    %4018 = vmatpush2.msra.mxu0 0.0
    %4019 = vmatprep.subr.mxu0 0.0
    %4020 = vmatpush2.msra.mxu0 0.0
    %4021 = vmatprep.subr.mxu0 0.0
    %4022 = vmatpush2.msra.mxu0 0.0
    %4023 = vmatprep.subr.mxu0 0.0
    %4024 = vmatpush2.msra.mxu0 0.0
    %4025 = vmatprep.subr.mxu0 0.0
    %4026 = vmatpush2.msra.mxu0 0.0
    %4027 = vmatprep.subr.mxu0 0.0
    %4028 = vmatpush2.msra.mxu0 0.0
    %4029 = vmatprep.subr.mxu0 0.0
    %4030 = vmatpush2.msra.mxu0 0.0
    %4031 = vmatprep.subr.mxu0 0.0
    %4032 = vmatpush2.msra.mxu0 0.0
    %4033 = vmatprep.subr.mxu0 0.0
    %4034 = vmatpush2.msra.mxu0 0.0
    %4035 = vmatprep.subr.mxu0 0.0
    %4036 = vmatpush2.msra.mxu0 0.0
    %4037 = vmatprep.subr.mxu0 0.0
    %4038 = vmatpush2.msra.mxu0 0.0
    %4039 = vmatprep.subr.mxu0 0.0
    %4040 = vmatpush2.msra.mxu0 0.0
    %4041 = vmatprep.subr.mxu0 0.0
    %4042 = vmatpush2.msra.mxu0 0.0
    %4043 = vmatprep.mubr.f32.mxu0 0.0
    %4044 = vmatmul.mubr.f32.gmra.mxu0 %v3977
    %v4045 = vpop.f32.mrf.mxu0
    %v4046 = vadd.f32 0.0, %v4045
    %v4047 = vpop.f32.mrf.mxu0
    %v4048 = vadd.f32 0.0, %v4047
    %4049 = vdwg.mxu0
    %v4052 = vrot.slane %v4046, 4
    %v4053 = vrot.slane %v4048, 4
    %v4056 = vadd.f32 %v3673, %v4052
    %v4057 = vadd.f32 %v3675, %v4053
    %v4058 = vxor.u32 %v4056, 2147483648
    %v4059 = vmul.f32 %v4058, 1.442695
    %v4060 = vpow.pop %v4059
    %v4061 = vadd.f32 %v4060, 1.0
    %v4062 = vrcp.pop %v4061
    %v4063 = vmul.f32 1.0, %v4062
    %v4064 = vtanh.pop %v4057
    %v4065 = vxor.u32 %v4057, 2147483648
    %v4066 = vmul.f32 %v4065, 1.442695
    %v4067 = vpow.pop %v4066
    %v4068 = vadd.f32 %v4067, 1.0
    %v4069 = vrcp.pop %v4068
    %v4070 = vmul.f32 1.0, %v4069
    %v4072 = vrot.slane %v3970, 6
    %v4074 = vmul.f32 %v4063, %v4072
    %v4075 = vmul.f32 %v4063, %v4064
    %4077 = vrot.lane.b32.xlu0 %v4075, 64
    %v4078 = vpop.permute.xlu0 %4077
    %v4080 = vadd.f32 %v4074, %v4078
    %v4081 = vtanh.pop %v4080
    %v4082 = vmul.f32 %v4070, %v4081
    %v4084 = vrot.slane %v4082, 4
    %4085 = vrot.lane.b32.xlu0 %v4084, 64
    %v4086 = vpop.permute.xlu0 %4085
    %v4087 = vsel %vm1740, %v4086, 0
    %4089 = vmatprep.subr.mxu0 0.0
    %4090 = vmatpush1.msra.mxu0 0.0
    %4091 = vmatprep.subr.mxu0 0.0
    %4092 = vmatpush1.msra.mxu0 0.0
    %4093 = vmatprep.subr.mxu0 0.0
    %4094 = vmatpush1.msra.mxu0 0.0
    %4095 = vmatprep.subr.mxu0 0.0
    %4096 = vmatpush1.msra.mxu0 0.0
    %4097 = vmatprep.subr.mxu0 0.0
    %4098 = vmatpush1.msra.mxu0 0.0
    %4099 = vmatprep.subr.mxu0 0.0
    %4100 = vmatpush1.msra.mxu0 0.0
    %4101 = vmatprep.subr.mxu0 0.0
    %4102 = vmatpush1.msra.mxu0 0.0
    %4103 = vmatprep.subr.mxu0 0.0
    %4104 = vmatpush1.msra.mxu0 0.0
    %4105 = vmatprep.subr.mxu0 %v3544
    %4106 = vmatpush1.msra.mxu0 %v3543
    %4107 = vmatprep.subr.mxu0 %v3542
    %4108 = vmatpush1.msra.mxu0 %v3541
    %4109 = vmatprep.subr.mxu0 %v3540
    %4110 = vmatpush1.msra.mxu0 %v3539
    %4111 = vmatprep.subr.mxu0 %v3538
    %4112 = vmatpush1.msra.mxu0 %v3537
    %4113 = vmatprep.subr.mxu0 %v3536
    %4114 = vmatpush1.msra.mxu0 %v3535
    %4115 = vmatprep.subr.mxu0 %v3534
    %4116 = vmatpush1.msra.mxu0 %v3533
    %4117 = vmatprep.subr.mxu0 %v3532
    %4118 = vmatpush1.msra.mxu0 %v3531
    %4119 = vmatprep.subr.mxu0 %v3530
    %4120 = vmatpush1.msra.mxu0 %v3529
    %4121 = vmatprep.subr.mxu0 0.0
    %4122 = vmatpush2.msra.mxu0 0.0
    %4123 = vmatprep.subr.mxu0 0.0
    %4124 = vmatpush2.msra.mxu0 0.0
    %4125 = vmatprep.subr.mxu0 0.0
    %4126 = vmatpush2.msra.mxu0 0.0
    %4127 = vmatprep.subr.mxu0 0.0
    %4128 = vmatpush2.msra.mxu0 0.0
    %4129 = vmatprep.subr.mxu0 0.0
    %4130 = vmatpush2.msra.mxu0 0.0
    %4131 = vmatprep.subr.mxu0 0.0
    %4132 = vmatpush2.msra.mxu0 0.0
    %4133 = vmatprep.subr.mxu0 0.0
    %4134 = vmatpush2.msra.mxu0 0.0
    %4135 = vmatprep.subr.mxu0 0.0
    %4136 = vmatpush2.msra.mxu0 0.0
    %4137 = vmatprep.subr.mxu0 0.0
    %4138 = vmatpush2.msra.mxu0 0.0
    %4139 = vmatprep.subr.mxu0 0.0
    %4140 = vmatpush2.msra.mxu0 0.0
    %4141 = vmatprep.subr.mxu0 0.0
    %4142 = vmatpush2.msra.mxu0 0.0
    %4143 = vmatprep.subr.mxu0 0.0
    %4144 = vmatpush2.msra.mxu0 0.0
    %4145 = vmatprep.subr.mxu0 0.0
    %4146 = vmatpush2.msra.mxu0 0.0
    %4147 = vmatprep.subr.mxu0 0.0
    %4148 = vmatpush2.msra.mxu0 0.0
    %4149 = vmatprep.subr.mxu0 0.0
    %4150 = vmatpush2.msra.mxu0 0.0
    %4151 = vmatprep.subr.mxu0 0.0
    %4152 = vmatpush2.msra.mxu0 0.0
    %4153 = vmatprep.mubr.f32.mxu0 0.0
    %4154 = vmatmul.mubr.f32.gmra.mxu0 %v4087
    %v4155 = vpop.f32.mrf.mxu0
    %v4156 = vadd.f32 0.0, %v4155
    %v4157 = vpop.f32.mrf.mxu0
    %v4158 = vadd.f32 0.0, %v4157
    %4159 = vdwg.mxu0
    %v4162 = vrot.slane %v4156, 2
    %v4163 = vrot.slane %v4158, 2
    %v4166 = vadd.f32 %v3673, %v4162
    %v4167 = vadd.f32 %v3675, %v4163
    %v4168 = vxor.u32 %v4166, 2147483648
    %v4169 = vmul.f32 %v4168, 1.442695
    %v4170 = vpow.pop %v4169
    %v4171 = vadd.f32 %v4170, 1.0
    %v4172 = vrcp.pop %v4171
    %v4173 = vmul.f32 1.0, %v4172
    %v4174 = vtanh.pop %v4167
    %v4175 = vxor.u32 %v4167, 2147483648
    %v4176 = vmul.f32 %v4175, 1.442695
    %v4177 = vpow.pop %v4176
    %v4178 = vadd.f32 %v4177, 1.0
    %v4179 = vrcp.pop %v4178
    %v4180 = vmul.f32 1.0, %v4179
    %v4182 = vrot.slane %v4080, 6
    %v4184 = vmul.f32 %v4173, %v4182
    %v4185 = vmul.f32 %v4173, %v4174
    %4187 = vrot.lane.b32.xlu0 %v4185, 64
    %v4188 = vpop.permute.xlu0 %4187
    %v4190 = vadd.f32 %v4184, %v4188
    %v4191 = vtanh.pop %v4190
    %v4192 = vmul.f32 %v4180, %v4191
    %v4194 = vrot.slane %v4192, 6
    %4195 = vrot.lane.b32.xlu0 %v4194, 64
    %v4196 = vpop.permute.xlu0 %4195
    %v4197 = vsel %vm1740, %v4196, 0
    %4199 = vmatprep.subr.mxu0 0.0
    %4200 = vmatpush1.msra.mxu0 0.0
    %4201 = vmatprep.subr.mxu0 0.0
    %4202 = vmatpush1.msra.mxu0 0.0
    %4203 = vmatprep.subr.mxu0 0.0
    %4204 = vmatpush1.msra.mxu0 0.0
    %4205 = vmatprep.subr.mxu0 0.0
    %4206 = vmatpush1.msra.mxu0 0.0
    %4207 = vmatprep.subr.mxu0 0.0
    %4208 = vmatpush1.msra.mxu0 0.0
    %4209 = vmatprep.subr.mxu0 0.0
    %4210 = vmatpush1.msra.mxu0 0.0
    %4211 = vmatprep.subr.mxu0 0.0
    %4212 = vmatpush1.msra.mxu0 0.0
    %4213 = vmatprep.subr.mxu0 0.0
    %4214 = vmatpush1.msra.mxu0 0.0
    %4215 = vmatprep.subr.mxu0 %v3544
    %4216 = vmatpush1.msra.mxu0 %v3543
    %4217 = vmatprep.subr.mxu0 %v3542
    %4218 = vmatpush1.msra.mxu0 %v3541
    %4219 = vmatprep.subr.mxu0 %v3540
    %4220 = vmatpush1.msra.mxu0 %v3539
    %4221 = vmatprep.subr.mxu0 %v3538
    %4222 = vmatpush1.msra.mxu0 %v3537
    %4223 = vmatprep.subr.mxu0 %v3536
    %4224 = vmatpush1.msra.mxu0 %v3535
    %4225 = vmatprep.subr.mxu0 %v3534
    %4226 = vmatpush1.msra.mxu0 %v3533
    %4227 = vmatprep.subr.mxu0 %v3532
    %4228 = vmatpush1.msra.mxu0 %v3531
    %4229 = vmatprep.subr.mxu0 %v3530
    %4230 = vmatpush1.msra.mxu0 %v3529
    %4231 = vmatprep.subr.mxu0 0.0
    %4232 = vmatpush2.msra.mxu0 0.0
    %4233 = vmatprep.subr.mxu0 0.0
    %4234 = vmatpush2.msra.mxu0 0.0
    %4235 = vmatprep.subr.mxu0 0.0
    %4236 = vmatpush2.msra.mxu0 0.0
    %4237 = vmatprep.subr.mxu0 0.0
    %4238 = vmatpush2.msra.mxu0 0.0
    %4239 = vmatprep.subr.mxu0 0.0
    %4240 = vmatpush2.msra.mxu0 0.0
    %4241 = vmatprep.subr.mxu0 0.0
    %4242 = vmatpush2.msra.mxu0 0.0
    %4243 = vmatprep.subr.mxu0 0.0
    %4244 = vmatpush2.msra.mxu0 0.0
    %4245 = vmatprep.subr.mxu0 0.0
    %4246 = vmatpush2.msra.mxu0 0.0
    %4247 = vmatprep.subr.mxu0 0.0
    %4248 = vmatpush2.msra.mxu0 0.0
    %4249 = vmatprep.subr.mxu0 0.0
    %4250 = vmatpush2.msra.mxu0 0.0
    %4251 = vmatprep.subr.mxu0 0.0
    %4252 = vmatpush2.msra.mxu0 0.0
    %4253 = vmatprep.subr.mxu0 0.0
    %4254 = vmatpush2.msra.mxu0 0.0
    %4255 = vmatprep.subr.mxu0 0.0
    %4256 = vmatpush2.msra.mxu0 0.0
    %4257 = vmatprep.subr.mxu0 0.0
    %4258 = vmatpush2.msra.mxu0 0.0
    %4259 = vmatprep.subr.mxu0 0.0
    %4260 = vmatpush2.msra.mxu0 0.0
    %4261 = vmatprep.subr.mxu0 0.0
    %4262 = vmatpush2.msra.mxu0 0.0
    %4263 = vmatprep.mubr.f32.mxu0 0.0
    %4264 = vmatmul.mubr.f32.gmra.mxu0 %v4197
    %v4265 = vpop.f32.mrf.mxu0
    %v4266 = vadd.f32 0.0, %v4265
    %v4267 = vpop.f32.mrf.mxu0
    %v4268 = vadd.f32 0.0, %v4267
    %4269 = vdwg.mxu0
    %v4270 = vadd.f32 %v3679, %v4266
    %v4271 = vadd.f32 %v3681, %v4268
    %v4272 = vxor.u32 %v4270, 2147483648
    %v4273 = vmul.f32 %v4272, 1.442695
    %v4274 = vpow.pop %v4273
    %v4275 = vadd.f32 %v4274, 1.0
    %v4276 = vrcp.pop %v4275
    %v4277 = vmul.f32 1.0, %v4276
    %v4278 = vtanh.pop %v4271
    %v4279 = vxor.u32 %v4271, 2147483648
    %v4280 = vmul.f32 %v4279, 1.442695
    %v4281 = vpow.pop %v4280
    %v4282 = vadd.f32 %v4281, 1.0
    %v4283 = vrcp.pop %v4282
    %v4284 = vmul.f32 1.0, %v4283
    %v4286 = vrot.slane %v4190, 6
    %v4288 = vmul.f32 %v4277, %v4286
    %v4289 = vmul.f32 %v4277, %v4278
    %4291 = vrot.lane.b32.xlu0 %v4289, 64
    %v4292 = vpop.permute.xlu0 %4291
    %v4294 = vadd.f32 %v4288, %v4292
    %v4295 = vtanh.pop %v4294
    %v4296 = vmul.f32 %v4284, %v4295
    %4298 = vrot.lane.b32.xlu0 %v4296, 64
    %v4299 = vpop.permute.xlu0 %4298
    %v4300 = vsel %vm1740, %v4299, 0
    %4302 = vmatprep.subr.mxu0 0.0
    %4303 = vmatpush1.msra.mxu0 0.0
    %4304 = vmatprep.subr.mxu0 0.0
    %4305 = vmatpush1.msra.mxu0 0.0
    %4306 = vmatprep.subr.mxu0 0.0
    %4307 = vmatpush1.msra.mxu0 0.0
    %4308 = vmatprep.subr.mxu0 0.0
    %4309 = vmatpush1.msra.mxu0 0.0
    %4310 = vmatprep.subr.mxu0 0.0
    %4311 = vmatpush1.msra.mxu0 0.0
    %4312 = vmatprep.subr.mxu0 0.0
    %4313 = vmatpush1.msra.mxu0 0.0
    %4314 = vmatprep.subr.mxu0 0.0
    %4315 = vmatpush1.msra.mxu0 0.0
    %4316 = vmatprep.subr.mxu0 0.0
    %4317 = vmatpush1.msra.mxu0 0.0
    %4318 = vmatprep.subr.mxu0 %v3544
    %4319 = vmatpush1.msra.mxu0 %v3543
    %4320 = vmatprep.subr.mxu0 %v3542
    %4321 = vmatpush1.msra.mxu0 %v3541
    %4322 = vmatprep.subr.mxu0 %v3540
    %4323 = vmatpush1.msra.mxu0 %v3539
    %4324 = vmatprep.subr.mxu0 %v3538
    %4325 = vmatpush1.msra.mxu0 %v3537
    %4326 = vmatprep.subr.mxu0 %v3536
    %4327 = vmatpush1.msra.mxu0 %v3535
    %4328 = vmatprep.subr.mxu0 %v3534
    %4329 = vmatpush1.msra.mxu0 %v3533
    %4330 = vmatprep.subr.mxu0 %v3532
    %4331 = vmatpush1.msra.mxu0 %v3531
    %4332 = vmatprep.subr.mxu0 %v3530
    %4333 = vmatpush1.msra.mxu0 %v3529
    %4334 = vmatprep.subr.mxu0 0.0
    %4335 = vmatpush2.msra.mxu0 0.0
    %4336 = vmatprep.subr.mxu0 0.0
    %4337 = vmatpush2.msra.mxu0 0.0
    %4338 = vmatprep.subr.mxu0 0.0
    %4339 = vmatpush2.msra.mxu0 0.0
    %4340 = vmatprep.subr.mxu0 0.0
    %4341 = vmatpush2.msra.mxu0 0.0
    %4342 = vmatprep.subr.mxu0 0.0
    %4343 = vmatpush2.msra.mxu0 0.0
    %4344 = vmatprep.subr.mxu0 0.0
    %4345 = vmatpush2.msra.mxu0 0.0
    %4346 = vmatprep.subr.mxu0 0.0
    %4347 = vmatpush2.msra.mxu0 0.0
    %4348 = vmatprep.subr.mxu0 0.0
    %4349 = vmatpush2.msra.mxu0 0.0
    %4350 = vmatprep.subr.mxu0 0.0
    %4351 = vmatpush2.msra.mxu0 0.0
    %4352 = vmatprep.subr.mxu0 0.0
    %4353 = vmatpush2.msra.mxu0 0.0
    %4354 = vmatprep.subr.mxu0 0.0
    %4355 = vmatpush2.msra.mxu0 0.0
    %4356 = vmatprep.subr.mxu0 0.0
    %4357 = vmatpush2.msra.mxu0 0.0
    %4358 = vmatprep.subr.mxu0 0.0
    %4359 = vmatpush2.msra.mxu0 0.0
    %4360 = vmatprep.subr.mxu0 0.0
    %4361 = vmatpush2.msra.mxu0 0.0
    %4362 = vmatprep.subr.mxu0 0.0
    %4363 = vmatpush2.msra.mxu0 0.0
    %4364 = vmatprep.subr.mxu0 0.0
    %4365 = vmatpush2.msra.mxu0 0.0
    %4366 = vmatprep.mubr.f32.mxu0 0.0
    %4367 = vmatmul.mubr.f32.gmra.mxu0 %v4300
    %v4368 = vpop.f32.mrf.mxu0
    %v4369 = vadd.f32 0.0, %v4368
    %v4370 = vpop.f32.mrf.mxu0
    %v4371 = vadd.f32 0.0, %v4370
    %4372 = vdwg.mxu0
    %v4375 = vrot.slane %v4369, 6
    %v4376 = vrot.slane %v4371, 6
    %v4379 = vadd.f32 %v3679, %v4375
    %v4380 = vadd.f32 %v3681, %v4376
    %v4381 = vxor.u32 %v4379, 2147483648
    %v4382 = vmul.f32 %v4381, 1.442695
    %v4383 = vpow.pop %v4382
    %v4384 = vadd.f32 %v4383, 1.0
    %v4385 = vrcp.pop %v4384
    %v4386 = vmul.f32 1.0, %v4385
    %v4387 = vtanh.pop %v4380
    %v4388 = vxor.u32 %v4380, 2147483648
    %v4389 = vmul.f32 %v4388, 1.442695
    %v4390 = vpow.pop %v4389
    %v4391 = vadd.f32 %v4390, 1.0
    %v4392 = vrcp.pop %v4391
    %v4393 = vmul.f32 1.0, %v4392
    %v4395 = vrot.slane %v4294, 6
    %v4397 = vmul.f32 %v4386, %v4395
    %v4398 = vmul.f32 %v4386, %v4387
    %4400 = vrot.lane.b32.xlu0 %v4398, 64
    %v4401 = vpop.permute.xlu0 %4400
    %v4403 = vadd.f32 %v4397, %v4401
    %v4404 = vtanh.pop %v4403
    %v4405 = vmul.f32 %v4393, %v4404
    %v4407 = vrot.slane %v4405, 2
    %4408 = vrot.lane.b32.xlu0 %v4407, 64
    %v4409 = vpop.permute.xlu0 %4408
    %v4410 = vsel %vm1740, %v4409, 0
    %4412 = vmatprep.subr.mxu0 0.0
    %4413 = vmatpush1.msra.mxu0 0.0
    %4414 = vmatprep.subr.mxu0 0.0
    %4415 = vmatpush1.msra.mxu0 0.0
    %4416 = vmatprep.subr.mxu0 0.0
    %4417 = vmatpush1.msra.mxu0 0.0
    %4418 = vmatprep.subr.mxu0 0.0
    %4419 = vmatpush1.msra.mxu0 0.0
    %4420 = vmatprep.subr.mxu0 0.0
    %4421 = vmatpush1.msra.mxu0 0.0
    %4422 = vmatprep.subr.mxu0 0.0
    %4423 = vmatpush1.msra.mxu0 0.0
    %4424 = vmatprep.subr.mxu0 0.0
    %4425 = vmatpush1.msra.mxu0 0.0
    %4426 = vmatprep.subr.mxu0 0.0
    %4427 = vmatpush1.msra.mxu0 0.0
    %4428 = vmatprep.subr.mxu0 %v3544
    %4429 = vmatpush1.msra.mxu0 %v3543
    %4430 = vmatprep.subr.mxu0 %v3542
    %4431 = vmatpush1.msra.mxu0 %v3541
    %4432 = vmatprep.subr.mxu0 %v3540
    %4433 = vmatpush1.msra.mxu0 %v3539
    %4434 = vmatprep.subr.mxu0 %v3538
    %4435 = vmatpush1.msra.mxu0 %v3537
    %4436 = vmatprep.subr.mxu0 %v3536
    %4437 = vmatpush1.msra.mxu0 %v3535
    %4438 = vmatprep.subr.mxu0 %v3534
    %4439 = vmatpush1.msra.mxu0 %v3533
    %4440 = vmatprep.subr.mxu0 %v3532
    %4441 = vmatpush1.msra.mxu0 %v3531
    %4442 = vmatprep.subr.mxu0 %v3530
    %4443 = vmatpush1.msra.mxu0 %v3529
    %4444 = vmatprep.subr.mxu0 0.0
    %4445 = vmatpush2.msra.mxu0 0.0
    %4446 = vmatprep.subr.mxu0 0.0
    %4447 = vmatpush2.msra.mxu0 0.0
    %4448 = vmatprep.subr.mxu0 0.0
    %4449 = vmatpush2.msra.mxu0 0.0
    %4450 = vmatprep.subr.mxu0 0.0
    %4451 = vmatpush2.msra.mxu0 0.0
    %4452 = vmatprep.subr.mxu0 0.0
    %4453 = vmatpush2.msra.mxu0 0.0
    %4454 = vmatprep.subr.mxu0 0.0
    %4455 = vmatpush2.msra.mxu0 0.0
    %4456 = vmatprep.subr.mxu0 0.0
    %4457 = vmatpush2.msra.mxu0 0.0
    %4458 = vmatprep.subr.mxu0 0.0
    %4459 = vmatpush2.msra.mxu0 0.0
    %4460 = vmatprep.subr.mxu0 0.0
    %4461 = vmatpush2.msra.mxu0 0.0
    %4462 = vmatprep.subr.mxu0 0.0
    %4463 = vmatpush2.msra.mxu0 0.0
    %4464 = vmatprep.subr.mxu0 0.0
    %4465 = vmatpush2.msra.mxu0 0.0
    %4466 = vmatprep.subr.mxu0 0.0
    %4467 = vmatpush2.msra.mxu0 0.0
    %4468 = vmatprep.subr.mxu0 0.0
    %4469 = vmatpush2.msra.mxu0 0.0
    %4470 = vmatprep.subr.mxu0 0.0
    %4471 = vmatpush2.msra.mxu0 0.0
    %4472 = vmatprep.subr.mxu0 0.0
    %4473 = vmatpush2.msra.mxu0 0.0
    %4474 = vmatprep.subr.mxu0 0.0
    %4475 = vmatpush2.msra.mxu0 0.0
    %4476 = vmatprep.mubr.f32.mxu0 0.0
    %4477 = vmatmul.mubr.f32.gmra.mxu0 %v4410
    %v4478 = vpop.f32.mrf.mxu0
    %v4479 = vadd.f32 0.0, %v4478
    %v4480 = vpop.f32.mrf.mxu0
    %v4481 = vadd.f32 0.0, %v4480
    %4482 = vdwg.mxu0
    %v4485 = vrot.slane %v4479, 4
    %v4486 = vrot.slane %v4481, 4
    %v4489 = vadd.f32 %v3679, %v4485
    %v4490 = vadd.f32 %v3681, %v4486
    %v4491 = vxor.u32 %v4489, 2147483648
    %v4492 = vmul.f32 %v4491, 1.442695
    %v4493 = vpow.pop %v4492
    %v4494 = vadd.f32 %v4493, 1.0
    %v4495 = vrcp.pop %v4494
    %v4496 = vmul.f32 1.0, %v4495
    %v4497 = vtanh.pop %v4490
    %v4498 = vxor.u32 %v4490, 2147483648
    %v4499 = vmul.f32 %v4498, 1.442695
    %v4500 = vpow.pop %v4499
    %v4501 = vadd.f32 %v4500, 1.0
    %v4502 = vrcp.pop %v4501
    %v4503 = vmul.f32 1.0, %v4502
    %v4505 = vrot.slane %v4403, 6
    %v4507 = vmul.f32 %v4496, %v4505
    %v4508 = vmul.f32 %v4496, %v4497
    %4510 = vrot.lane.b32.xlu0 %v4508, 64
    %v4511 = vpop.permute.xlu0 %4510
    %v4513 = vadd.f32 %v4507, %v4511
    %v4514 = vtanh.pop %v4513
    %v4515 = vmul.f32 %v4503, %v4514
    %v4517 = vrot.slane %v4515, 4
    %4518 = vrot.lane.b32.xlu0 %v4517, 64
    %v4519 = vpop.permute.xlu0 %4518
    %v4520 = vsel %vm1740, %v4519, 0
    %4522 = vmatprep.subr.mxu0 0.0
    %4523 = vmatpush1.msra.mxu0 0.0
    %4524 = vmatprep.subr.mxu0 0.0
    %4525 = vmatpush1.msra.mxu0 0.0
    %4526 = vmatprep.subr.mxu0 0.0
    %4527 = vmatpush1.msra.mxu0 0.0
    %4528 = vmatprep.subr.mxu0 0.0
    %4529 = vmatpush1.msra.mxu0 0.0
    %4530 = vmatprep.subr.mxu0 0.0
    %4531 = vmatpush1.msra.mxu0 0.0
    %4532 = vmatprep.subr.mxu0 0.0
    %4533 = vmatpush1.msra.mxu0 0.0
    %4534 = vmatprep.subr.mxu0 0.0
    %4535 = vmatpush1.msra.mxu0 0.0
    %4536 = vmatprep.subr.mxu0 0.0
    %4537 = vmatpush1.msra.mxu0 0.0
    %4538 = vmatprep.subr.mxu0 %v3544
    %4539 = vmatpush1.msra.mxu0 %v3543
    %4540 = vmatprep.subr.mxu0 %v3542
    %4541 = vmatpush1.msra.mxu0 %v3541
    %4542 = vmatprep.subr.mxu0 %v3540
    %4543 = vmatpush1.msra.mxu0 %v3539
    %4544 = vmatprep.subr.mxu0 %v3538
    %4545 = vmatpush1.msra.mxu0 %v3537
    %4546 = vmatprep.subr.mxu0 %v3536
    %4547 = vmatpush1.msra.mxu0 %v3535
    %4548 = vmatprep.subr.mxu0 %v3534
    %4549 = vmatpush1.msra.mxu0 %v3533
    %4550 = vmatprep.subr.mxu0 %v3532
    %4551 = vmatpush1.msra.mxu0 %v3531
    %4552 = vmatprep.subr.mxu0 %v3530
    %4553 = vmatpush1.msra.mxu0 %v3529
    %4554 = vmatprep.subr.mxu0 0.0
    %4555 = vmatpush2.msra.mxu0 0.0
    %4556 = vmatprep.subr.mxu0 0.0
    %4557 = vmatpush2.msra.mxu0 0.0
    %4558 = vmatprep.subr.mxu0 0.0
    %4559 = vmatpush2.msra.mxu0 0.0
    %4560 = vmatprep.subr.mxu0 0.0
    %4561 = vmatpush2.msra.mxu0 0.0
    %4562 = vmatprep.subr.mxu0 0.0
    %4563 = vmatpush2.msra.mxu0 0.0
    %4564 = vmatprep.subr.mxu0 0.0
    %4565 = vmatpush2.msra.mxu0 0.0
    %4566 = vmatprep.subr.mxu0 0.0
    %4567 = vmatpush2.msra.mxu0 0.0
    %4568 = vmatprep.subr.mxu0 0.0
    %4569 = vmatpush2.msra.mxu0 0.0
    %4570 = vmatprep.subr.mxu0 0.0
    %4571 = vmatpush2.msra.mxu0 0.0
    %4572 = vmatprep.subr.mxu0 0.0
    %4573 = vmatpush2.msra.mxu0 0.0
    %4574 = vmatprep.subr.mxu0 0.0
    %4575 = vmatpush2.msra.mxu0 0.0
    %4576 = vmatprep.subr.mxu0 0.0
    %4577 = vmatpush2.msra.mxu0 0.0
    %4578 = vmatprep.subr.mxu0 0.0
    %4579 = vmatpush2.msra.mxu0 0.0
    %4580 = vmatprep.subr.mxu0 0.0
    %4581 = vmatpush2.msra.mxu0 0.0
    %4582 = vmatprep.subr.mxu0 0.0
    %4583 = vmatpush2.msra.mxu0 0.0
    %4584 = vmatprep.subr.mxu0 0.0
    %4585 = vmatpush2.msra.mxu0 0.0
    %4586 = vmatprep.mubr.f32.mxu0 0.0
    %4587 = vmatmul.mubr.f32.gmra.mxu0 %v4520
    %v4588 = vpop.f32.mrf.mxu0
    %v4589 = vadd.f32 0.0, %v4588
    %v4590 = vpop.f32.mrf.mxu0
    %v4591 = vadd.f32 0.0, %v4590
    %4592 = vdwg.mxu0
    %v4595 = vrot.slane %v4589, 2
    %v4596 = vrot.slane %v4591, 2
    %v4599 = vadd.f32 %v3679, %v4595
    %v4600 = vadd.f32 %v3681, %v4596
    %v4601 = vxor.u32 %v4599, 2147483648
    %v4602 = vmul.f32 %v4601, 1.442695
    %v4603 = vpow.pop %v4602
    %v4604 = vadd.f32 %v4603, 1.0
    %v4605 = vrcp.pop %v4604
    %v4606 = vmul.f32 1.0, %v4605
    %v4607 = vtanh.pop %v4600
    %v4608 = vxor.u32 %v4600, 2147483648
    %v4609 = vmul.f32 %v4608, 1.442695
    %v4610 = vpow.pop %v4609
    %v4611 = vadd.f32 %v4610, 1.0
    %v4612 = vrcp.pop %v4611
    %v4613 = vmul.f32 1.0, %v4612
    %v4615 = vrot.slane %v4513, 6
    %v4617 = vmul.f32 %v4606, %v4615
    %v4618 = vmul.f32 %v4606, %v4607
    %4620 = vrot.lane.b32.xlu0 %v4618, 64
    %v4621 = vpop.permute.xlu0 %4620
    %v4623 = vadd.f32 %v4617, %v4621
    %v4624 = vtanh.pop %v4623
    %v4625 = vmul.f32 %v4613, %v4624
    %4626 = vmatprep.subr.mxu0 0.0
    %4627 = vmatpush1.msra.mxu0 0.0
    %4628 = vmatprep.subr.mxu0 0.0
    %4629 = vmatpush1.msra.mxu0 0.0
    %4630 = vmatprep.subr.mxu0 0.0
    %4631 = vmatpush1.msra.mxu0 0.0
    %4632 = vmatprep.subr.mxu0 0.0
    %4633 = vmatpush1.msra.mxu0 0.0
    %4634 = vmatprep.subr.mxu0 0.0
    %4635 = vmatpush1.msra.mxu0 0.0
    %4636 = vmatprep.subr.mxu0 0.0
    %4637 = vmatpush1.msra.mxu0 0.0
    %4638 = vmatprep.subr.mxu0 0.0
    %4639 = vmatpush1.msra.mxu0 0.0
    %4640 = vmatprep.subr.mxu0 0.0
    %4641 = vmatpush1.msra.mxu0 0.0
    %4642 = vmatprep.subr.mxu0 %v3593
    %4643 = vmatpush1.msra.mxu0 %v3592
    %4644 = vmatprep.subr.mxu0 %v3591
    %4645 = vmatpush1.msra.mxu0 %v3590
    %4646 = vmatprep.subr.mxu0 %v3589
    %4647 = vmatpush1.msra.mxu0 %v3588
    %4648 = vmatprep.subr.mxu0 %v3587
    %4649 = vmatpush1.msra.mxu0 %v3586
    %4650 = vmatprep.subr.mxu0 %v3585
    %4651 = vmatpush1.msra.mxu0 %v3584
    %4652 = vmatprep.subr.mxu0 %v3583
    %4653 = vmatpush1.msra.mxu0 %v3582
    %4654 = vmatprep.subr.mxu0 %v3581
    %4655 = vmatpush1.msra.mxu0 %v3580
    %4656 = vmatprep.subr.mxu0 %v3579
    %4657 = vmatpush1.msra.mxu0 %v3578
    %4658 = vmatprep.subr.mxu0 0.0
    %4659 = vmatpush2.msra.mxu0 0.0
    %4660 = vmatprep.subr.mxu0 0.0
    %4661 = vmatpush2.msra.mxu0 0.0
    %4662 = vmatprep.subr.mxu0 0.0
    %4663 = vmatpush2.msra.mxu0 0.0
    %4664 = vmatprep.subr.mxu0 0.0
    %4665 = vmatpush2.msra.mxu0 0.0
    %4666 = vmatprep.subr.mxu0 0.0
    %4667 = vmatpush2.msra.mxu0 0.0
    %4668 = vmatprep.subr.mxu0 0.0
    %4669 = vmatpush2.msra.mxu0 0.0
    %4670 = vmatprep.subr.mxu0 0.0
    %4671 = vmatpush2.msra.mxu0 0.0
    %4672 = vmatprep.subr.mxu0 0.0
    %4673 = vmatpush2.msra.mxu0 0.0
    %4674 = vmatprep.subr.mxu0 0.0
    %4675 = vmatpush2.msra.mxu0 0.0
    %4676 = vmatprep.subr.mxu0 0.0
    %4677 = vmatpush2.msra.mxu0 0.0
    %4678 = vmatprep.subr.mxu0 0.0
    %4679 = vmatpush2.msra.mxu0 0.0
    %4680 = vmatprep.subr.mxu0 0.0
    %4681 = vmatpush2.msra.mxu0 0.0
    %4682 = vmatprep.subr.mxu0 0.0
    %4683 = vmatpush2.msra.mxu0 0.0
    %4684 = vmatprep.subr.mxu0 0.0
    %4685 = vmatpush2.msra.mxu0 0.0
    %4686 = vmatprep.subr.mxu0 0.0
    %4687 = vmatpush2.msra.mxu0 0.0
    %4688 = vmatprep.subr.mxu0 0.0
    %4689 = vmatpush2.msra.mxu0 0.0
    %4690 = vmatprep.mubr.f32.mxu0 0.0
    %4691 = vmatmul.mubr.f32.gmra.mxu0 %v1742
    %v4692 = vpop.f32.mrf.mxu0
    %v4693 = vadd.f32 0.0, %v4692
    %v4694 = vpop.f32.mrf.mxu0
    %v4695 = vadd.f32 0.0, %v4694
    %4696 = vdwg.mxu0
    %v4699 = vrot.slane %v4693, 2
    %v4700 = vrot.slane %v4695, 2
    %v4703 = vadd.f32 %v3765, %v4699
    %v4704 = vadd.f32 %v3767, %v4700
    %v4705 = vxor.u32 %v4703, 2147483648
    %v4706 = vmul.f32 %v4705, 1.442695
    %v4707 = vpow.pop %v4706
    %v4708 = vadd.f32 %v4707, 1.0
    %v4709 = vrcp.pop %v4708
    %v4710 = vmul.f32 1.0, %v4709
    %v4711 = vtanh.pop %v4704
    %v4712 = vxor.u32 %v4704, 2147483648
    %v4713 = vmul.f32 %v4712, 1.442695
    %v4714 = vpow.pop %v4713
    %v4715 = vadd.f32 %v4714, 1.0
    %v4716 = vrcp.pop %v4715
    %v4717 = vmul.f32 1.0, %v4716
    %v4718 = vmul.f32 %v4710, 0.0
    %v4719 = vmul.f32 %v4710, %v4711
    %4721 = vrot.lane.b32.xlu0 %v4719, 64
    %v4722 = vpop.permute.xlu0 %4721
    %v4724 = vadd.f32 %v4718, %v4722
    %v4725 = vtanh.pop %v4724
    %v4726 = vmul.f32 %v4717, %v4725
    %4728 = vrot.lane.b32.xlu0 %v4625, 64
    %v4729 = vpop.permute.xlu0 %4728
    %v4731 = vsel %vm1740, %v4729, %v4726
    %v4732 = vld [vmem:[%s25] sm:$0xff]
    %v4733 = vld [vmem:[%s25 + $0x8] sm:$0xff]
    %v4734 = vld [vmem:[%s25 + $0x10] sm:$0xff]
    %v4735 = vld [vmem:[%s25 + $0x18] sm:$0xff]
    %v4736 = vld [vmem:[%s25 + $0x20] sm:$0xff]
    %v4737 = vld [vmem:[%s25 + $0x28] sm:$0xff]
    %v4738 = vld [vmem:[%s25 + $0x30] sm:$0xff]
    %v4739 = vld [vmem:[%s25 + $0x38] sm:$0xff]
    %v4740 = vld [vmem:[%s25 + $0x40] sm:$0xff]
    %v4741 = vld [vmem:[%s25 + $0x48] sm:$0xff]
    %v4742 = vld [vmem:[%s25 + $0x50] sm:$0xff]
    %v4743 = vld [vmem:[%s25 + $0x58] sm:$0xff]
    %v4744 = vld [vmem:[%s25 + $0x60] sm:$0xff]
    %v4745 = vld [vmem:[%s25 + $0x68] sm:$0xff]
    %v4746 = vld [vmem:[%s25 + $0x70] sm:$0xff]
    %v4747 = vld [vmem:[%s25 + $0x78] sm:$0xff]
    %v4748 = vld [vmem:[#allocation2] sm:$0x1]
    %v4750 = vlaneseq
    %v4751 = vshrl.u32 %v4750, 7
    %v4752 = vsub.s32 0, %v4751
    %v4753 = vrot.slane %v4748, %v4752
    %v4756 = vrot.slane %v4731, 6
    %4758 = vmatprep.subr.mxu0 0.0
    %4759 = vmatpush1.msra.mxu0 %v4747
    %4760 = vmatprep.subr.mxu0 0.0
    %4761 = vmatpush1.msra.mxu0 %v4746
    %4762 = vmatprep.subr.mxu0 0.0
    %4763 = vmatpush1.msra.mxu0 %v4745
    %4764 = vmatprep.subr.mxu0 0.0
    %4765 = vmatpush1.msra.mxu0 %v4744
    %4766 = vmatprep.subr.mxu0 0.0
    %4767 = vmatpush1.msra.mxu0 %v4743
    %4768 = vmatprep.subr.mxu0 0.0
    %4769 = vmatpush1.msra.mxu0 %v4742
    %4770 = vmatprep.subr.mxu0 0.0
    %4771 = vmatpush1.msra.mxu0 %v4741
    %4772 = vmatprep.subr.mxu0 0.0
    %4773 = vmatpush1.msra.mxu0 %v4740
    %4774 = vmatprep.subr.mxu0 0.0
    %4775 = vmatpush1.msra.mxu0 %v4739
    %4776 = vmatprep.subr.mxu0 0.0
    %4777 = vmatpush1.msra.mxu0 %v4738
    %4778 = vmatprep.subr.mxu0 0.0
    %4779 = vmatpush1.msra.mxu0 %v4737
    %4780 = vmatprep.subr.mxu0 0.0
    %4781 = vmatpush1.msra.mxu0 %v4736
    %4782 = vmatprep.subr.mxu0 0.0
    %4783 = vmatpush1.msra.mxu0 %v4735
    %4784 = vmatprep.subr.mxu0 0.0
    %4785 = vmatpush1.msra.mxu0 %v4734
    %4786 = vmatprep.subr.mxu0 0.0
    %4787 = vmatpush1.msra.mxu0 %v4733
    %4788 = vmatprep.subr.mxu0 0.0
    %4789 = vmatpush1.msra.mxu0 %v4732
    %4790 = vmatprep.subr.mxu0 0.0
    %4791 = vmatpush2.msra.mxu0 0.0
    %4792 = vmatprep.subr.mxu0 0.0
    %4793 = vmatpush2.msra.mxu0 0.0
    %4794 = vmatprep.subr.mxu0 0.0
    %4795 = vmatpush2.msra.mxu0 0.0
    %4796 = vmatprep.subr.mxu0 0.0
    %4797 = vmatpush2.msra.mxu0 0.0
    %4798 = vmatprep.subr.mxu0 0.0
    %4799 = vmatpush2.msra.mxu0 0.0
    %4800 = vmatprep.subr.mxu0 0.0
    %4801 = vmatpush2.msra.mxu0 0.0
    %4802 = vmatprep.subr.mxu0 0.0
    %4803 = vmatpush2.msra.mxu0 0.0
    %4804 = vmatprep.subr.mxu0 0.0
    %4805 = vmatpush2.msra.mxu0 0.0
    %4806 = vmatprep.subr.mxu0 0.0
    %4807 = vmatpush2.msra.mxu0 0.0
    %4808 = vmatprep.subr.mxu0 0.0
    %4809 = vmatpush2.msra.mxu0 0.0
    %4810 = vmatprep.subr.mxu0 0.0
    %4811 = vmatpush2.msra.mxu0 0.0
    %4812 = vmatprep.subr.mxu0 0.0
    %4813 = vmatpush2.msra.mxu0 0.0
    %4814 = vmatprep.subr.mxu0 0.0
    %4815 = vmatpush2.msra.mxu0 0.0
    %4816 = vmatprep.subr.mxu0 0.0
    %4817 = vmatpush2.msra.mxu0 0.0
    %4818 = vmatprep.subr.mxu0 0.0
    %4819 = vmatpush2.msra.mxu0 0.0
    %4820 = vmatprep.subr.mxu0 0.0
    %4821 = vmatpush2.msra.mxu0 0.0
    %4822 = vmatprep.mubr.f32.mxu0 0.0
    %4823 = vmatmul.mubr.f32.gmra.mxu0 %v4756
    %v4824 = vpop.f32.mrf.mxu0
    %v4825 = vadd.f32 %v4753, %v4824
    %v4826 = vpop.f32.mrf.mxu0
    %4827 = vdwg.mxu0
    %v4828 = vxor.u32 %v4825, 2147483648
    %v4829 = vmul.f32 %v4828, 1.442695
    %v4830 = vpow.pop %v4829
    %v4831 = vadd.f32 %v4830, 1.0
    %v4832 = vrcp.pop %v4831
    %v4833 = vmul.f32 1.0, %v4832
    %vm4834 = vcmask 1024
    %4835 = vst.msk [vmem:[%s27] sm:$0x3] %vm4834, %v4833
    // Predicated region
    $region170: #{cldnn_g_forward.1} parent=1 // pred_check
      _
    $region171: #{cldnn_g_forward.1} parent=1 // pred_check_branch
      %4837 = sbr.rel (0) target = $region173
    $region172: #{cldnn_g_forward.1} parent=1 // pred_region
      _
    $region173: #{cldnn_g_forward.1} parent=1 // pred_fallthru
      _
    // Predicated region
    $region174: #{cldnn_g_forward.1} parent=1 // pred_check
      _
    $region175: #{cldnn_g_forward.1} parent=1 // pred_check_branch
      %4839 = sbr.rel (0) target = $region177
    $region176: #{cldnn_g_forward.1} parent=1 // pred_region
      _
    $region177: #{cldnn_g_forward.1} parent=1 // pred_fallthru
      _
    %4840 = vsyncpa [#allocation4], 1
    %4841 = vsyncpa [#allocation6], 1
    %4842 = vsyncpa [#allocation9], 1
    %4843 = vsyncpa [#allocation12], 1
    %4844 = vsyncpa [#allocation15], 1
    %4845 = vsyncpa [#allocation18], 1
    %4846 = vsyncpa [#allocation21], 1
    %4847 = vsyncpa [#allocation24], 1

</llo_original>
